<compile_context>
chip_gen: v7x
topology: tpu7x:2x2x1
jax: 0.10.0
libtpu: 0.0.40
codegen_flags: <defaults>
</compile_context>

<pallas_src>
import functools
import math

import jax
import jax.numpy as jnp
from jax.experimental import pallas as pl
from jax.experimental.pallas import tpu as pltpu


# ----------------------------- config ---------------------------------------
CONFIG = dict(
    hidden_size=128,
    intermediate_size=256,
    num_attention_heads=4,
    num_key_value_heads=1,
    head_dim=128,
    rms_norm_eps=1e-6,
    rope_theta=10000.0,
)

COMPUTE_DTYPE = jnp.bfloat16           # MXU operand / intermediate activation dtype
_VMEM_LIMIT_BYTES = 48 * 1024 * 1024   # explicit scoped-VMEM budget (< v7x 64 MiB physical)

_M_TILES = (256, 128)                  # M is always padded to a multiple of 128
_N_TILES = (512, 256, 128)
_K_TILES = (512, 256, 128)
_GELU_C = math.sqrt(2.0 / math.pi)


def _pick_tile(dim, prefs):
    for p in prefs:
        if p <= dim and dim % p == 0:
            return p
    return dim


def _round_up(x, m):
    return ((x + m - 1) // m) * m


def _rotate_half(x, half):
    return jnp.concatenate([-x[..., half:], x[..., :half]], axis=-1)


# ----------------------------- Pallas kernels --------------------------------
def _rmsnorm_matmul_kernel(x_ref, g_ref, w_ref, o_ref, xn_ref, *, eps):
    # Fused GemmaRMSNorm (gamma = 1 + weight) + projection.  The normalized
    # activation is computed once per M-tile (j == 0) into a VMEM scratch and
    # reused for every N-tile.
    @pl.when(pl.program_id(1) == 0)
    def _():
        x = x_ref[...].astype(jnp.float32)
        var = jnp.mean(x * x, axis=-1, keepdims=True)
        xn = x * jax.lax.rsqrt(var + eps) * (1.0 + g_ref[...].astype(jnp.float32))
        xn_ref[...] = xn.astype(xn_ref.dtype)

    o_ref[...] = jnp.dot(xn_ref[...], w_ref[...],
                         preferred_element_type=jnp.float32).astype(o_ref.dtype)


def rmsnorm_matmul(x, gamma, w, eps):
    """out = GemmaRMSNorm(x; gamma) @ w.   x: (M, H) f32, w: (H, N) bf16 -> (M, N) bf16."""
    M, H = x.shape
    H2, N = w.shape
    assert H == H2
    tm = _pick_tile(M, _M_TILES)
    tn = _pick_tile(N, _N_TILES)
    return pl.pallas_call(
        functools.partial(_rmsnorm_matmul_kernel, eps=eps),
        out_shape=jax.ShapeDtypeStruct((M, N), COMPUTE_DTYPE),
        grid=(M // tm, N // tn),
        in_specs=[
            pl.BlockSpec((tm, H), lambda i, j: (i, 0)),
            pl.BlockSpec((1, H), lambda i, j: (0, 0)),
            pl.BlockSpec((H, tn), lambda i, j: (0, j)),
        ],
        out_specs=pl.BlockSpec((tm, tn), lambda i, j: (i, j)),
        scratch_shapes=[pltpu.VMEM((tm, H), COMPUTE_DTYPE)],
        compiler_params=pltpu.CompilerParams(
            # j carries the cached-norm scratch -> must stay on one core.
            dimension_semantics=("parallel", "arbitrary"),
            vmem_limit_bytes=_VMEM_LIMIT_BYTES),
    )(x, gamma.reshape(1, H), w)


def _rmsnorm_gateup_kernel(x_ref, g_ref, wg_ref, wu_ref, o_ref, xn_ref, *, eps):
    # Fused post-attention RMSNorm + gate/up projections + GeGLU activation.
    @pl.when(pl.program_id(1) == 0)
    def _():
        x = x_ref[...].astype(jnp.float32)
        var = jnp.mean(x * x, axis=-1, keepdims=True)
        xn = x * jax.lax.rsqrt(var + eps) * (1.0 + g_ref[...].astype(jnp.float32))
        xn_ref[...] = xn.astype(xn_ref.dtype)

    xn = xn_ref[...]
    gate = jnp.dot(xn, wg_ref[...], preferred_element_type=jnp.float32)
    up = jnp.dot(xn, wu_ref[...], preferred_element_type=jnp.float32)
    # gelu with tanh approximation (matches F.gelu(..., approximate='tanh'))
    act = 0.5 * gate * (1.0 + jnp.tanh(_GELU_C * (gate + 0.044715 * gate * gate * gate)))
    o_ref[...] = (act * up).astype(o_ref.dtype)


def rmsnorm_gateup(x, gamma, w_gate, w_up, eps):
    """out = gelu_tanh(norm(x) @ w_gate) * (norm(x) @ w_up)  -> (M, I) bf16."""
    M, H = x.shape
    _, I = w_gate.shape
    tm = _pick_tile(M, _M_TILES)
    tn = _pick_tile(I, _N_TILES)
    return pl.pallas_call(
        functools.partial(_rmsnorm_gateup_kernel, eps=eps),
        out_shape=jax.ShapeDtypeStruct((M, I), COMPUTE_DTYPE),
        grid=(M // tm, I // tn),
        in_specs=[
            pl.BlockSpec((tm, H), lambda i, j: (i, 0)),
            pl.BlockSpec((1, H), lambda i, j: (0, 0)),
            pl.BlockSpec((H, tn), lambda i, j: (0, j)),
            pl.BlockSpec((H, tn), lambda i, j: (0, j)),
        ],
        out_specs=pl.BlockSpec((tm, tn), lambda i, j: (i, j)),
        scratch_shapes=[pltpu.VMEM((tm, H), COMPUTE_DTYPE)],
        compiler_params=pltpu.CompilerParams(
            dimension_semantics=("parallel", "arbitrary"),
            vmem_limit_bytes=_VMEM_LIMIT_BYTES),
    )(x, gamma.reshape(1, H), w_gate, w_up)


def _matmul_residual_kernel(x_ref, w_ref, r_ref, o_ref, acc_ref):
    k = pl.program_id(2)

    @pl.when(k == 0)
    def _():
        acc_ref[...] = jnp.zeros_like(acc_ref)

    acc_ref[...] += jnp.dot(x_ref[...], w_ref[...],
                            preferred_element_type=jnp.float32)

    @pl.when(k == pl.num_programs(2) - 1)
    def _():
        o_ref[...] = (acc_ref[...] + r_ref[...].astype(jnp.float32)).astype(o_ref.dtype)


def matmul_residual(x, w, residual):
    """out = residual + x @ w.   x: (M, K) bf16, w: (K, N) bf16, residual: (M, N) f32."""
    M, K = x.shape
    K2, N = w.shape
    assert K == K2 and residual.shape == (M, N)
    tm = _pick_tile(M, _M_TILES)
    tn = _pick_tile(N, _N_TILES)
    tk = _pick_tile(K, _K_TILES)
    return pl.pallas_call(
        _matmul_residual_kernel,
        out_shape=jax.ShapeDtypeStruct((M, N), jnp.float32),
        grid=(M // tm, N // tn, K // tk),
        in_specs=[
            pl.BlockSpec((tm, tk), lambda i, j, k: (i, k)),
            # TODO(synk): consider pipeline_mode=pl.Buffered(3) on this weight
            # stream if an xprof trace shows exposed DMA between K steps.
            pl.BlockSpec((tk, tn), lambda i, j, k: (k, j)),
            pl.BlockSpec((tm, tn), lambda i, j, k: (i, j)),
        ],
        out_specs=pl.BlockSpec((tm, tn), lambda i, j, k: (i, j)),
        scratch_shapes=[pltpu.VMEM((tm, tn), jnp.float32)],
        compiler_params=pltpu.CompilerParams(
            dimension_semantics=("parallel", "parallel", "arbitrary"),
            vmem_limit_bytes=_VMEM_LIMIT_BYTES),
    )(x, w, residual)


def _flash_attention_kernel(q_ref, k_ref, v_ref, cq_ref, sq_ref, ck_ref, sk_ref,
                            mask_ref, o_ref, qs_ref, m_ref, l_ref, acc_ref,
                            *, scale, n_rep, head_dim):
    ki = pl.program_id(3)
    half = head_dim // 2
    tq = q_ref.shape[0]
    tkv = k_ref.shape[0]

    @pl.when(ki == 0)
    def _():
        # RoPE + 1/sqrt(D) on the query block, once per (batch, group, q-block).
        q = q_ref[...].astype(jnp.float32).reshape(tq, n_rep, head_dim)
        cos = cq_ref[...].astype(jnp.float32)[:, None, :]
        sin = sq_ref[...].astype(jnp.float32)[:, None, :]
        q = q * cos + _rotate_half(q, half) * sin
        qs_ref[...] = (q * scale).reshape(tq * n_rep, head_dim).astype(qs_ref.dtype)
        m_ref[...] = jnp.full(m_ref.shape, -jnp.inf, m_ref.dtype)
        l_ref[...] = jnp.zeros(l_ref.shape, l_ref.dtype)
        acc_ref[...] = jnp.zeros(acc_ref.shape, acc_ref.dtype)

    # RoPE on the current key block.
    k = k_ref[...].astype(jnp.float32)
    k = (k * ck_ref[...].astype(jnp.float32)
         + _rotate_half(k, half) * sk_ref[...].astype(jnp.float32))
    k = k.astype(v_ref.dtype)
    v = v_ref[...]

    # Scores for all n_rep query heads of this KV group: (tq*n_rep, tkv).
    s = jax.lax.dot_general(qs_ref[...], k, (((1,), (1,)), ((), ())),
                            preferred_element_type=jnp.float32)
    # Additive mask broadcast implicitly over the head axis (no copies).
    s = s.reshape(tq, n_rep, tkv) + mask_ref[...].astype(jnp.float32)[:, None, :]

    m_prev = m_ref[...]
    m_new = jnp.maximum(m_prev, jnp.max(s, axis=-1, keepdims=True))
    alpha = jnp.exp(m_prev - m_new)
    p = jnp.exp(s - m_new)
    l_ref[...] = alpha * l_ref[...] + jnp.sum(p, axis=-1, keepdims=True)
    pv = jnp.dot(p.reshape(tq * n_rep, tkv).astype(v.dtype), v,
                 preferred_element_type=jnp.float32)
    acc_ref[...] = alpha * acc_ref[...] + pv.reshape(tq, n_rep, head_dim)
    m_ref[...] = m_new

    @pl.when(ki == pl.num_programs(3) - 1)
    def _():
        out = acc_ref[...] * pl.reciprocal(l_ref[...])   # exact reciprocal
        o_ref[...] = out.reshape(tq, n_rep * head_dim).astype(o_ref.dtype)


def flash_attention(q_slab, k_slab, v_slab, cos, sin, mask, *,
                    num_heads, num_kv_heads, head_dim):
    """Grouped-query flash attention over lane-dense head slabs.

    q_slab: (B, S, nH*D) bf16, k_slab/v_slab: (B, S, nKV*D) bf16,
    cos/sin: (B, S, D) f32 rotary tables, mask: (B, S, S) additive f32.
    Returns the attention-output slab (B, S, nH*D) bf16 (ready for o_proj)."""
    B, S, _ = q_slab.shape
    n_rep = num_heads // num_kv_heads
    tq = _pick_tile(S, (256, 128))
    tkv = _pick_tile(S, (512, 256, 128))
    scale = 1.0 / math.sqrt(head_dim)
    kernel = functools.partial(_flash_attention_kernel, scale=scale,
                               n_rep=n_rep, head_dim=head_dim)
    return pl.pallas_call(
        kernel,
        out_shape=jax.ShapeDtypeStruct((B, S, num_heads * head_dim), COMPUTE_DTYPE),
        grid=(B, num_kv_heads, S // tq, S // tkv),
        in_specs=[
            pl.BlockSpec((None, tq, n_rep * head_dim), lambda b, g, qi, ki: (b, qi, g)),
            pl.BlockSpec((None, tkv, head_dim), lambda b, g, qi, ki: (b, ki, g)),
            pl.BlockSpec((None, tkv, head_dim), lambda b, g, qi, ki: (b, ki, g)),
            pl.BlockSpec((None, tq, head_dim), lambda b, g, qi, ki: (b, qi, 0)),   # cos(q)
            pl.BlockSpec((None, tq, head_dim), lambda b, g, qi, ki: (b, qi, 0)),   # sin(q)
            pl.BlockSpec((None, tkv, head_dim), lambda b, g, qi, ki: (b, ki, 0)),  # cos(k)
            pl.BlockSpec((None, tkv, head_dim), lambda b, g, qi, ki: (b, ki, 0)),  # sin(k)
            pl.BlockSpec((None, tq, tkv), lambda b, g, qi, ki: (b, qi, ki)),
        ],
        out_specs=pl.BlockSpec((None, tq, n_rep * head_dim),
                               lambda b, g, qi, ki: (b, qi, g)),
        scratch_shapes=[
            pltpu.VMEM((tq * n_rep, head_dim), COMPUTE_DTYPE),   # roped + scaled q
            pltpu.VMEM((tq, n_rep, 1), jnp.float32),             # running max
            pltpu.VMEM((tq, n_rep, 1), jnp.float32),             # running sum
            pltpu.VMEM((tq, n_rep, head_dim), jnp.float32),      # output accumulator
        ],
        compiler_params=pltpu.CompilerParams(
            dimension_semantics=("parallel", "parallel", "parallel", "arbitrary"),
            vmem_limit_bytes=_VMEM_LIMIT_BYTES),
    )(q_slab, k_slab, v_slab, cos, sin, cos, sin, mask)


# ----------------------------- model glue ------------------------------------
def _rope_cos_sin(position_ids, head_dim, base):
    # position_ids: (B, S) int -> cos/sin (B, S, head_dim), f32
    inv_freq = 1.0 / (base ** (jnp.arange(0, head_dim, 2, dtype=jnp.float32) / head_dim))
    freqs = position_ids.astype(jnp.float32)[:, :, None] * inv_freq[None, None, :]
    emb = jnp.concatenate([freqs, freqs], axis=-1)
    return jnp.cos(emb), jnp.sin(emb)


def gemma_decoder_layer(params, hidden_states, attention_mask, position_ids, cfg):
    """Reproduces GemmaDecoderLayer.forward with kv_cache=None.
    hidden_states: (B, S, H) f32, attention_mask: (B, S, S) additive f32,
    position_ids: (B, S) int32.  Returns (B, S, H) f32."""
    B, S, H = hidden_states.shape
    nH = cfg["num_attention_heads"]
    nKV = cfg["num_key_value_heads"]
    D = cfg["head_dim"]
    eps = cfg["rms_norm_eps"]

    M = B * S
    M_pad = _round_up(M, 128)              # never fall back to 8-row MXU tiles
    pad = M_pad - M

    h = hidden_states.astype(jnp.float32).reshape(M, H)
    h = jnp.pad(h, ((0, pad), (0, 0)))     # f32 residual stream, padded rows are zero

    # 1) fused input RMSNorm + QKV projection (bf16, lane-dense fused weight)
    qkv = rmsnorm_matmul(h, params["ln1_w"], params["w_qkv"], eps)

    qkv_t = qkv[:M]
    q_slab = qkv_t[:, :nH * D].reshape(B, S, nH * D)
    k_slab = qkv_t[:, nH * D:(nH + nKV) * D].reshape(B, S, nKV * D)
    v_slab = qkv_t[:, (nH + nKV) * D:].reshape(B, S, nKV * D)

    cos, sin = _rope_cos_sin(position_ids, D, cfg["rope_theta"])

    # 2) flash attention (online softmax, in-kernel RoPE, slab in / slab out)
    attn = flash_attention(q_slab, k_slab, v_slab, cos, sin, attention_mask,
                           num_heads=nH, num_kv_heads=nKV, head_dim=D)
    attn = jnp.pad(attn.reshape(M, nH * D), ((0, pad), (0, 0)))

    # 3) o_proj with the residual add fused into the K-tiled epilogue
    h = matmul_residual(attn, params["w_o"], h)

    # 4) fused post-attention RMSNorm + gate/up + gelu(tanh)*up  -> (M, I) bf16
    act = rmsnorm_gateup(h, params["ln2_w"], params["w_gate"], params["w_up"], eps)

    # 5) down_proj + residual, K-tiled f32 accumulator
    h = matmul_residual(act, params["w_down"], h)

    return h[:M].reshape(B, S, H)
    # TODO(synk): decode-time KVCache update (concat along the seq axis) is not implemented.


# ----------------------------- params ----------------------------------------
def init_params(key, cfg):
    H = cfg["hidden_size"]
    I = cfg["intermediate_size"]
    nH = cfg["num_attention_heads"]
    nKV = cfg["num_key_value_heads"]
    D = cfg["head_dim"]

    def dense(k, shape, scale=0.02):
        return (scale * jax.random.normal(k, shape, dtype=jnp.float32)).astype(COMPUTE_DTYPE)

    ks = jax.random.split(key, 7)
    wq = dense(ks[0], (H, nH * D))
    wk = dense(ks[1], (H, nKV * D))
    wv = dense(ks[2], (H, nKV * D))
    return dict(
        ln1_w=jnp.zeros((H,), jnp.float32),   # GemmaRMSNorm weight inits to 0 (gamma = 1 + w)
        ln2_w=jnp.zeros((H,), jnp.float32),
        w_qkv=jnp.concatenate([wq, wk, wv], axis=1),   # fused lane-dense QKV weight (bf16)
        w_o=dense(ks[3], (nH * D, H)),
        w_gate=dense(ks[4], (H, I)),
        w_up=dense(ks[5], (H, I)),
        w_down=dense(ks[6], (I, H)),
    )


# ----------------------------- pure-JAX reference -----------------------------
def reference_layer(params, hidden_states, attention_mask, position_ids, cfg):
    """f32 reference mirroring the PyTorch GemmaDecoderLayer (kv_cache=None)."""
    B, S, H = hidden_states.shape
    nH = cfg["num_attention_heads"]
    nKV = cfg["num_key_value_heads"]
    D = cfg["head_dim"]
    eps = cfg["rms_norm_eps"]
    n_rep = nH // nKV

    def rms(x, w):
        x = x.astype(jnp.float32)
        var = jnp.mean(x * x, axis=-1, keepdims=True)
        return x * jax.lax.rsqrt(var + eps) * (1.0 + w.astype(jnp.float32))

    resid = hidden_states.astype(jnp.float32)
    x = rms(resid, params["ln1_w"])
    qkv = x @ params["w_qkv"].astype(jnp.float32)
    q = qkv[..., :nH * D].reshape(B, S, nH, D).transpose(0, 2, 1, 3)
    k = qkv[..., nH * D:(nH + nKV) * D].reshape(B, S, nKV, D).transpose(0, 2, 1, 3)
    v = qkv[..., (nH + nKV) * D:].reshape(B, S, nKV, D).transpose(0, 2, 1, 3)
    cos, sin = _rope_cos_sin(position_ids, D, cfg["rope_theta"])
    cos, sin = cos[:, None], sin[:, None]
    half = D // 2
    q = q * cos + _rotate_half(q, half) * sin
    k = k * cos + _rotate_half(k, half) * sin
    k = jnp.repeat(k, n_rep, axis=1)
    v = jnp.repeat(v, n_rep, axis=1)
    s = jnp.einsum("bhqd,bhkd->bhqk", q, k) / math.sqrt(D) + attention_mask[:, None]
    p = jax.nn.softmax(s, axis=-1)
    attn = jnp.einsum("bhqk,bhkd->bhqd", p, v)
    attn = attn.transpose(0, 2, 1, 3).reshape(B, S, nH * D)
    h = resid + attn @ params["w_o"].astype(jnp.float32)
    x = rms(h, params["ln2_w"])
    gate = x @ params["w_gate"].astype(jnp.float32)
    up = x @ params["w_up"].astype(jnp.float32)
    act = jax.nn.gelu(gate, approximate=True) * up
    return h + act @ params["w_down"].astype(jnp.float32)


# ----------------------------- main -------------------------------------------
if __name__ == "__main__":
    cfg = CONFIG
    B, S, H = 2, 8, cfg["hidden_size"]

    key = jax.random.PRNGKey(0)
    k_h, k_p = jax.random.split(key)

    hidden_states = jax.random.normal(k_h, (B, S, H), dtype=jnp.float32)
    position_ids = jnp.broadcast_to(jnp.arange(S, dtype=jnp.int32), (B, S))
    # additive causal mask: 0 where allowed, large negative where masked
    causal = jnp.tril(jnp.ones((S, S), dtype=jnp.float32))
    attention_mask = jnp.broadcast_to(
        jnp.where(causal > 0, 0.0, -1e9).astype(jnp.float32), (B, S, S))

    params = init_params(k_p, cfg)

    fwd = jax.jit(functools.partial(gemma_decoder_layer, cfg=cfg))
    out = jax.block_until_ready(fwd(params, hidden_states, attention_mask, position_ids))

    assert out.shape == (B, S, H)
    assert out.dtype == jnp.float32
    assert bool(jnp.all(jnp.isfinite(out)))

    ref = reference_layer(params, hidden_states, attention_mask, position_ids, cfg)
    max_err = float(jnp.max(jnp.abs(out - ref)))
    assert max_err < 5e-2, f"max abs err vs reference: {max_err}"

    print("KERNEL_OK")
</pallas_src>

<mosaic_0001>
module attributes {stable_mosaic.version = 11 : i64} {
  func.func @_rmsnorm_matmul_kernel(%arg0: i32, %arg1: i32, %arg2: memref<128x128xf32, #tpu.memory_space<vmem>>, %arg3: memref<1x128xf32, #tpu.memory_space<vmem>>, %arg4: memref<128x256xbf16, #tpu.memory_space<vmem>>, %arg5: memref<128x256xbf16, #tpu.memory_space<vmem>>, %arg6: memref<128x128xbf16, #tpu.memory_space<vmem>>) attributes {dimension_semantics = [#tpu.dimension_semantics<parallel>, #tpu.dimension_semantics<arbitrary>], iteration_bounds = array<i64: 1, 3>, scalar_prefetch = 0 : i64, scratch_operands = 1 : i64, tpu.core_type = #tpu.core_type<tc>, window_params = [{transform_indices = @transform_0, window_bounds = array<i64: 128, 128>}, {pipeline_mode = #tpu.pipeline_mode<synchronous>, transform_indices = @transform_1, window_bounds = array<i64: 1, 128>}, {transform_indices = @transform_2, window_bounds = array<i64: 128, 256>}, {transform_indices = @transform_3, window_bounds = array<i64: 128, 256>}]} {
    %c0_i32 = arith.constant 0 : i32
    %0 = arith.cmpi eq, %arg1, %c0_i32 : i32
    %1 = arith.extui %0 : i1 to i32
    %c0_i32_0 = arith.constant 0 : i32
    %2 = arith.cmpi ne, %1, %c0_i32_0 : i32
    scf.if %2 {
      %c0_6 = arith.constant 0 : index
      %c0_7 = arith.constant 0 : index
      %8 = vector.load %arg2[%c0_6, %c0_7] : memref<128x128xf32, #tpu.memory_space<vmem>>, vector<128x128xf32>
      %9 = arith.mulf %8, %8 : vector<128x128xf32>
      %cst_8 = arith.constant dense<0.000000e+00> : vector<128xf32>
      %10 = vector.multi_reduction <add>, %9, %cst_8 [1] : vector<128x128xf32> to vector<128xf32>
      %11 = vector.shape_cast %10 : vector<128xf32> to vector<128x1xf32>
      %cst_9 = arith.constant 1.280000e+02 : f32
      %12 = vector.broadcast %cst_9 : f32 to vector<128x1xf32>
      %13 = arith.divf %11, %12 : vector<128x1xf32>
      %cst_10 = arith.constant 9.99999997E-7 : f32
      %14 = vector.broadcast %cst_10 : f32 to vector<128x1xf32>
      %15 = arith.addf %13, %14 : vector<128x1xf32>
      %16 = math.rsqrt %15 : vector<128x1xf32>
      %17 = vector.broadcast %16 : vector<128x1xf32> to vector<128x128xf32>
      %18 = arith.mulf %8, %17 : vector<128x128xf32>
      %c0_11 = arith.constant 0 : index
      %c0_12 = arith.constant 0 : index
      %19 = vector.load %arg3[%c0_11, %c0_12] : memref<1x128xf32, #tpu.memory_space<vmem>>, vector<1x128xf32>
      %cst_13 = arith.constant 1.000000e+00 : f32
      %20 = vector.broadcast %cst_13 : f32 to vector<1x128xf32>
      %21 = arith.addf %20, %19 : vector<1x128xf32>
      %22 = vector.broadcast %21 : vector<1x128xf32> to vector<128x128xf32>
      %23 = arith.mulf %18, %22 : vector<128x128xf32>
      %24 = arith.truncf %23 : vector<128x128xf32> to vector<128x128xbf16>
      %c0_14 = arith.constant 0 : index
      %c0_15 = arith.constant 0 : index
      %25 = vector.load %arg6[%c0_14, %c0_15] : memref<128x128xbf16, #tpu.memory_space<vmem>>, vector<128x128xbf16>
      tpu.vector_store %arg6[%c0_14, %c0_15], %24 {strides = array<i32>} : memref<128x128xbf16, #tpu.memory_space<vmem>>, vector<128x128xbf16>,
    } else {
    }
    %c0 = arith.constant 0 : index
    %c0_1 = arith.constant 0 : index
    %3 = vector.load %arg6[%c0, %c0_1] : memref<128x128xbf16, #tpu.memory_space<vmem>>, vector<128x128xbf16>
    %c0_2 = arith.constant 0 : index
    %c0_3 = arith.constant 0 : index
    %4 = vector.load %arg4[%c0_2, %c0_3] : memref<128x256xbf16, #tpu.memory_space<vmem>>, vector<128x256xbf16>
    %cst = arith.constant dense<0.000000e+00> : vector<128x256xf32>
    %5 = tpu.matmul %3, %4, %cst {dimension_numbers = #tpu.dot_dimension_numbers<[1], [0], [0], [1], [0, 0, 1, 1], [], []>} : vector<128x128xbf16>, vector<128x256xbf16>, vector<128x256xf32> -> vector<128x256xf32>
    %6 = arith.truncf %5 : vector<128x256xf32> to vector<128x256xbf16>
    %c0_4 = arith.constant 0 : index
    %c0_5 = arith.constant 0 : index
    %7 = vector.load %arg5[%c0_4, %c0_5] : memref<128x256xbf16, #tpu.memory_space<vmem>>, vector<128x256xbf16>
    tpu.vector_store %arg5[%c0_4, %c0_5], %6 {strides = array<i32>} : memref<128x256xbf16, #tpu.memory_space<vmem>>, vector<128x256xbf16>,
    return
  }
  func.func @transform_0(%arg0: i32, %arg1: i32) -> (i32, i32) {
    %c0_i32 = arith.constant 0 : i32
    %c0_i32_0 = arith.constant 0 : i32
    return %arg0, %c0_i32 : i32, i32
  }
  func.func @transform_1(%arg0: i32, %arg1: i32) -> (i32, i32) {
    %c0_i32 = arith.constant 0 : i32
    %c0_i32_0 = arith.constant 0 : i32
    %c0_i32_1 = arith.constant 0 : i32
    return %c0_i32, %c0_i32_0 : i32, i32
  }
  func.func @transform_2(%arg0: i32, %arg1: i32) -> (i32, i32) {
    %c0_i32 = arith.constant 0 : i32
    %c0_i32_0 = arith.constant 0 : i32
    return %c0_i32, %arg1 : i32, i32
  }
  func.func @transform_3(%arg0: i32, %arg1: i32) -> (i32, i32) {
    %c0_i32 = arith.constant 0 : i32
    return %arg0, %arg1 : i32, i32
  }
}

module attributes {stable_mosaic.version = 11 : i64} {
  func.func @_flash_attention_kernel(%arg0: i32, %arg1: i32, %arg2: i32, %arg3: i32, %arg4: memref<1x8x512xbf16, #tpu.memory_space<vmem>>, %arg5: memref<1x8x128xbf16, #tpu.memory_space<vmem>>, %arg6: memref<1x8x128xbf16, #tpu.memory_space<vmem>>, %arg7: memref<1x8x128xf32, #tpu.memory_space<vmem>>, %arg8: memref<1x8x128xf32, #tpu.memory_space<vmem>>, %arg9: memref<1x8x128xf32, #tpu.memory_space<vmem>>, %arg10: memref<1x8x128xf32, #tpu.memory_space<vmem>>, %arg11: memref<1x8x8xf32, #tpu.memory_space<vmem>>, %arg12: memref<1x8x512xbf16, #tpu.memory_space<vmem>>, %arg13: memref<32x128xbf16, #tpu.memory_space<vmem>>, %arg14: memref<8x4x1xf32, #tpu.memory_space<vmem>>, %arg15: memref<8x4x1xf32, #tpu.memory_space<vmem>>, %arg16: memref<8x4x128xf32, #tpu.memory_space<vmem>>) attributes {dimension_semantics = [#tpu.dimension_semantics<parallel>, #tpu.dimension_semantics<parallel>, #tpu.dimension_semantics<parallel>, #tpu.dimension_semantics<arbitrary>], iteration_bounds = array<i64: 2, 1, 1, 1>, scalar_prefetch = 0 : i64, scratch_operands = 4 : i64, tpu.core_type = #tpu.core_type<tc>, window_params = [{transform_indices = @transform_0, window_bounds = array<i64: 1, 8, 512>}, {transform_indices = @transform_1, window_bounds = array<i64: 1, 8, 128>}, {transform_indices = @transform_2, window_bounds = array<i64: 1, 8, 128>}, {transform_indices = @transform_3, window_bounds = array<i64: 1, 8, 128>}, {transform_indices = @transform_4, window_bounds = array<i64: 1, 8, 128>}, {transform_indices = @transform_5, window_bounds = array<i64: 1, 8, 128>}, {transform_indices = @transform_6, window_bounds = array<i64: 1, 8, 128>}, {transform_indices = @transform_7, window_bounds = array<i64: 1, 8, 8>}, {transform_indices = @transform_8, window_bounds = array<i64: 1, 8, 512>}]} {
    %c0_i32 = arith.constant 0 : i32
    %0 = arith.cmpi eq, %arg3, %c0_i32 : i32
    %1 = arith.extui %0 : i1 to i32
    %c0_i32_0 = arith.constant 0 : i32
    %2 = arith.cmpi ne, %1, %c0_i32_0 : i32
    scf.if %2 {
      %c0_41 = arith.constant 0 : index
      %c0_42 = arith.constant 0 : index
      %c0_43 = arith.constant 0 : index
      %57 = vector.load %arg4[%c0_41, %c0_42, %c0_43] : memref<1x8x512xbf16, #tpu.memory_space<vmem>>, vector<1x8x512xbf16>
      %58 = vector.shape_cast %57 : vector<1x8x512xbf16> to vector<8x512xbf16>
      %59 = arith.extf %58 : vector<8x512xbf16> to vector<8x512xf32>
      %60 = vector.shape_cast %59 : vector<8x512xf32> to vector<8x4x128xf32>
      %c0_44 = arith.constant 0 : index
      %c0_45 = arith.constant 0 : index
      %c0_46 = arith.constant 0 : index
      %61 = vector.load %arg7[%c0_44, %c0_45, %c0_46] : memref<1x8x128xf32, #tpu.memory_space<vmem>>, vector<1x8x128xf32>
      %62 = vector.shape_cast %61 : vector<1x8x128xf32> to vector<8x128xf32>
      %63 = vector.shape_cast %62 : vector<8x128xf32> to vector<8x1x128xf32>
      %c0_47 = arith.constant 0 : index
      %c0_48 = arith.constant 0 : index
      %c0_49 = arith.constant 0 : index
      %64 = vector.load %arg8[%c0_47, %c0_48, %c0_49] : memref<1x8x128xf32, #tpu.memory_space<vmem>>, vector<1x8x128xf32>
      %65 = vector.shape_cast %64 : vector<1x8x128xf32> to vector<8x128xf32>
      %66 = vector.shape_cast %65 : vector<8x128xf32> to vector<8x1x128xf32>
      %67 = vector.broadcast %63 : vector<8x1x128xf32> to vector<8x4x128xf32>
      %68 = arith.mulf %60, %67 : vector<8x4x128xf32>
      %69 = vector.extract_strided_slice %60 {offsets = [0, 0, 64], sizes = [8, 4, 64], strides = [1, 1, 1]} : vector<8x4x128xf32> to vector<8x4x64xf32>
      %cst_50 = arith.constant 0.000000e+00 : f32
      %70 = vector.broadcast %cst_50 : f32 to vector<8x4x64xf32>
      %71 = arith.subf %70, %69 : vector<8x4x64xf32>
      %72 = vector.extract_strided_slice %60 {offsets = [0, 0, 0], sizes = [8, 4, 64], strides = [1, 1, 1]} : vector<8x4x128xf32> to vector<8x4x64xf32>
      %73 = tpu.concatenate %71, %72 in 2 : vector<8x4x64xf32>, vector<8x4x64xf32> -> vector<8x4x128xf32>
      %74 = vector.broadcast %66 : vector<8x1x128xf32> to vector<8x4x128xf32>
      %75 = arith.mulf %73, %74 : vector<8x4x128xf32>
      %76 = arith.addf %68, %75 : vector<8x4x128xf32>
      %cst_51 = arith.constant 0.0883883461 : f32
      %77 = vector.broadcast %cst_51 : f32 to vector<8x4x128xf32>
      %78 = arith.mulf %76, %77 : vector<8x4x128xf32>
      %79 = vector.shape_cast %78 : vector<8x4x128xf32> to vector<32x128xf32>
      %80 = arith.truncf %79 : vector<32x128xf32> to vector<32x128xbf16>
      %c0_52 = arith.constant 0 : index
      %c0_53 = arith.constant 0 : index
      %81 = vector.load %arg13[%c0_52, %c0_53] : memref<32x128xbf16, #tpu.memory_space<vmem>>, vector<32x128xbf16>
      tpu.vector_store %arg13[%c0_52, %c0_53], %80 {strides = array<i32>} : memref<32x128xbf16, #tpu.memory_space<vmem>>, vector<32x128xbf16>,
      %cst_54 = arith.constant 0xFF800000 : f32
      %82 = vector.broadcast %cst_54 : f32 to vector<8x4x1xf32>
      %c0_55 = arith.constant 0 : index
      %c0_56 = arith.constant 0 : index
      %c0_57 = arith.constant 0 : index
      %83 = vector.load %arg14[%c0_55, %c0_56, %c0_57] : memref<8x4x1xf32, #tpu.memory_space<vmem>>, vector<8x4x1xf32>
      tpu.vector_store %arg14[%c0_55, %c0_56, %c0_57], %82 {strides = array<i32>} : memref<8x4x1xf32, #tpu.memory_space<vmem>>, vector<8x4x1xf32>,
      %cst_58 = arith.constant 0.000000e+00 : f32
      %84 = vector.broadcast %cst_58 : f32 to vector<8x4x1xf32>
      %c0_59 = arith.constant 0 : index
      %c0_60 = arith.constant 0 : index
      %c0_61 = arith.constant 0 : index
      %85 = vector.load %arg15[%c0_59, %c0_60, %c0_61] : memref<8x4x1xf32, #tpu.memory_space<vmem>>, vector<8x4x1xf32>
      tpu.vector_store %arg15[%c0_59, %c0_60, %c0_61], %84 {strides = array<i32>} : memref<8x4x1xf32, #tpu.memory_space<vmem>>, vector<8x4x1xf32>,
      %cst_62 = arith.constant 0.000000e+00 : f32
      %86 = vector.broadcast %cst_62 : f32 to vector<8x4x128xf32>
      %c0_63 = arith.constant 0 : index
      %c0_64 = arith.constant 0 : index
      %c0_65 = arith.constant 0 : index
      %87 = vector.load %arg16[%c0_63, %c0_64, %c0_65] : memref<8x4x128xf32, #tpu.memory_space<vmem>>, vector<8x4x128xf32>
      tpu.vector_store %arg16[%c0_63, %c0_64, %c0_65], %86 {strides = array<i32>} : memref<8x4x128xf32, #tpu.memory_space<vmem>>, vector<8x4x128xf32>,
    } else {
    }
    %c0 = arith.constant 0 : index
    %c0_1 = arith.constant 0 : index
    %c0_2 = arith.constant 0 : index
    %3 = vector.load %arg5[%c0, %c0_1, %c0_2] : memref<1x8x128xbf16, #tpu.memory_space<vmem>>, vector<1x8x128xbf16>
    %4 = vector.shape_cast %3 : vector<1x8x128xbf16> to vector<8x128xbf16>
    %5 = arith.extf %4 : vector<8x128xbf16> to vector<8x128xf32>
    %c0_3 = arith.constant 0 : index
    %c0_4 = arith.constant 0 : index
    %c0_5 = arith.constant 0 : index
    %6 = vector.load %arg9[%c0_3, %c0_4, %c0_5] : memref<1x8x128xf32, #tpu.memory_space<vmem>>, vector<1x8x128xf32>
    %7 = vector.shape_cast %6 : vector<1x8x128xf32> to vector<8x128xf32>
    %8 = arith.mulf %5, %7 : vector<8x128xf32>
    %9 = vector.extract_strided_slice %5 {offsets = [0, 64], sizes = [8, 64], strides = [1, 1]} : vector<8x128xf32> to vector<8x64xf32>
    %cst = arith.constant 0.000000e+00 : f32
    %10 = vector.broadcast %cst : f32 to vector<8x64xf32>
    %11 = arith.subf %10, %9 : vector<8x64xf32>
    %12 = vector.extract_strided_slice %5 {offsets = [0, 0], sizes = [8, 64], strides = [1, 1]} : vector<8x128xf32> to vector<8x64xf32>
    %13 = tpu.concatenate %11, %12 in 1 : vector<8x64xf32>, vector<8x64xf32> -> vector<8x128xf32>
    %c0_6 = arith.constant 0 : index
    %c0_7 = arith.constant 0 : index
    %c0_8 = arith.constant 0 : index
    %14 = vector.load %arg10[%c0_6, %c0_7, %c0_8] : memref<1x8x128xf32, #tpu.memory_space<vmem>>, vector<1x8x128xf32>
    %15 = vector.shape_cast %14 : vector<1x8x128xf32> to vector<8x128xf32>
    %16 = arith.mulf %13, %15 : vector<8x128xf32>
    %17 = arith.addf %8, %16 : vector<8x128xf32>
    %18 = arith.truncf %17 : vector<8x128xf32> to vector<8x128xbf16>
    %c0_9 = arith.constant 0 : index
    %c0_10 = arith.constant 0 : index
    %c0_11 = arith.constant 0 : index
    %19 = vector.load %arg6[%c0_9, %c0_10, %c0_11] : memref<1x8x128xbf16, #tpu.memory_space<vmem>>, vector<1x8x128xbf16>
    %20 = vector.shape_cast %19 : vector<1x8x128xbf16> to vector<8x128xbf16>
    %c0_12 = arith.constant 0 : index
    %c0_13 = arith.constant 0 : index
    %21 = vector.load %arg13[%c0_12, %c0_13] : memref<32x128xbf16, #tpu.memory_space<vmem>>, vector<32x128xbf16>
    %cst_14 = arith.constant dense<0.000000e+00> : vector<32x8xf32>
    %22 = tpu.matmul %21, %18, %cst_14 {dimension_numbers = #tpu.dot_dimension_numbers<[1], [1], [0], [0], [0, 0, 1, 0], [], []>} : vector<32x128xbf16>, vector<8x128xbf16>, vector<32x8xf32> -> vector<32x8xf32>
    %23 = vector.shape_cast %22 : vector<32x8xf32> to vector<8x4x8xf32>
    %c0_15 = arith.constant 0 : index
    %c0_16 = arith.constant 0 : index
    %c0_17 = arith.constant 0 : index
    %24 = vector.load %arg11[%c0_15, %c0_16, %c0_17] : memref<1x8x8xf32, #tpu.memory_space<vmem>>, vector<1x8x8xf32>
    %25 = vector.shape_cast %24 : vector<1x8x8xf32> to vector<8x8xf32>
    %26 = vector.shape_cast %25 : vector<8x8xf32> to vector<8x1x8xf32>
    %27 = vector.broadcast %26 : vector<8x1x8xf32> to vector<8x4x8xf32>
    %28 = arith.addf %23, %27 : vector<8x4x8xf32>
    %c0_18 = arith.constant 0 : index
    %c0_19 = arith.constant 0 : index
    %c0_20 = arith.constant 0 : index
    %29 = vector.load %arg14[%c0_18, %c0_19, %c0_20] : memref<8x4x1xf32, #tpu.memory_space<vmem>>, vector<8x4x1xf32>
    %cst_21 = arith.constant dense<0xFF800000> : vector<8x4xf32>
    %30 = vector.multi_reduction <maximumf>, %28, %cst_21 [2] : vector<8x4x8xf32> to vector<8x4xf32>
    %31 = vector.shape_cast %30 : vector<8x4xf32> to vector<8x4x1xf32>
    %32 = arith.maximumf %29, %31 : vector<8x4x1xf32>
    %33 = arith.subf %29, %32 : vector<8x4x1xf32>
    %34 = math.exp %33 : vector<8x4x1xf32>
    %35 = vector.broadcast %32 : vector<8x4x1xf32> to vector<8x4x8xf32>
    %36 = arith.subf %28, %35 : vector<8x4x8xf32>
    %37 = math.exp %36 : vector<8x4x8xf32>
    %c0_22 = arith.constant 0 : index
    %c0_23 = arith.constant 0 : index
    %c0_24 = arith.constant 0 : index
    %38 = vector.load %arg15[%c0_22, %c0_23, %c0_24] : memref<8x4x1xf32, #tpu.memory_space<vmem>>, vector<8x4x1xf32>
    %39 = arith.mulf %34, %38 : vector<8x4x1xf32>
    %cst_25 = arith.constant dense<0.000000e+00> : vector<8x4xf32>
    %40 = vector.multi_reduction <add>, %37, %cst_25 [2] : vector<8x4x8xf32> to vector<8x4xf32>
    %41 = vector.shape_cast %40 : vector<8x4xf32> to vector<8x4x1xf32>
    %42 = arith.addf %39, %41 : vector<8x4x1xf32>
    %c0_26 = arith.constant 0 : index
    %c0_27 = arith.constant 0 : index
    %c0_28 = arith.constant 0 : index
    %43 = vector.load %arg15[%c0_26, %c0_27, %c0_28] : memref<8x4x1xf32, #tpu.memory_space<vmem>>, vector<8x4x1xf32>
    tpu.vector_store %arg15[%c0_26, %c0_27, %c0_28], %42 {strides = array<i32>} : memref<8x4x1xf32, #tpu.memory_space<vmem>>, vector<8x4x1xf32>,
    %44 = vector.shape_cast %37 : vector<8x4x8xf32> to vector<32x8xf32>
    %45 = arith.truncf %44 : vector<32x8xf32> to vector<32x8xbf16>
    %cst_29 = arith.constant dense<0.000000e+00> : vector<32x128xf32>
    %46 = tpu.matmul %45, %20, %cst_29 {dimension_numbers = #tpu.dot_dimension_numbers<[1], [0], [0], [1], [0, 0, 1, 1], [], []>} : vector<32x8xbf16>, vector<8x128xbf16>, vector<32x128xf32> -> vector<32x128xf32>
    %c0_30 = arith.constant 0 : index
    %c0_31 = arith.constant 0 : index
    %c0_32 = arith.constant 0 : index
    %47 = vector.load %arg16[%c0_30, %c0_31, %c0_32] : memref<8x4x128xf32, #tpu.memory_space<vmem>>, vector<8x4x128xf32>
    %48 = vector.broadcast %34 : vector<8x4x1xf32> to vector<8x4x128xf32>
    %49 = arith.mulf %48, %47 : vector<8x4x128xf32>
    %50 = vector.shape_cast %46 : vector<32x128xf32> to vector<8x4x128xf32>
    %51 = arith.addf %49, %50 : vector<8x4x128xf32>
    %c0_33 = arith.constant 0 : index
    %c0_34 = arith.constant 0 : index
    %c0_35 = arith.constant 0 : index
    %52 = vector.load %arg16[%c0_33, %c0_34, %c0_35] : memref<8x4x128xf32, #tpu.memory_space<vmem>>, vector<8x4x128xf32>
    tpu.vector_store %arg16[%c0_33, %c0_34, %c0_35], %51 {strides = array<i32>} : memref<8x4x128xf32, #tpu.memory_space<vmem>>, vector<8x4x128xf32>,
    %c0_36 = arith.constant 0 : index
    %c0_37 = arith.constant 0 : index
    %c0_38 = arith.constant 0 : index
    %53 = vector.load %arg14[%c0_36, %c0_37, %c0_38] : memref<8x4x1xf32, #tpu.memory_space<vmem>>, vector<8x4x1xf32>
    tpu.vector_store %arg14[%c0_36, %c0_37, %c0_38], %32 {strides = array<i32>} : memref<8x4x1xf32, #tpu.memory_space<vmem>>, vector<8x4x1xf32>,
    %c0_i32_39 = arith.constant 0 : i32
    %54 = arith.cmpi eq, %arg3, %c0_i32_39 : i32
    %55 = arith.extui %54 : i1 to i32
    %c0_i32_40 = arith.constant 0 : i32
    %56 = arith.cmpi ne, %55, %c0_i32_40 : i32
    scf.if %56 {
      %c0_41 = arith.constant 0 : index
      %c0_42 = arith.constant 0 : index
      %c0_43 = arith.constant 0 : index
      %57 = vector.load %arg16[%c0_41, %c0_42, %c0_43] : memref<8x4x128xf32, #tpu.memory_space<vmem>>, vector<8x4x128xf32>
      %c0_44 = arith.constant 0 : index
      %c0_45 = arith.constant 0 : index
      %c0_46 = arith.constant 0 : index
      %58 = vector.load %arg15[%c0_44, %c0_45, %c0_46] : memref<8x4x1xf32, #tpu.memory_space<vmem>>, vector<8x4x1xf32>
      %59 = tpu.reciprocal %58 : vector<8x4x1xf32> -> vector<8x4x1xf32>
      %60 = vector.broadcast %59 : vector<8x4x1xf32> to vector<8x4x128xf32>
      %61 = arith.mulf %57, %60 : vector<8x4x128xf32>
      %62 = vector.shape_cast %61 : vector<8x4x128xf32> to vector<8x512xf32>
      %63 = arith.truncf %62 : vector<8x512xf32> to vector<8x512xbf16>
      %c0_47 = arith.constant 0 : index
      %c0_48 = arith.constant 0 : index
      %c0_49 = arith.constant 0 : index
      %64 = vector.load %arg12[%c0_47, %c0_48, %c0_49] : memref<1x8x512xbf16, #tpu.memory_space<vmem>>, vector<1x8x512xbf16>
      %65 = vector.shape_cast %64 : vector<1x8x512xbf16> to vector<8x512xbf16>
      %66 = vector.shape_cast %63 : vector<8x512xbf16> to vector<1x8x512xbf16>
      tpu.vector_store %arg12[%c0_47, %c0_48, %c0_49], %66 {strides = array<i32>} : memref<1x8x512xbf16, #tpu.memory_space<vmem>>, vector<1x8x512xbf16>,
    } else {
    }
    return
  }
  func.func @transform_0(%arg0: i32, %arg1: i32, %arg2: i32, %arg3: i32) -> (i32, i32, i32) {
    %c0_i32 = arith.constant 0 : i32
    return %arg0, %arg2, %arg1 : i32, i32, i32
  }
  func.func @transform_1(%arg0: i32, %arg1: i32, %arg2: i32, %arg3: i32) -> (i32, i32, i32) {
    %c0_i32 = arith.constant 0 : i32
    return %arg0, %arg3, %arg1 : i32, i32, i32
  }
  func.func @transform_2(%arg0: i32, %arg1: i32, %arg2: i32, %arg3: i32) -> (i32, i32, i32) {
    %c0_i32 = arith.constant 0 : i32
    return %arg0, %arg3, %arg1 : i32, i32, i32
  }
  func.func @transform_3(%arg0: i32, %arg1: i32, %arg2: i32, %arg3: i32) -> (i32, i32, i32) {
    %c0_i32 = arith.constant 0 : i32
    %c0_i32_0 = arith.constant 0 : i32
    return %arg0, %arg2, %c0_i32 : i32, i32, i32
  }
  func.func @transform_4(%arg0: i32, %arg1: i32, %arg2: i32, %arg3: i32) -> (i32, i32, i32) {
    %c0_i32 = arith.constant 0 : i32
    %c0_i32_0 = arith.constant 0 : i32
    return %arg0, %arg2, %c0_i32 : i32, i32, i32
  }
  func.func @transform_5(%arg0: i32, %arg1: i32, %arg2: i32, %arg3: i32) -> (i32, i32, i32) {
    %c0_i32 = arith.constant 0 : i32
    %c0_i32_0 = arith.constant 0 : i32
    return %arg0, %arg3, %c0_i32 : i32, i32, i32
  }
  func.func @transform_6(%arg0: i32, %arg1: i32, %arg2: i32, %arg3: i32) -> (i32, i32, i32) {
    %c0_i32 = arith.constant 0 : i32
    %c0_i32_0 = arith.constant 0 : i32
    return %arg0, %arg3, %c0_i32 : i32, i32, i32
  }
  func.func @transform_7(%arg0: i32, %arg1: i32, %arg2: i32, %arg3: i32) -> (i32, i32, i32) {
    %c0_i32 = arith.constant 0 : i32
    return %arg0, %arg2, %arg3 : i32, i32, i32
  }
  func.func @transform_8(%arg0: i32, %arg1: i32, %arg2: i32, %arg3: i32) -> (i32, i32, i32) {
    %c0_i32 = arith.constant 0 : i32
    return %arg0, %arg2, %arg1 : i32, i32, i32
  }
}

module attributes {stable_mosaic.version = 11 : i64} {
  func.func @_matmul_residual_kernel(%arg0: i32, %arg1: i32, %arg2: i32, %arg3: memref<128x512xbf16, #tpu.memory_space<vmem>>, %arg4: memref<512x128xbf16, #tpu.memory_space<vmem>>, %arg5: memref<128x128xf32, #tpu.memory_space<vmem>>, %arg6: memref<128x128xf32, #tpu.memory_space<vmem>>, %arg7: memref<128x128xf32, #tpu.memory_space<vmem>>) attributes {dimension_semantics = [#tpu.dimension_semantics<parallel>, #tpu.dimension_semantics<parallel>, #tpu.dimension_semantics<arbitrary>], iteration_bounds = array<i64: 1, 1, 1>, scalar_prefetch = 0 : i64, scratch_operands = 1 : i64, tpu.core_type = #tpu.core_type<tc>, window_params = [{transform_indices = @transform_0, window_bounds = array<i64: 128, 512>}, {transform_indices = @transform_1, window_bounds = array<i64: 512, 128>}, {transform_indices = @transform_2, window_bounds = array<i64: 128, 128>}, {transform_indices = @transform_3, window_bounds = array<i64: 128, 128>}]} {
    %c0_i32 = arith.constant 0 : i32
    %0 = arith.cmpi eq, %arg2, %c0_i32 : i32
    %1 = arith.extui %0 : i1 to i32
    %c0_i32_0 = arith.constant 0 : i32
    %2 = arith.cmpi ne, %1, %c0_i32_0 : i32
    scf.if %2 {
      %cst_10 = arith.constant 0.000000e+00 : f32
      %12 = vector.broadcast %cst_10 : f32 to vector<128x128xf32>
      %c0_11 = arith.constant 0 : index
      %c0_12 = arith.constant 0 : index
      %13 = vector.load %arg7[%c0_11, %c0_12] : memref<128x128xf32, #tpu.memory_space<vmem>>, vector<128x128xf32>
      tpu.vector_store %arg7[%c0_11, %c0_12], %12 {strides = array<i32>} : memref<128x128xf32, #tpu.memory_space<vmem>>, vector<128x128xf32>,
    } else {
    }
    %c0 = arith.constant 0 : index
    %c0_1 = arith.constant 0 : index
    %3 = vector.load %arg7[%c0, %c0_1] : memref<128x128xf32, #tpu.memory_space<vmem>>, vector<128x128xf32>
    %c0_2 = arith.constant 0 : index
    %c0_3 = arith.constant 0 : index
    %4 = vector.load %arg3[%c0_2, %c0_3] : memref<128x512xbf16, #tpu.memory_space<vmem>>, vector<128x512xbf16>
    %c0_4 = arith.constant 0 : index
    %c0_5 = arith.constant 0 : index
    %5 = vector.load %arg4[%c0_4, %c0_5] : memref<512x128xbf16, #tpu.memory_space<vmem>>, vector<512x128xbf16>
    %cst = arith.constant dense<0.000000e+00> : vector<128x128xf32>
    %6 = tpu.matmul %4, %5, %cst {dimension_numbers = #tpu.dot_dimension_numbers<[1], [0], [0], [1], [0, 0, 1, 1], [], []>} : vector<128x512xbf16>, vector<512x128xbf16>, vector<128x128xf32> -> vector<128x128xf32>
    %7 = arith.addf %3, %6 : vector<128x128xf32>
    %c0_6 = arith.constant 0 : index
    %c0_7 = arith.constant 0 : index
    %8 = vector.load %arg7[%c0_6, %c0_7] : memref<128x128xf32, #tpu.memory_space<vmem>>, vector<128x128xf32>
    tpu.vector_store %arg7[%c0_6, %c0_7], %7 {strides = array<i32>} : memref<128x128xf32, #tpu.memory_space<vmem>>, vector<128x128xf32>,
    %c0_i32_8 = arith.constant 0 : i32
    %9 = arith.cmpi eq, %arg2, %c0_i32_8 : i32
    %10 = arith.extui %9 : i1 to i32
    %c0_i32_9 = arith.constant 0 : i32
    %11 = arith.cmpi ne, %10, %c0_i32_9 : i32
    scf.if %11 {
      %c0_10 = arith.constant 0 : index
      %c0_11 = arith.constant 0 : index
      %12 = vector.load %arg7[%c0_10, %c0_11] : memref<128x128xf32, #tpu.memory_space<vmem>>, vector<128x128xf32>
      %c0_12 = arith.constant 0 : index
      %c0_13 = arith.constant 0 : index
      %13 = vector.load %arg5[%c0_12, %c0_13] : memref<128x128xf32, #tpu.memory_space<vmem>>, vector<128x128xf32>
      %14 = arith.addf %12, %13 : vector<128x128xf32>
      %c0_14 = arith.constant 0 : index
      %c0_15 = arith.constant 0 : index
      %15 = vector.load %arg6[%c0_14, %c0_15] : memref<128x128xf32, #tpu.memory_space<vmem>>, vector<128x128xf32>
      tpu.vector_store %arg6[%c0_14, %c0_15], %14 {strides = array<i32>} : memref<128x128xf32, #tpu.memory_space<vmem>>, vector<128x128xf32>,
    } else {
    }
    return
  }
  func.func @transform_0(%arg0: i32, %arg1: i32, %arg2: i32) -> (i32, i32) {
    %c0_i32 = arith.constant 0 : i32
    return %arg0, %arg2 : i32, i32
  }
  func.func @transform_1(%arg0: i32, %arg1: i32, %arg2: i32) -> (i32, i32) {
    %c0_i32 = arith.constant 0 : i32
    return %arg2, %arg1 : i32, i32
  }
  func.func @transform_2(%arg0: i32, %arg1: i32, %arg2: i32) -> (i32, i32) {
    %c0_i32 = arith.constant 0 : i32
    return %arg0, %arg1 : i32, i32
  }
  func.func @transform_3(%arg0: i32, %arg1: i32, %arg2: i32) -> (i32, i32) {
    %c0_i32 = arith.constant 0 : i32
    return %arg0, %arg1 : i32, i32
  }
}

module attributes {stable_mosaic.version = 11 : i64} {
  func.func @_rmsnorm_gateup_kernel(%arg0: i32, %arg1: i32, %arg2: memref<128x128xf32, #tpu.memory_space<vmem>>, %arg3: memref<1x128xf32, #tpu.memory_space<vmem>>, %arg4: memref<128x256xbf16, #tpu.memory_space<vmem>>, %arg5: memref<128x256xbf16, #tpu.memory_space<vmem>>, %arg6: memref<128x256xbf16, #tpu.memory_space<vmem>>, %arg7: memref<128x128xbf16, #tpu.memory_space<vmem>>) attributes {dimension_semantics = [#tpu.dimension_semantics<parallel>, #tpu.dimension_semantics<arbitrary>], iteration_bounds = array<i64: 1, 1>, scalar_prefetch = 0 : i64, scratch_operands = 1 : i64, tpu.core_type = #tpu.core_type<tc>, window_params = [{transform_indices = @transform_0, window_bounds = array<i64: 128, 128>}, {pipeline_mode = #tpu.pipeline_mode<synchronous>, transform_indices = @transform_1, window_bounds = array<i64: 1, 128>}, {transform_indices = @transform_2, window_bounds = array<i64: 128, 256>}, {transform_indices = @transform_3, window_bounds = array<i64: 128, 256>}, {transform_indices = @transform_4, window_bounds = array<i64: 128, 256>}]} {
    %c0_i32 = arith.constant 0 : i32
    %0 = arith.cmpi eq, %arg1, %c0_i32 : i32
    %1 = arith.extui %0 : i1 to i32
    %c0_i32_0 = arith.constant 0 : i32
    %2 = arith.cmpi ne, %1, %c0_i32_0 : i32
    scf.if %2 {
      %c0_13 = arith.constant 0 : index
      %c0_14 = arith.constant 0 : index
      %24 = vector.load %arg2[%c0_13, %c0_14] : memref<128x128xf32, #tpu.memory_space<vmem>>, vector<128x128xf32>
      %25 = arith.mulf %24, %24 : vector<128x128xf32>
      %cst_15 = arith.constant dense<0.000000e+00> : vector<128xf32>
      %26 = vector.multi_reduction <add>, %25, %cst_15 [1] : vector<128x128xf32> to vector<128xf32>
      %27 = vector.shape_cast %26 : vector<128xf32> to vector<128x1xf32>
      %cst_16 = arith.constant 1.280000e+02 : f32
      %28 = vector.broadcast %cst_16 : f32 to vector<128x1xf32>
      %29 = arith.divf %27, %28 : vector<128x1xf32>
      %cst_17 = arith.constant 9.99999997E-7 : f32
      %30 = vector.broadcast %cst_17 : f32 to vector<128x1xf32>
      %31 = arith.addf %29, %30 : vector<128x1xf32>
      %32 = math.rsqrt %31 : vector<128x1xf32>
      %33 = vector.broadcast %32 : vector<128x1xf32> to vector<128x128xf32>
      %34 = arith.mulf %24, %33 : vector<128x128xf32>
      %c0_18 = arith.constant 0 : index
      %c0_19 = arith.constant 0 : index
      %35 = vector.load %arg3[%c0_18, %c0_19] : memref<1x128xf32, #tpu.memory_space<vmem>>, vector<1x128xf32>
      %cst_20 = arith.constant 1.000000e+00 : f32
      %36 = vector.broadcast %cst_20 : f32 to vector<1x128xf32>
      %37 = arith.addf %36, %35 : vector<1x128xf32>
      %38 = vector.broadcast %37 : vector<1x128xf32> to vector<128x128xf32>
      %39 = arith.mulf %34, %38 : vector<128x128xf32>
      %40 = arith.truncf %39 : vector<128x128xf32> to vector<128x128xbf16>
      %c0_21 = arith.constant 0 : index
      %c0_22 = arith.constant 0 : index
      %41 = vector.load %arg7[%c0_21, %c0_22] : memref<128x128xbf16, #tpu.memory_space<vmem>>, vector<128x128xbf16>
      tpu.vector_store %arg7[%c0_21, %c0_22], %40 {strides = array<i32>} : memref<128x128xbf16, #tpu.memory_space<vmem>>, vector<128x128xbf16>,
    } else {
    }
    %c0 = arith.constant 0 : index
    %c0_1 = arith.constant 0 : index
    %3 = vector.load %arg7[%c0, %c0_1] : memref<128x128xbf16, #tpu.memory_space<vmem>>, vector<128x128xbf16>
    %c0_2 = arith.constant 0 : index
    %c0_3 = arith.constant 0 : index
    %4 = vector.load %arg4[%c0_2, %c0_3] : memref<128x256xbf16, #tpu.memory_space<vmem>>, vector<128x256xbf16>
    %cst = arith.constant dense<0.000000e+00> : vector<128x256xf32>
    %5 = tpu.matmul %3, %4, %cst {dimension_numbers = #tpu.dot_dimension_numbers<[1], [0], [0], [1], [0, 0, 1, 1], [], []>} : vector<128x128xbf16>, vector<128x256xbf16>, vector<128x256xf32> -> vector<128x256xf32>
    %c0_4 = arith.constant 0 : index
    %c0_5 = arith.constant 0 : index
    %6 = vector.load %arg5[%c0_4, %c0_5] : memref<128x256xbf16, #tpu.memory_space<vmem>>, vector<128x256xbf16>
    %cst_6 = arith.constant dense<0.000000e+00> : vector<128x256xf32>
    %7 = tpu.matmul %3, %6, %cst_6 {dimension_numbers = #tpu.dot_dimension_numbers<[1], [0], [0], [1], [0, 0, 1, 1], [], []>} : vector<128x128xbf16>, vector<128x256xbf16>, vector<128x256xf32> -> vector<128x256xf32>
    %cst_7 = arith.constant 5.000000e-01 : f32
    %8 = vector.broadcast %cst_7 : f32 to vector<128x256xf32>
    %9 = arith.mulf %8, %5 : vector<128x256xf32>
    %cst_8 = arith.constant 4.471500e-02 : f32
    %10 = vector.broadcast %cst_8 : f32 to vector<128x256xf32>
    %11 = arith.mulf %10, %5 : vector<128x256xf32>
    %12 = arith.mulf %11, %5 : vector<128x256xf32>
    %13 = arith.mulf %12, %5 : vector<128x256xf32>
    %14 = arith.addf %5, %13 : vector<128x256xf32>
    %cst_9 = arith.constant 0.797884583 : f32
    %15 = vector.broadcast %cst_9 : f32 to vector<128x256xf32>
    %16 = arith.mulf %15, %14 : vector<128x256xf32>
    %17 = math.tanh %16 : vector<128x256xf32>
    %cst_10 = arith.constant 1.000000e+00 : f32
    %18 = vector.broadcast %cst_10 : f32 to vector<128x256xf32>
    %19 = arith.addf %18, %17 : vector<128x256xf32>
    %20 = arith.mulf %9, %19 : vector<128x256xf32>
    %21 = arith.mulf %20, %7 : vector<128x256xf32>
    %22 = arith.truncf %21 : vector<128x256xf32> to vector<128x256xbf16>
    %c0_11 = arith.constant 0 : index
    %c0_12 = arith.constant 0 : index
    %23 = vector.load %arg6[%c0_11, %c0_12] : memref<128x256xbf16, #tpu.memory_space<vmem>>, vector<128x256xbf16>
    tpu.vector_store %arg6[%c0_11, %c0_12], %22 {strides = array<i32>} : memref<128x256xbf16, #tpu.memory_space<vmem>>, vector<128x256xbf16>,
    return
  }
  func.func @transform_0(%arg0: i32, %arg1: i32) -> (i32, i32) {
    %c0_i32 = arith.constant 0 : i32
    %c0_i32_0 = arith.constant 0 : i32
    return %arg0, %c0_i32 : i32, i32
  }
  func.func @transform_1(%arg0: i32, %arg1: i32) -> (i32, i32) {
    %c0_i32 = arith.constant 0 : i32
    %c0_i32_0 = arith.constant 0 : i32
    %c0_i32_1 = arith.constant 0 : i32
    return %c0_i32, %c0_i32_0 : i32, i32
  }
  func.func @transform_2(%arg0: i32, %arg1: i32) -> (i32, i32) {
    %c0_i32 = arith.constant 0 : i32
    %c0_i32_0 = arith.constant 0 : i32
    return %c0_i32, %arg1 : i32, i32
  }
  func.func @transform_3(%arg0: i32, %arg1: i32) -> (i32, i32) {
    %c0_i32 = arith.constant 0 : i32
    %c0_i32_0 = arith.constant 0 : i32
    return %c0_i32, %arg1 : i32, i32
  }
  func.func @transform_4(%arg0: i32, %arg1: i32) -> (i32, i32) {
    %c0_i32 = arith.constant 0 : i32
    return %arg0, %arg1 : i32, i32
  }
}

module attributes {stable_mosaic.version = 11 : i64} {
  func.func @_matmul_residual_kernel(%arg0: i32, %arg1: i32, %arg2: i32, %arg3: memref<128x256xbf16, #tpu.memory_space<vmem>>, %arg4: memref<256x128xbf16, #tpu.memory_space<vmem>>, %arg5: memref<128x128xf32, #tpu.memory_space<vmem>>, %arg6: memref<128x128xf32, #tpu.memory_space<vmem>>, %arg7: memref<128x128xf32, #tpu.memory_space<vmem>>) attributes {dimension_semantics = [#tpu.dimension_semantics<parallel>, #tpu.dimension_semantics<parallel>, #tpu.dimension_semantics<arbitrary>], iteration_bounds = array<i64: 1, 1, 1>, scalar_prefetch = 0 : i64, scratch_operands = 1 : i64, tpu.core_type = #tpu.core_type<tc>, window_params = [{transform_indices = @transform_0, window_bounds = array<i64: 128, 256>}, {transform_indices = @transform_1, window_bounds = array<i64: 256, 128>}, {transform_indices = @transform_2, window_bounds = array<i64: 128, 128>}, {transform_indices = @transform_3, window_bounds = array<i64: 128, 128>}]} {
    %c0_i32 = arith.constant 0 : i32
    %0 = arith.cmpi eq, %arg2, %c0_i32 : i32
    %1 = arith.extui %0 : i1 to i32
    %c0_i32_0 = arith.constant 0 : i32
    %2 = arith.cmpi ne, %1, %c0_i32_0 : i32
    scf.if %2 {
      %cst_10 = arith.constant 0.000000e+00 : f32
      %12 = vector.broadcast %cst_10 : f32 to vector<128x128xf32>
      %c0_11 = arith.constant 0 : index
      %c0_12 = arith.constant 0 : index
      %13 = vector.load %arg7[%c0_11, %c0_12] : memref<128x128xf32, #tpu.memory_space<vmem>>, vector<128x128xf32>
      tpu.vector_store %arg7[%c0_11, %c0_12], %12 {strides = array<i32>} : memref<128x128xf32, #tpu.memory_space<vmem>>, vector<128x128xf32>,
    } else {
    }
    %c0 = arith.constant 0 : index
    %c0_1 = arith.constant 0 : index
    %3 = vector.load %arg7[%c0, %c0_1] : memref<128x128xf32, #tpu.memory_space<vmem>>, vector<128x128xf32>
    %c0_2 = arith.constant 0 : index
    %c0_3 = arith.constant 0 : index
    %4 = vector.load %arg3[%c0_2, %c0_3] : memref<128x256xbf16, #tpu.memory_space<vmem>>, vector<128x256xbf16>
    %c0_4 = arith.constant 0 : index
    %c0_5 = arith.constant 0 : index
    %5 = vector.load %arg4[%c0_4, %c0_5] : memref<256x128xbf16, #tpu.memory_space<vmem>>, vector<256x128xbf16>
    %cst = arith.constant dense<0.000000e+00> : vector<128x128xf32>
    %6 = tpu.matmul %4, %5, %cst {dimension_numbers = #tpu.dot_dimension_numbers<[1], [0], [0], [1], [0, 0, 1, 1], [], []>} : vector<128x256xbf16>, vector<256x128xbf16>, vector<128x128xf32> -> vector<128x128xf32>
    %7 = arith.addf %3, %6 : vector<128x128xf32>
    %c0_6 = arith.constant 0 : index
    %c0_7 = arith.constant 0 : index
    %8 = vector.load %arg7[%c0_6, %c0_7] : memref<128x128xf32, #tpu.memory_space<vmem>>, vector<128x128xf32>
    tpu.vector_store %arg7[%c0_6, %c0_7], %7 {strides = array<i32>} : memref<128x128xf32, #tpu.memory_space<vmem>>, vector<128x128xf32>,
    %c0_i32_8 = arith.constant 0 : i32
    %9 = arith.cmpi eq, %arg2, %c0_i32_8 : i32
    %10 = arith.extui %9 : i1 to i32
    %c0_i32_9 = arith.constant 0 : i32
    %11 = arith.cmpi ne, %10, %c0_i32_9 : i32
    scf.if %11 {
      %c0_10 = arith.constant 0 : index
      %c0_11 = arith.constant 0 : index
      %12 = vector.load %arg7[%c0_10, %c0_11] : memref<128x128xf32, #tpu.memory_space<vmem>>, vector<128x128xf32>
      %c0_12 = arith.constant 0 : index
      %c0_13 = arith.constant 0 : index
      %13 = vector.load %arg5[%c0_12, %c0_13] : memref<128x128xf32, #tpu.memory_space<vmem>>, vector<128x128xf32>
      %14 = arith.addf %12, %13 : vector<128x128xf32>
      %c0_14 = arith.constant 0 : index
      %c0_15 = arith.constant 0 : index
      %15 = vector.load %arg6[%c0_14, %c0_15] : memref<128x128xf32, #tpu.memory_space<vmem>>, vector<128x128xf32>
      tpu.vector_store %arg6[%c0_14, %c0_15], %14 {strides = array<i32>} : memref<128x128xf32, #tpu.memory_space<vmem>>, vector<128x128xf32>,
    } else {
    }
    return
  }
  func.func @transform_0(%arg0: i32, %arg1: i32, %arg2: i32) -> (i32, i32) {
    %c0_i32 = arith.constant 0 : i32
    return %arg0, %arg2 : i32, i32
  }
  func.func @transform_1(%arg0: i32, %arg1: i32, %arg2: i32) -> (i32, i32) {
    %c0_i32 = arith.constant 0 : i32
    return %arg2, %arg1 : i32, i32
  }
  func.func @transform_2(%arg0: i32, %arg1: i32, %arg2: i32) -> (i32, i32) {
    %c0_i32 = arith.constant 0 : i32
    return %arg0, %arg1 : i32, i32
  }
  func.func @transform_3(%arg0: i32, %arg1: i32, %arg2: i32) -> (i32, i32) {
    %c0_i32 = arith.constant 0 : i32
    return %arg0, %arg1 : i32, i32
  }
}

</mosaic_0001>

<llo_original>
// kernel: gemma_decoder_layer.5
$region0: #{gemma_decoder_layer.5}
  #allocation0 [shape = 'u32[]', space=smem, size = 0x4, offset = 0x4, fixed_abs, tag = 'smem constant byte address 0x4 - core index']
  #allocation1 [shape = 'u32[144,128]{1,0:T(1,128)}', space=vmem, size = 0x12000, scoped, tag = 'internal scratch']
  #allocation2 [shape = 'bf16[128,128]{1,0:T(16,128)(2,1)}', space=vmem, size = 0x8000, scoped, tag = 'scratch operand']
  %s0 = inlined_call_operand.vmem [shape: f32[128,128], index: 0, kind: input, shape index: {}]
  %s1 = inlined_call_operand.vmem [shape: f32[1,128], index: 1, kind: input, shape index: {}]
  %s2 = inlined_call_operand.hbm [shape: bf16[128,768], index: 2, kind: input, shape index: {}]
  %s3 = inlined_call_operand.vmem [shape: bf16[128,768], index: 3, kind: output, shape index: {}]
  %s4 = sld [smem:[#allocation0]]
  $region87: #{gemma_decoder_layer.5} parent=0
    _
  %s6 = ssub.s32 1, %s4
  %s7 = scalar_select 0, %s6, %s4
  $region1: #{gemma_decoder_layer.5} parent=0
    #allocation3 [shape = 'u8[131072]{0}', space=vmem, size = 0x20000, scoped, tag = 'input window, operand 2']
    #allocation4 [shape = 's32[2]{0}', space=sflag, size = 0x8, scoped, tag = 'scoped memory for gemma_decoder_layer.5']
    #allocation5 [shape = 'u8[131072]{0}', space=vmem, size = 0x20000, scoped, tag = 'output window, operand 0']
    %8 = vsyncpa [#allocation4], 0
    %s9 = scalar_lea.sflag [#allocation4], 1
    %10 = vsyncpa %s9, 0
    loop: start=0, step=1, limit=5
    $region2: #{gemma_decoder_layer.5} parent=1 // loop_pre_header
      _
    $region3: #{gemma_decoder_layer.5} parent=1 // loop_header
      %s12 = sphi 0, %s16
      %p13 = scmp.ge.s32.totalorder %s12, 5
      %s19 = sphi 0, %s31
      %s20 = sphi 0, %s27
      %s21 = sphi 0, %s19
      %s22 = sphi 0, %s20
      %s23 = sphi 0, %s21
      %s24 = sphi 0, %s22
      %s34 = sphi 0, %s36
      %s37 = sphi 0, %s34
      %s38 = sphi 0, %s37
      %s54 = sphi 0, %s38
      %s58 = sphi 0, %s58
      %s60 = sphi 0, %s58
      %s61 = sphi 0, %s60
      %s75 = sphi 0, %s61
      %s81 = sphi 0, %s83
      %s84 = sphi 0, %s81
      %s85 = sphi 0, %s84
      %s101 = sphi 0, %s85
      %s109 = sphi 0, %s111
      %s112 = sphi 0, %s109
      %s113 = sphi 0, %s112
      %s129 = sphi 0, %s113
    $region4: #{gemma_decoder_layer.5} parent=1 // loop_header_branch
      %15 = sbr.rel (%p13) target = $region8
    $region5: #{gemma_decoder_layer.5} parent=1 // loop_body
      %s17 = ssub.s32 %s12, 1
      %s18 = ssub.s32 %s12, 2
      %s25 = sadd.s32 1, %s20
      %p26 = scmp.ge.s32.totalorder %s25, 3
      %s27 = scalar_select %p26, 0, %s25
      %s28 = sadd.s32 1, %s19
      %s29 = scalar_select %p26, %s28, %s19
      %p30 = scmp.ge.s32.totalorder %s29, 1
      %s31 = scalar_select %p30, 0, %s29
      %s32 = ssub.s32 %s19, %s31
      %p33 = scmp.eq.s32.totalorder %s32, 0
      %s35 = sadd.s32 %s34, 1
      %s36 = scalar_select %p33, %s34, %s35
      %p39 = pneg %p33
      %p40 = scmp.eq.s32.totalorder %s12, 2
      %p41 = por %p39, %p40
      %p42 = scmp.ne.s32.totalorder %s34, %s37
      %p43 = scmp.eq.s32.totalorder %s12, 0
      %p44 = por %p42, %p43
      %p45 = scmp.ne.s32.totalorder %s34, %s37
      %p46 = scmp.eq.s32.totalorder %s17, 2
      %p47 = por %p45, %p46
      %p48 = scmp.ne.s32.totalorder %s37, %s38
      %p49 = scmp.eq.s32.totalorder %s17, 0
      %p50 = por %p48, %p49
      %p51 = scmp.ne.s32.totalorder %s37, %s38
      %p52 = scmp.eq.s32.totalorder %s18, 2
      %p53 = por %p51, %p52
      %p55 = scmp.ne.s32.totalorder %s38, %s54
      %p56 = scmp.eq.s32.totalorder %s18, 0
      %p57 = por %p55, %p56
      %s59 = sadd.s32 %s58, 1
      %p62 = scmp.eq.s32.totalorder %s12, 2
      %p63 = scmp.ne.s32.totalorder %s58, %s60
      %p64 = scmp.eq.s32.totalorder %s12, 0
      %p65 = por %p63, %p64
      %p66 = scmp.ne.s32.totalorder %s58, %s60
      %p67 = scmp.eq.s32.totalorder %s17, 2
      %p68 = por %p66, %p67
      %p69 = scmp.ne.s32.totalorder %s60, %s61
      %p70 = scmp.eq.s32.totalorder %s17, 0
      %p71 = por %p69, %p70
      %p72 = scmp.ne.s32.totalorder %s60, %s61
      %p73 = scmp.eq.s32.totalorder %s18, 2
      %p74 = por %p72, %p73
      %p76 = scmp.ne.s32.totalorder %s61, %s75
      %p77 = scmp.eq.s32.totalorder %s18, 0
      %p78 = por %p76, %p77
      %s79 = ssub.s32 %s20, %s27
      %p80 = scmp.eq.s32.totalorder %s79, 0
      %s82 = sadd.s32 %s81, 1
      %s83 = scalar_select %p80, %s81, %s82
      %p86 = pneg %p80
      %p87 = scmp.eq.s32.totalorder %s12, 2
      %p88 = por %p86, %p87
      %p89 = scmp.ne.s32.totalorder %s81, %s84
      %p90 = scmp.eq.s32.totalorder %s12, 0
      %p91 = por %p89, %p90
      %p92 = scmp.ne.s32.totalorder %s81, %s84
      %p93 = scmp.eq.s32.totalorder %s17, 2
      %p94 = por %p92, %p93
      %p95 = scmp.ne.s32.totalorder %s84, %s85
      %p96 = scmp.eq.s32.totalorder %s17, 0
      %p97 = por %p95, %p96
      %p98 = scmp.ne.s32.totalorder %s84, %s85
      %p99 = scmp.eq.s32.totalorder %s18, 2
      %p100 = por %p98, %p99
      %p102 = scmp.ne.s32.totalorder %s85, %s101
      %p103 = scmp.eq.s32.totalorder %s18, 0
      %p104 = por %p102, %p103
      %s105 = ssub.s32 %s19, %s31
      %s106 = ssub.s32 %s20, %s27
      %s107 = sor.u32 %s105, %s106
      %p108 = scmp.eq.s32.totalorder %s107, 0
      %s110 = sadd.s32 %s109, 1
      %s111 = scalar_select %p108, %s109, %s110
      %p114 = pneg %p108
      %p115 = scmp.eq.s32.totalorder %s12, 2
      %p116 = por %p114, %p115
      %p117 = scmp.ne.s32.totalorder %s109, %s112
      %p118 = scmp.eq.s32.totalorder %s12, 0
      %p119 = por %p117, %p118
      %p120 = scmp.ne.s32.totalorder %s109, %s112
      %p121 = scmp.eq.s32.totalorder %s17, 2
      %p122 = por %p120, %p121
      %p123 = scmp.ne.s32.totalorder %s112, %s113
      %p124 = scmp.eq.s32.totalorder %s17, 0
      %p125 = por %p123, %p124
      %p126 = scmp.ne.s32.totalorder %s112, %s113
      %p127 = scmp.eq.s32.totalorder %s18, 2
      %p128 = por %p126, %p127
      %p130 = scmp.ne.s32.totalorder %s113, %s129
      %p131 = scmp.eq.s32.totalorder %s18, 0
      %p132 = por %p130, %p131
      %p133 = scmp.le.s32.totalorder 1, %s12
      %p134 = scmp.lt.s32.totalorder %s12, 4
      %p135 = pnand %p133, %p134
      %p136 = pneg %p135
      // Predicated region
      $region9: #{gemma_decoder_layer.5} parent=5 // pred_check
        _
      $region10: #{gemma_decoder_layer.5} parent=5 // pred_check_branch
        %138 = sbr.rel (%p135) target = $region12
      $region11: #{gemma_decoder_layer.5} parent=5 // pred_region
        %s139 = ssub.s32 %s12, 1
        // Predicated region
        $region13: #{gemma_decoder_layer.5} parent=11 // pred_check
          %p140 = pneg %p50
        $region14: #{gemma_decoder_layer.5} parent=11 // pred_check_branch
          %142 = sbr.rel (%p140) target = $region16
        $region15: #{gemma_decoder_layer.5} parent=11 // pred_region
          %s143 = smul.u32 16, %s21
          %p144 = scmp.lt.s32.totalorder %s143, 15
          %s145 = scalar_select %p144, %s143, 15
          %s146 = smul.addr %s145, 8
          %s147 = scalar_lea.vmem %s0, %s146
          %s148 = smul.u32 16, %s21
        $region16: #{gemma_decoder_layer.5} parent=11 // pred_fallthru
          _
        // Predicated region
        $region17: #{gemma_decoder_layer.5} parent=11 // pred_check
          %p149 = pneg %p71
        $region18: #{gemma_decoder_layer.5} parent=11 // pred_check_branch
          %151 = sbr.rel (%p149) target = $region20
        $region19: #{gemma_decoder_layer.5} parent=11 // pred_region
          _
        $region20: #{gemma_decoder_layer.5} parent=11 // pred_fallthru
          _
      $region12: #{gemma_decoder_layer.5} parent=5 // pred_fallthru
        _
      %p152 = scmp.lt.s32.totalorder %s12, 3
      // Predicated region
      $region21: #{gemma_decoder_layer.5} parent=5 // pred_check
        %p153 = pneg %p152
      $region22: #{gemma_decoder_layer.5} parent=5 // pred_check_branch
        %155 = sbr.rel (%p153) target = $region24
      $region23: #{gemma_decoder_layer.5} parent=5 // pred_region
        // Predicated region
        $region25: #{gemma_decoder_layer.5} parent=23 // pred_check
          %p156 = pneg %p91
        $region26: #{gemma_decoder_layer.5} parent=23 // pred_check_branch
          %158 = sbr.rel (%p156) target = $region28
        $region27: #{gemma_decoder_layer.5} parent=23 // pred_region
          %s159 = sand.u32 %s81, 1
          %s160 = scalar_lea.sflag [#allocation4], %s159
          %s161 = sand.u32 %s81, 1
          %s162 = smul.addr %s161, 128
          %s163 = scalar_lea.vmem [#allocation3], %s162
          %s164 = smul.u32 2, %s20
          %s166 = ssub.s32 2048, 2048
          %167 = vsyncadd %s160, %s166
          %s168 = smul.addr %s164, 64
          %s169 = scalar_lea.hbm %s2, %s168
          %s170 = sshll.u32 %s163, 4
          %s171 = int_to_ptr.vmem [resolvable:$true] %s170
          %176 = dma.hbm_to_vmem [thread:$0]  %s169, 2048, %s171, %s160, 384, 128, 8
        $region28: #{gemma_decoder_layer.5} parent=23 // pred_fallthru
          _
      $region24: #{gemma_decoder_layer.5} parent=5 // pred_fallthru
        _
      %p177 = scmp.le.s32.totalorder 1, %s12
      %p178 = scmp.lt.s32.totalorder %s12, 4
      %p179 = pnand %p177, %p178
      %p180 = pneg %p179
      // Predicated region
      $region29: #{gemma_decoder_layer.5} parent=5 // pred_check
        _
      $region30: #{gemma_decoder_layer.5} parent=5 // pred_check_branch
        %182 = sbr.rel (%p179) target = $region32
      $region31: #{gemma_decoder_layer.5} parent=5 // pred_region
        %s183 = ssub.s32 %s12, 1
        %s184 = sand.u32 %s84, 1
        %s185 = scalar_lea.sflag [#allocation4], %s184
        %s186 = sand.u32 %s84, 1
        %s187 = smul.addr %s186, 128
        %s188 = scalar_lea.vmem [#allocation3], %s187
        // Predicated region
        $region33: #{gemma_decoder_layer.5} parent=31 // pred_check
          %p189 = pneg %p97
        $region34: #{gemma_decoder_layer.5} parent=31 // pred_check_branch
          %191 = sbr.rel (%p189) target = $region36
        $region35: #{gemma_decoder_layer.5} parent=31 // pred_region
          %192 = dma.done %s185, 2048
        $region36: #{gemma_decoder_layer.5} parent=31 // pred_fallthru
          _
        %s193 = smul.u32 16, %s21
        %p194 = scmp.lt.s32.totalorder %s193, 15
        %s195 = scalar_select %p194, %s193, 15
        %s196 = smul.addr %s195, 8
        %s197 = scalar_lea.vmem %s0, %s196
        %p198 = pneg %p50
        %p199 = pneg %p47
        %p200 = pneg %p71
        %p201 = pneg %p68
        %s202 = sand.u32 %s84, 1
        %s203 = scalar_lea.sflag [#allocation4], %s202
        %s204 = sand.u32 %s84, 1
        %s205 = smul.addr %s204, 128
        %s206 = scalar_lea.vmem [#allocation3], %s205
        %p207 = pneg %p97
        %p208 = pneg %p94
        %p209 = pneg %p125
        %p210 = pneg %p122
        %s211 = sand.u32 %s112, 1
        %s212 = sand.u32 %s112, 1
        %s213 = smul.addr %s212, 128
        %s214 = scalar_lea.vmem [#allocation5], %s213
        %s215 = smul.u32 16, %s21
        %p216 = scmp.lt.s32.totalorder %s215, 15
        %s217 = scalar_select %p216, %s215, 15
        %s218 = smul.addr %s217, 8
        %s219 = scalar_lea.vmem %s0, %s218
        %s220 = smul.u32 16, %s21
        %s221 = smul.u32 2, %s22
        %s222 = smul.u32 16, %s21
        %s223 = smul.u32 2, %s22
        %p225 = scmp.eq.s32.totalorder %s22, 0
        // Predicated region
        $region37: #{gemma_decoder_layer.5} parent=31 // pred_check
          %p226 = pneg %p225
        $region38: #{gemma_decoder_layer.5} parent=31 // pred_check_branch
          %228 = sbr.rel (%p226) target = $region40
        $region39: #{gemma_decoder_layer.5} parent=31 // pred_region
          %v229 = vld [vmem:[%s219] sm:$0xff]
          %v230 = vld [vmem:[%s219 + $0x8] sm:$0xff]
          %v231 = vld [vmem:[%s219 + $0x10] sm:$0xff]
          %v232 = vld [vmem:[%s219 + $0x18] sm:$0xff]
          %v233 = vld [vmem:[%s219 + $0x20] sm:$0xff]
          %v234 = vld [vmem:[%s219 + $0x28] sm:$0xff]
          %v235 = vld [vmem:[%s219 + $0x30] sm:$0xff]
          %v236 = vld [vmem:[%s219 + $0x38] sm:$0xff]
          %v237 = vld [vmem:[%s219 + $0x40] sm:$0xff]
          %v238 = vld [vmem:[%s219 + $0x48] sm:$0xff]
          %v239 = vld [vmem:[%s219 + $0x50] sm:$0xff]
          %v240 = vld [vmem:[%s219 + $0x58] sm:$0xff]
          %v241 = vld [vmem:[%s219 + $0x60] sm:$0xff]
          %v242 = vld [vmem:[%s219 + $0x68] sm:$0xff]
          %v243 = vld [vmem:[%s219 + $0x70] sm:$0xff]
          %v244 = vld [vmem:[%s219 + $0x78] sm:$0xff]
          %v245 = vmul.f32 %v229, %v229
          %v246 = vmul.f32 %v230, %v230
          %v247 = vmul.f32 %v231, %v231
          %v248 = vmul.f32 %v232, %v232
          %v249 = vmul.f32 %v233, %v233
          %v250 = vmul.f32 %v234, %v234
          %v251 = vmul.f32 %v235, %v235
          %v252 = vmul.f32 %v236, %v236
          %v253 = vmul.f32 %v237, %v237
          %v254 = vmul.f32 %v238, %v238
          %v255 = vmul.f32 %v239, %v239
          %v256 = vmul.f32 %v240, %v240
          %v257 = vmul.f32 %v241, %v241
          %v258 = vmul.f32 %v242, %v242
          %v259 = vmul.f32 %v243, %v243
          %v260 = vmul.f32 %v244, %v244
          %261 = vadd.xlane.f32.xlu0 %v245
          %v262 = vpop.xlane.xlu0 %261
          %263 = vadd.xlane.f32.xlu0 %v246
          %v264 = vpop.xlane.xlu0 %263
          %265 = vadd.xlane.f32.xlu0 %v247
          %v266 = vpop.xlane.xlu0 %265
          %267 = vadd.xlane.f32.xlu0 %v248
          %v268 = vpop.xlane.xlu0 %267
          %269 = vadd.xlane.f32.xlu0 %v249
          %v270 = vpop.xlane.xlu0 %269
          %271 = vadd.xlane.f32.xlu0 %v250
          %v272 = vpop.xlane.xlu0 %271
          %273 = vadd.xlane.f32.xlu0 %v251
          %v274 = vpop.xlane.xlu0 %273
          %275 = vadd.xlane.f32.xlu0 %v252
          %v276 = vpop.xlane.xlu0 %275
          %277 = vadd.xlane.f32.xlu0 %v253
          %v278 = vpop.xlane.xlu0 %277
          %279 = vadd.xlane.f32.xlu0 %v254
          %v280 = vpop.xlane.xlu0 %279
          %281 = vadd.xlane.f32.xlu0 %v255
          %v282 = vpop.xlane.xlu0 %281
          %283 = vadd.xlane.f32.xlu0 %v256
          %v284 = vpop.xlane.xlu0 %283
          %285 = vadd.xlane.f32.xlu0 %v257
          %v286 = vpop.xlane.xlu0 %285
          %287 = vadd.xlane.f32.xlu0 %v258
          %v288 = vpop.xlane.xlu0 %287
          %289 = vadd.xlane.f32.xlu0 %v259
          %v290 = vpop.xlane.xlu0 %289
          %291 = vadd.xlane.f32.xlu0 %v260
          %v292 = vpop.xlane.xlu0 %291
          %v293 = vrcp.pop 128.0
          %v294 = vmul.f32 %v262, %v293
          %v295 = vmul.f32 %v264, %v293
          %v296 = vmul.f32 %v266, %v293
          %v297 = vmul.f32 %v268, %v293
          %v298 = vmul.f32 %v270, %v293
          %v299 = vmul.f32 %v272, %v293
          %v300 = vmul.f32 %v274, %v293
          %v301 = vmul.f32 %v276, %v293
          %v302 = vmul.f32 %v278, %v293
          %v303 = vmul.f32 %v280, %v293
          %v304 = vmul.f32 %v282, %v293
          %v305 = vmul.f32 %v284, %v293
          %v306 = vmul.f32 %v286, %v293
          %v307 = vmul.f32 %v288, %v293
          %v308 = vmul.f32 %v290, %v293
          %v309 = vmul.f32 %v292, %v293
          %v310 = vadd.f32 %v294, 1e-06
          %v311 = vadd.f32 %v295, 1e-06
          %v312 = vadd.f32 %v296, 1e-06
          %v313 = vadd.f32 %v297, 1e-06
          %v314 = vadd.f32 %v298, 1e-06
          %v315 = vadd.f32 %v299, 1e-06
          %v316 = vadd.f32 %v300, 1e-06
          %v317 = vadd.f32 %v301, 1e-06
          %v318 = vadd.f32 %v302, 1e-06
          %v319 = vadd.f32 %v303, 1e-06
          %v320 = vadd.f32 %v304, 1e-06
          %v321 = vadd.f32 %v305, 1e-06
          %v322 = vadd.f32 %v306, 1e-06
          %v323 = vadd.f32 %v307, 1e-06
          %v324 = vadd.f32 %v308, 1e-06
          %v325 = vadd.f32 %v309, 1e-06
          %v326 = vrsqrt.pop %v310
          %v327 = vrsqrt.pop %v311
          %v328 = vrsqrt.pop %v312
          %v329 = vrsqrt.pop %v313
          %v330 = vrsqrt.pop %v314
          %v331 = vrsqrt.pop %v315
          %v332 = vrsqrt.pop %v316
          %v333 = vrsqrt.pop %v317
          %v334 = vrsqrt.pop %v318
          %v335 = vrsqrt.pop %v319
          %v336 = vrsqrt.pop %v320
          %v337 = vrsqrt.pop %v321
          %v338 = vrsqrt.pop %v322
          %v339 = vrsqrt.pop %v323
          %v340 = vrsqrt.pop %v324
          %v341 = vrsqrt.pop %v325
          %v342 = vmul.f32 %v229, %v326
          %v343 = vmul.f32 %v230, %v327
          %v344 = vmul.f32 %v231, %v328
          %v345 = vmul.f32 %v232, %v329
          %v346 = vmul.f32 %v233, %v330
          %v347 = vmul.f32 %v234, %v331
          %v348 = vmul.f32 %v235, %v332
          %v349 = vmul.f32 %v236, %v333
          %v350 = vmul.f32 %v237, %v334
          %v351 = vmul.f32 %v238, %v335
          %v352 = vmul.f32 %v239, %v336
          %v353 = vmul.f32 %v240, %v337
          %v354 = vmul.f32 %v241, %v338
          %v355 = vmul.f32 %v242, %v339
          %v356 = vmul.f32 %v243, %v340
          %v357 = vmul.f32 %v244, %v341
          %v358 = vld [vmem:[%s1] sm:$0x1]
          %v359 = vadd.f32 %v358, 1.0
          %v361 = vlaneseq
          %v362 = vshrl.u32 %v361, 7
          %v363 = vsub.s32 0, %v362
          %v364 = vrot.slane %v359, %v363
          %v366 = vmul.f32 %v342, %v364
          %v367 = vmul.f32 %v343, %v364
          %v368 = vmul.f32 %v344, %v364
          %v369 = vmul.f32 %v345, %v364
          %v370 = vmul.f32 %v346, %v364
          %v371 = vmul.f32 %v347, %v364
          %v372 = vmul.f32 %v348, %v364
          %v373 = vmul.f32 %v349, %v364
          %v374 = vmul.f32 %v350, %v364
          %v375 = vmul.f32 %v351, %v364
          %v376 = vmul.f32 %v352, %v364
          %v377 = vmul.f32 %v353, %v364
          %v378 = vmul.f32 %v354, %v364
          %v379 = vmul.f32 %v355, %v364
          %v380 = vmul.f32 %v356, %v364
          %v381 = vmul.f32 %v357, %v364
          %v382 = vpack.c.bf16 %v367, %v366
          %v383 = vpack.c.bf16 %v369, %v368
          %v384 = vpack.c.bf16 %v371, %v370
          %v385 = vpack.c.bf16 %v373, %v372
          %v386 = vpack.c.bf16 %v375, %v374
          %v387 = vpack.c.bf16 %v377, %v376
          %v388 = vpack.c.bf16 %v379, %v378
          %v389 = vpack.c.bf16 %v381, %v380
          %390 = vst [vmem:[#allocation2] sm:$0xff] %v382
          %391 = vst [vmem:[#allocation2 + $0x8] sm:$0xff] %v383
          %392 = vst [vmem:[#allocation2 + $0x10] sm:$0xff] %v384
          %393 = vst [vmem:[#allocation2 + $0x18] sm:$0xff] %v385
          %394 = vst [vmem:[#allocation2 + $0x20] sm:$0xff] %v386
          %395 = vst [vmem:[#allocation2 + $0x28] sm:$0xff] %v387
          %396 = vst [vmem:[#allocation2 + $0x30] sm:$0xff] %v388
          %397 = vst [vmem:[#allocation2 + $0x38] sm:$0xff] %v389
        $region40: #{gemma_decoder_layer.5} parent=31 // pred_fallthru
          _
        %v398 = vld [vmem:[#allocation2] sm:$0xff]
        %v399 = vld [vmem:[#allocation2 + $0x8] sm:$0xff]
        %v400 = vld [vmem:[#allocation2 + $0x10] sm:$0xff]
        %v401 = vld [vmem:[#allocation2 + $0x18] sm:$0xff]
        %v402 = vld [vmem:[#allocation2 + $0x20] sm:$0xff]
        %v403 = vld [vmem:[#allocation2 + $0x28] sm:$0xff]
        %v404 = vld [vmem:[#allocation2 + $0x30] sm:$0xff]
        %v405 = vld [vmem:[#allocation2 + $0x38] sm:$0xff]
        %v406 = vld [vmem:[%s188] sm:$0xff]
        %v407 = vld [vmem:[%s188 + $0x8] sm:$0xff]
        %v408 = vld [vmem:[%s188 + $0x10] sm:$0xff]
        %v409 = vld [vmem:[%s188 + $0x18] sm:$0xff]
        %v410 = vld [vmem:[%s188 + $0x20] sm:$0xff]
        %v411 = vld [vmem:[%s188 + $0x28] sm:$0xff]
        %v412 = vld [vmem:[%s188 + $0x30] sm:$0xff]
        %v413 = vld [vmem:[%s188 + $0x38] sm:$0xff]
        %v414 = vld [vmem:[%s188 + $0x40] sm:$0xff]
        %v415 = vld [vmem:[%s188 + $0x48] sm:$0xff]
        %v416 = vld [vmem:[%s188 + $0x50] sm:$0xff]
        %v417 = vld [vmem:[%s188 + $0x58] sm:$0xff]
        %v418 = vld [vmem:[%s188 + $0x60] sm:$0xff]
        %v419 = vld [vmem:[%s188 + $0x68] sm:$0xff]
        %v420 = vld [vmem:[%s188 + $0x70] sm:$0xff]
        %v421 = vld [vmem:[%s188 + $0x78] sm:$0xff]
        %v438 = vunpack.c.l.b16 %v406
        %v439 = vunpack.c.h.b16 %v406
        %v440 = vunpack.c.l.b16 %v407
        %v441 = vunpack.c.h.b16 %v407
        %v442 = vunpack.c.l.b16 %v408
        %v443 = vunpack.c.h.b16 %v408
        %v444 = vunpack.c.l.b16 %v409
        %v445 = vunpack.c.h.b16 %v409
        %v446 = vunpack.c.l.b16 %v410
        %v447 = vunpack.c.h.b16 %v410
        %v448 = vunpack.c.l.b16 %v411
        %v449 = vunpack.c.h.b16 %v411
        %v450 = vunpack.c.l.b16 %v412
        %v451 = vunpack.c.h.b16 %v412
        %v452 = vunpack.c.l.b16 %v413
        %v453 = vunpack.c.h.b16 %v413
        %v454 = vunpack.c.l.b16 %v414
        %v455 = vunpack.c.h.b16 %v414
        %v456 = vunpack.c.l.b16 %v415
        %v457 = vunpack.c.h.b16 %v415
        %v458 = vunpack.c.l.b16 %v416
        %v459 = vunpack.c.h.b16 %v416
        %v460 = vunpack.c.l.b16 %v417
        %v461 = vunpack.c.h.b16 %v417
        %v462 = vunpack.c.l.b16 %v418
        %v463 = vunpack.c.h.b16 %v418
        %v464 = vunpack.c.l.b16 %v419
        %v465 = vunpack.c.h.b16 %v419
        %v466 = vunpack.c.l.b16 %v420
        %v467 = vunpack.c.h.b16 %v420
        %v468 = vunpack.c.l.b16 %v421
        %v469 = vunpack.c.h.b16 %v421
        %v470 = vpack.c.b16 %v440, %v438
        %v471 = vpack.c.b16 %v441, %v439
        %v472 = vpack.c.b16 %v444, %v442
        %v473 = vpack.c.b16 %v445, %v443
        %v474 = vpack.c.b16 %v448, %v446
        %v475 = vpack.c.b16 %v449, %v447
        %v476 = vpack.c.b16 %v452, %v450
        %v477 = vpack.c.b16 %v453, %v451
        %v478 = vpack.c.b16 %v456, %v454
        %v479 = vpack.c.b16 %v457, %v455
        %v480 = vpack.c.b16 %v460, %v458
        %v481 = vpack.c.b16 %v461, %v459
        %v482 = vpack.c.b16 %v464, %v462
        %v483 = vpack.c.b16 %v465, %v463
        %v484 = vpack.c.b16 %v468, %v466
        %v485 = vpack.c.b16 %v469, %v467
        %502 = vmatprep.subr.bf16.mxu0 %v471
        %503 = vmatpush1.bf16.msra.mxu0 %v470
        %504 = vmatprep.subr.bf16.mxu0 %v473
        %505 = vmatpush1.bf16.msra.mxu0 %v472
        %506 = vmatprep.subr.bf16.mxu0 %v475
        %507 = vmatpush1.bf16.msra.mxu0 %v474
        %508 = vmatprep.subr.bf16.mxu0 %v477
        %509 = vmatpush1.bf16.msra.mxu0 %v476
        %510 = vmatprep.subr.bf16.mxu0 %v479
        %511 = vmatpush1.bf16.msra.mxu0 %v478
        %512 = vmatprep.subr.bf16.mxu0 %v481
        %513 = vmatpush1.bf16.msra.mxu0 %v480
        %514 = vmatprep.subr.bf16.mxu0 %v483
        %515 = vmatpush1.bf16.msra.mxu0 %v482
        %516 = vmatprep.subr.bf16.mxu0 %v485
        %517 = vmatpush1.bf16.msra.mxu0 %v484
        %518 = vmatprep.subr.bf16.mxu0 0
        %519 = vmatpush1.bf16.msra.mxu0 0
        %520 = vmatprep.subr.bf16.mxu0 0
        %521 = vmatpush1.bf16.msra.mxu0 0
        %522 = vmatprep.subr.bf16.mxu0 0
        %523 = vmatpush1.bf16.msra.mxu0 0
        %524 = vmatprep.subr.bf16.mxu0 0
        %525 = vmatpush1.bf16.msra.mxu0 0
        %526 = vmatprep.subr.bf16.mxu0 0
        %527 = vmatpush1.bf16.msra.mxu0 0
        %528 = vmatprep.subr.bf16.mxu0 0
        %529 = vmatpush1.bf16.msra.mxu0 0
        %530 = vmatprep.subr.bf16.mxu0 0
        %531 = vmatpush1.bf16.msra.mxu0 0
        %532 = vmatprep.subr.bf16.mxu0 0
        %533 = vmatpush1.bf16.msra.mxu0 0
        %534 = vmatprep.mubr.bf16.mxu0 0
        %535 = vmatmul.mubr.bf16.gmra.mrb[0].mxu0 %v398
        %v536 = vpop.f32.mrb[0].mxu0
        %v537 = vadd.f32 0.0, %v536
        %v538 = vpop.f32.mrb[0].mxu0
        %v539 = vadd.f32 0.0, %v538
        %v540 = vpop.f32.mrb[0].mxu0
        %v541 = vadd.f32 0.0, %v540
        %v542 = vpop.f32.mrb[0].mxu0
        %v543 = vadd.f32 0.0, %v542
        %544 = vmatprep.mubr.bf16.mxu0 0
        %545 = vmatmul.mubr.bf16.gmra.mrb[0].mxu0 %v399
        %v546 = vpop.f32.mrb[0].mxu0
        %v547 = vadd.f32 0.0, %v546
        %v548 = vpop.f32.mrb[0].mxu0
        %v549 = vadd.f32 0.0, %v548
        %v550 = vpop.f32.mrb[0].mxu0
        %v551 = vadd.f32 0.0, %v550
        %v552 = vpop.f32.mrb[0].mxu0
        %v553 = vadd.f32 0.0, %v552
        %554 = vmatprep.mubr.bf16.mxu0 0
        %555 = vmatmul.mubr.bf16.gmra.mrb[0].mxu0 %v400
        %v556 = vpop.f32.mrb[0].mxu0
        %v557 = vadd.f32 0.0, %v556
        %v558 = vpop.f32.mrb[0].mxu0
        %v559 = vadd.f32 0.0, %v558
        %v560 = vpop.f32.mrb[0].mxu0
        %v561 = vadd.f32 0.0, %v560
        %v562 = vpop.f32.mrb[0].mxu0
        %v563 = vadd.f32 0.0, %v562
        %564 = vmatprep.mubr.bf16.mxu0 0
        %565 = vmatmul.mubr.bf16.gmra.mrb[0].mxu0 %v401
        %v566 = vpop.f32.mrb[0].mxu0
        %v567 = vadd.f32 0.0, %v566
        %v568 = vpop.f32.mrb[0].mxu0
        %v569 = vadd.f32 0.0, %v568
        %v570 = vpop.f32.mrb[0].mxu0
        %v571 = vadd.f32 0.0, %v570
        %v572 = vpop.f32.mrb[0].mxu0
        %v573 = vadd.f32 0.0, %v572
        %574 = vmatprep.mubr.bf16.mxu0 0
        %575 = vmatmul.mubr.bf16.gmra.mrb[0].mxu0 %v402
        %v576 = vpop.f32.mrb[0].mxu0
        %v577 = vadd.f32 0.0, %v576
        %v578 = vpop.f32.mrb[0].mxu0
        %v579 = vadd.f32 0.0, %v578
        %v580 = vpop.f32.mrb[0].mxu0
        %v581 = vadd.f32 0.0, %v580
        %v582 = vpop.f32.mrb[0].mxu0
        %v583 = vadd.f32 0.0, %v582
        %584 = vmatprep.mubr.bf16.mxu0 0
        %585 = vmatmul.mubr.bf16.gmra.mrb[0].mxu0 %v403
        %v586 = vpop.f32.mrb[0].mxu0
        %v587 = vadd.f32 0.0, %v586
        %v588 = vpop.f32.mrb[0].mxu0
        %v589 = vadd.f32 0.0, %v588
        %v590 = vpop.f32.mrb[0].mxu0
        %v591 = vadd.f32 0.0, %v590
        %v592 = vpop.f32.mrb[0].mxu0
        %v593 = vadd.f32 0.0, %v592
        %594 = vmatprep.mubr.bf16.mxu0 0
        %595 = vmatmul.mubr.bf16.gmra.mrb[0].mxu0 %v404
        %v596 = vpop.f32.mrb[0].mxu0
        %v597 = vadd.f32 0.0, %v596
        %v598 = vpop.f32.mrb[0].mxu0
        %v599 = vadd.f32 0.0, %v598
        %v600 = vpop.f32.mrb[0].mxu0
        %v601 = vadd.f32 0.0, %v600
        %v602 = vpop.f32.mrb[0].mxu0
        %v603 = vadd.f32 0.0, %v602
        %604 = vmatprep.mubr.bf16.mxu0 0
        %605 = vmatmul.mubr.bf16.gmra.mrb[0].mxu0 %v405
        %v606 = vpop.f32.mrb[0].mxu0
        %v607 = vadd.f32 0.0, %v606
        %v608 = vpop.f32.mrb[0].mxu0
        %v609 = vadd.f32 0.0, %v608
        %v610 = vpop.f32.mrb[0].mxu0
        %v611 = vadd.f32 0.0, %v610
        %v612 = vpop.f32.mrb[0].mxu0
        %v613 = vadd.f32 0.0, %v612
        %614 = vdwg.mxu0
        %v615 = vpack.c.bf16 %v541, %v537
        %v616 = vpack.c.bf16 %v543, %v539
        %v617 = vpack.c.bf16 %v551, %v547
        %v618 = vpack.c.bf16 %v553, %v549
        %v619 = vpack.c.bf16 %v561, %v557
        %v620 = vpack.c.bf16 %v563, %v559
        %v621 = vpack.c.bf16 %v571, %v567
        %v622 = vpack.c.bf16 %v573, %v569
        %v623 = vpack.c.bf16 %v581, %v577
        %v624 = vpack.c.bf16 %v583, %v579
        %v625 = vpack.c.bf16 %v591, %v587
        %v626 = vpack.c.bf16 %v593, %v589
        %v627 = vpack.c.bf16 %v601, %v597
        %v628 = vpack.c.bf16 %v603, %v599
        %v629 = vpack.c.bf16 %v611, %v607
        %v630 = vpack.c.bf16 %v613, %v609
        %v647 = vunpack.c.l.b16 %v615
        %v648 = vunpack.c.l.b16 %v616
        %v649 = vunpack.c.h.b16 %v615
        %v650 = vunpack.c.h.b16 %v616
        %v651 = vunpack.c.l.b16 %v617
        %v652 = vunpack.c.l.b16 %v618
        %v653 = vunpack.c.h.b16 %v617
        %v654 = vunpack.c.h.b16 %v618
        %v655 = vunpack.c.l.b16 %v619
        %v656 = vunpack.c.l.b16 %v620
        %v657 = vunpack.c.h.b16 %v619
        %v658 = vunpack.c.h.b16 %v620
        %v659 = vunpack.c.l.b16 %v621
        %v660 = vunpack.c.l.b16 %v622
        %v661 = vunpack.c.h.b16 %v621
        %v662 = vunpack.c.h.b16 %v622
        %v663 = vunpack.c.l.b16 %v623
        %v664 = vunpack.c.l.b16 %v624
        %v665 = vunpack.c.h.b16 %v623
        %v666 = vunpack.c.h.b16 %v624
        %v667 = vunpack.c.l.b16 %v625
        %v668 = vunpack.c.l.b16 %v626
        %v669 = vunpack.c.h.b16 %v625
        %v670 = vunpack.c.h.b16 %v626
        %v671 = vunpack.c.l.b16 %v627
        %v672 = vunpack.c.l.b16 %v628
        %v673 = vunpack.c.h.b16 %v627
        %v674 = vunpack.c.h.b16 %v628
        %v675 = vunpack.c.l.b16 %v629
        %v676 = vunpack.c.l.b16 %v630
        %v677 = vunpack.c.h.b16 %v629
        %v678 = vunpack.c.h.b16 %v630
        %v679 = vpack.c.b16 %v648, %v647
        %v680 = vpack.c.b16 %v650, %v649
        %v681 = vpack.c.b16 %v652, %v651
        %v682 = vpack.c.b16 %v654, %v653
        %v683 = vpack.c.b16 %v656, %v655
        %v684 = vpack.c.b16 %v658, %v657
        %v685 = vpack.c.b16 %v660, %v659
        %v686 = vpack.c.b16 %v662, %v661
        %v687 = vpack.c.b16 %v664, %v663
        %v688 = vpack.c.b16 %v666, %v665
        %v689 = vpack.c.b16 %v668, %v667
        %v690 = vpack.c.b16 %v670, %v669
        %v691 = vpack.c.b16 %v672, %v671
        %v692 = vpack.c.b16 %v674, %v673
        %v693 = vpack.c.b16 %v676, %v675
        %v694 = vpack.c.b16 %v678, %v677
        %711 = vst [vmem:[%s214] sm:$0xff] %v679
        %712 = vst [vmem:[%s214 + $0x8] sm:$0xff] %v680
        %713 = vst [vmem:[%s214 + $0x10] sm:$0xff] %v681
        %714 = vst [vmem:[%s214 + $0x18] sm:$0xff] %v682
        %715 = vst [vmem:[%s214 + $0x20] sm:$0xff] %v683
        %716 = vst [vmem:[%s214 + $0x28] sm:$0xff] %v684
        %717 = vst [vmem:[%s214 + $0x30] sm:$0xff] %v685
        %718 = vst [vmem:[%s214 + $0x38] sm:$0xff] %v686
        %719 = vst [vmem:[%s214 + $0x40] sm:$0xff] %v687
        %720 = vst [vmem:[%s214 + $0x48] sm:$0xff] %v688
        %721 = vst [vmem:[%s214 + $0x50] sm:$0xff] %v689
        %722 = vst [vmem:[%s214 + $0x58] sm:$0xff] %v690
        %723 = vst [vmem:[%s214 + $0x60] sm:$0xff] %v691
        %724 = vst [vmem:[%s214 + $0x68] sm:$0xff] %v692
        %725 = vst [vmem:[%s214 + $0x70] sm:$0xff] %v693
        %726 = vst [vmem:[%s214 + $0x78] sm:$0xff] %v694
        %s727 = sand.u32 %s112, 1
        %s728 = sand.u32 %s112, 1
        %s729 = smul.addr %s728, 128
        %s730 = scalar_lea.vmem [#allocation5], %s729
        // Predicated region
        $region41: #{gemma_decoder_layer.5} parent=31 // pred_check
          %p731 = pneg %p122
        $region42: #{gemma_decoder_layer.5} parent=31 // pred_check_branch
          %733 = sbr.rel (%p731) target = $region44
        $region43: #{gemma_decoder_layer.5} parent=31 // pred_region
          %s734 = smul.u32 16, %s21
          %s735 = smul.u32 2, %s22
          %s736 = smul.addr %s734, 6
          %s737 = sadd.s32 %s735, %s736
          %s738 = smul.addr %s737, 4
          %s739 = scalar_lea.vmem %s3, %s738
          // Predicated region
          $region45: #{gemma_decoder_layer.5} parent=43 // pred_check
            _
          $region46: #{gemma_decoder_layer.5} parent=43 // pred_check_branch
            %741 = sbr.rel (0) target = $region48
          $region47: #{gemma_decoder_layer.5} parent=43 // pred_region
            // Predicated region
            $region49: #{gemma_decoder_layer.5} parent=47 // pred_check
              _
            $region50: #{gemma_decoder_layer.5} parent=47 // pred_check_branch
              %743 = sbr.rel (0) target = $region52
            $region51: #{gemma_decoder_layer.5} parent=47 // pred_region
              // Predicated region
              $region64: #{gemma_decoder_layer.5} parent=51 // pred_check
                _
              $region65: #{gemma_decoder_layer.5} parent=51 // pred_check_branch
                %788 = sbr.rel (0) target = $region67
              $region66: #{gemma_decoder_layer.5} parent=51 // pred_region
                loop: start=0, step=1, limit=1
                $region68: #{gemma_decoder_layer.5} parent=66 // loop_pre_header
                  _
                $region69: #{gemma_decoder_layer.5} parent=66 // loop_header
                  %s790 = sphi 0, %s794
                  %p791 = scmp.ge.s32.totalorder %s790, 1
                  %s795 = sphi %s730, %s730
                  %s796 = sphi %s739, %s739
                $region70: #{gemma_decoder_layer.5} parent=66 // loop_header_branch
                  %793 = sbr.rel (%p791) target = $region74
                $region71: #{gemma_decoder_layer.5} parent=66 // loop_body
                  %v797 = vld [vmem:[%s795] sm:$0xff]
                  %798 = vst [vmem:[%s796] sm:$0xff] %v797
                  %v799 = vld [vmem:[%s795 + $0x8] sm:$0xff]
                  %800 = vst [vmem:[%s796 + $0x18] sm:$0xff] %v799
                  %v801 = vld [vmem:[%s795 + $0x10] sm:$0xff]
                  %802 = vst [vmem:[%s796 + $0x30] sm:$0xff] %v801
                  %v803 = vld [vmem:[%s795 + $0x18] sm:$0xff]
                  %804 = vst [vmem:[%s796 + $0x48] sm:$0xff] %v803
                  %v805 = vld [vmem:[%s795 + $0x20] sm:$0xff]
                  %806 = vst [vmem:[%s796 + $0x60] sm:$0xff] %v805
                  %v807 = vld [vmem:[%s795 + $0x28] sm:$0xff]
                  %808 = vst [vmem:[%s796 + $0x78] sm:$0xff] %v807
                  %v809 = vld [vmem:[%s795 + $0x30] sm:$0xff]
                  %810 = vst [vmem:[%s796 + $0x90] sm:$0xff] %v809
                  %v811 = vld [vmem:[%s795 + $0x38] sm:$0xff]
                  %812 = vst [vmem:[%s796 + $0xa8] sm:$0xff] %v811
                  %v813 = vld [vmem:[%s795 + $0x40] sm:$0xff]
                  %814 = vst [vmem:[%s796 + $0xc0] sm:$0xff] %v813
                  %v815 = vld [vmem:[%s795 + $0x48] sm:$0xff]
                  %816 = vst [vmem:[%s796 + $0xd8] sm:$0xff] %v815
                  %v817 = vld [vmem:[%s795 + $0x50] sm:$0xff]
                  %818 = vst [vmem:[%s796 + $0xf0] sm:$0xff] %v817
                  %v819 = vld [vmem:[%s795 + $0x58] sm:$0xff]
                  %820 = vst [vmem:[%s796 + $0x108] sm:$0xff] %v819
                  %v821 = vld [vmem:[%s795 + $0x60] sm:$0xff]
                  %822 = vst [vmem:[%s796 + $0x120] sm:$0xff] %v821
                  %v823 = vld [vmem:[%s795 + $0x68] sm:$0xff]
                  %824 = vst [vmem:[%s796 + $0x138] sm:$0xff] %v823
                  %v825 = vld [vmem:[%s795 + $0x70] sm:$0xff]
                  %826 = vst [vmem:[%s796 + $0x150] sm:$0xff] %v825
                  %v827 = vld [vmem:[%s795 + $0x78] sm:$0xff]
                  %828 = vst [vmem:[%s796 + $0x168] sm:$0xff] %v827
                $region72: #{gemma_decoder_layer.5} parent=66 // loop_footer
                  %s794 = sadd.s32 1, %s790
                $region73: #{gemma_decoder_layer.5} parent=66 // loop_footer_branch
                  %789 = sbr.rel target = $region69
                $region74: #{gemma_decoder_layer.5} parent=66 // loop_exit
                  _
              $region67: #{gemma_decoder_layer.5} parent=51 // pred_fallthru
                _
              // Predicated region
              $region75: #{gemma_decoder_layer.5} parent=51 // pred_check
                _
              $region76: #{gemma_decoder_layer.5} parent=51 // pred_check_branch
                %830 = sbr.rel target = $region78
              $region77: #{gemma_decoder_layer.5} parent=51 // pred_region
                _
              $region78: #{gemma_decoder_layer.5} parent=51 // pred_fallthru
                _
            $region52: #{gemma_decoder_layer.5} parent=47 // pred_fallthru
              _
            // Predicated region
            $region53: #{gemma_decoder_layer.5} parent=47 // pred_check
              _
            $region54: #{gemma_decoder_layer.5} parent=47 // pred_check_branch
              %745 = sbr.rel target = $region56
            $region55: #{gemma_decoder_layer.5} parent=47 // pred_region
              loop: start=0, step=1, limit=1
              $region57: #{gemma_decoder_layer.5} parent=55 // loop_pre_header
                _
              $region58: #{gemma_decoder_layer.5} parent=55 // loop_header
                %s748 = sphi 0, %s752
                %p749 = scmp.ge.s32.totalorder %s748, 1
                %s753 = sphi %s730, %s730
                %s754 = sphi %s739, %s739
              $region59: #{gemma_decoder_layer.5} parent=55 // loop_header_branch
                %751 = sbr.rel (%p749) target = $region63
              $region60: #{gemma_decoder_layer.5} parent=55 // loop_body
                %v755 = vld [vmem:[%s753] sm:$0xff]
                %756 = vst [vmem:[%s754] sm:$0xff] %v755
                %v757 = vld [vmem:[%s753 + $0x8] sm:$0xff]
                %758 = vst [vmem:[%s754 + $0x18] sm:$0xff] %v757
                %v759 = vld [vmem:[%s753 + $0x10] sm:$0xff]
                %760 = vst [vmem:[%s754 + $0x30] sm:$0xff] %v759
                %v761 = vld [vmem:[%s753 + $0x18] sm:$0xff]
                %762 = vst [vmem:[%s754 + $0x48] sm:$0xff] %v761
                %v763 = vld [vmem:[%s753 + $0x20] sm:$0xff]
                %764 = vst [vmem:[%s754 + $0x60] sm:$0xff] %v763
                %v765 = vld [vmem:[%s753 + $0x28] sm:$0xff]
                %766 = vst [vmem:[%s754 + $0x78] sm:$0xff] %v765
                %v767 = vld [vmem:[%s753 + $0x30] sm:$0xff]
                %768 = vst [vmem:[%s754 + $0x90] sm:$0xff] %v767
                %v769 = vld [vmem:[%s753 + $0x38] sm:$0xff]
                %770 = vst [vmem:[%s754 + $0xa8] sm:$0xff] %v769
                %v771 = vld [vmem:[%s753 + $0x40] sm:$0xff]
                %772 = vst [vmem:[%s754 + $0xc0] sm:$0xff] %v771
                %v773 = vld [vmem:[%s753 + $0x48] sm:$0xff]
                %774 = vst [vmem:[%s754 + $0xd8] sm:$0xff] %v773
                %v775 = vld [vmem:[%s753 + $0x50] sm:$0xff]
                %776 = vst [vmem:[%s754 + $0xf0] sm:$0xff] %v775
                %v777 = vld [vmem:[%s753 + $0x58] sm:$0xff]
                %778 = vst [vmem:[%s754 + $0x108] sm:$0xff] %v777
                %v779 = vld [vmem:[%s753 + $0x60] sm:$0xff]
                %780 = vst [vmem:[%s754 + $0x120] sm:$0xff] %v779
                %v781 = vld [vmem:[%s753 + $0x68] sm:$0xff]
                %782 = vst [vmem:[%s754 + $0x138] sm:$0xff] %v781
                %v783 = vld [vmem:[%s753 + $0x70] sm:$0xff]
                %784 = vst [vmem:[%s754 + $0x150] sm:$0xff] %v783
                %v785 = vld [vmem:[%s753 + $0x78] sm:$0xff]
                %786 = vst [vmem:[%s754 + $0x168] sm:$0xff] %v785
              $region61: #{gemma_decoder_layer.5} parent=55 // loop_footer
                %s752 = sadd.s32 1, %s748
              $region62: #{gemma_decoder_layer.5} parent=55 // loop_footer_branch
                %747 = sbr.rel target = $region58
              $region63: #{gemma_decoder_layer.5} parent=55 // loop_exit
                _
            $region56: #{gemma_decoder_layer.5} parent=47 // pred_fallthru
              _
          $region48: #{gemma_decoder_layer.5} parent=43 // pred_fallthru
            _
          %831 = vnop
        $region44: #{gemma_decoder_layer.5} parent=31 // pred_fallthru
          _
      $region32: #{gemma_decoder_layer.5} parent=5 // pred_fallthru
        _
      %p832 = scmp.le.s32.totalorder 2, %s12
      // Predicated region
      $region79: #{gemma_decoder_layer.5} parent=5 // pred_check
        %p833 = pneg %p832
      $region80: #{gemma_decoder_layer.5} parent=5 // pred_check_branch
        %835 = sbr.rel (%p833) target = $region82
      $region81: #{gemma_decoder_layer.5} parent=5 // pred_region
        %s836 = ssub.s32 %s12, 2
        // Predicated region
        $region83: #{gemma_decoder_layer.5} parent=81 // pred_check
          %p837 = pneg %p128
        $region84: #{gemma_decoder_layer.5} parent=81 // pred_check_branch
          %839 = sbr.rel (%p837) target = $region86
        $region85: #{gemma_decoder_layer.5} parent=81 // pred_region
          %s840 = sand.u32 %s113, 1
          %s841 = sand.u32 %s113, 1
          %s842 = smul.addr %s841, 128
          %s843 = scalar_lea.vmem [#allocation5], %s842
        $region86: #{gemma_decoder_layer.5} parent=81 // pred_fallthru
          _
      $region82: #{gemma_decoder_layer.5} parent=5 // pred_fallthru
        _
    $region6: #{gemma_decoder_layer.5} parent=1 // loop_footer
      %s16 = sadd.s32 1, %s12
    $region7: #{gemma_decoder_layer.5} parent=1 // loop_footer_branch
      %11 = sbr.rel target = $region3
    $region8: #{gemma_decoder_layer.5} parent=1 // loop_exit
      _
    %844 = vsyncpa [#allocation4], 1
    %s845 = scalar_lea.sflag [#allocation4], 1
    %846 = vsyncpa %s845, 1

// kernel: gemma_decoder_layer.7
$region0: #{gemma_decoder_layer.7}
  #allocation0 [shape = 'u32[]', space=smem, size = 0x4, offset = 0x4, fixed_abs, tag = 'smem constant byte address 0x4 - core index']
  #allocation1 [shape = 'u32[144,128]{1,0:T(1,128)}', space=vmem, size = 0x12000, scoped, tag = 'internal scratch']
  #allocation2 [shape = 'f32[128,128]{1,0:T(8,128)}', space=vmem, size = 0x10000, scoped, tag = 'scratch operand']
  %s0 = inlined_call_operand.vmem [shape: bf16[128,512], index: 0, kind: input, shape index: {}]
  %s1 = inlined_call_operand.vmem [shape: bf16[512,128], index: 1, kind: input, shape index: {}]
  %s2 = inlined_call_operand.vmem [shape: f32[128,128], index: 2, kind: input, shape index: {}]
  %s3 = inlined_call_operand.vmem [shape: f32[128,128], index: 3, kind: output, shape index: {}]
  %s4 = sld [smem:[#allocation0]]
  $region30: #{gemma_decoder_layer.7} parent=0
    _
  %s6 = ssub.s32 1, %s4
  %s7 = scalar_select 0, %s6, %s4
  // Predicated region
  $region2: #{gemma_decoder_layer.7} parent=0 // pred_check
    _
  $region3: #{gemma_decoder_layer.7} parent=0 // pred_check_branch
    %9 = sbr.rel (0) target = $region5
  $region4: #{gemma_decoder_layer.7} parent=0 // pred_region
    _
  $region5: #{gemma_decoder_layer.7} parent=0 // pred_fallthru
    _
  // Predicated region
  $region6: #{gemma_decoder_layer.7} parent=0 // pred_check
    _
  $region7: #{gemma_decoder_layer.7} parent=0 // pred_check_branch
    %11 = sbr.rel (0) target = $region9
  $region8: #{gemma_decoder_layer.7} parent=0 // pred_region
    _
  $region9: #{gemma_decoder_layer.7} parent=0 // pred_fallthru
    _
  // Predicated region
  $region10: #{gemma_decoder_layer.7} parent=0 // pred_check
    _
  $region11: #{gemma_decoder_layer.7} parent=0 // pred_check_branch
    %13 = sbr.rel (0) target = $region13
  $region12: #{gemma_decoder_layer.7} parent=0 // pred_region
    _
  $region13: #{gemma_decoder_layer.7} parent=0 // pred_fallthru
    _
  %p15 = scmp.eq.s32.totalorder 0, 0
  // Predicated region
  $region14: #{gemma_decoder_layer.7} parent=0 // pred_check
    %p16 = pneg %p15
  $region15: #{gemma_decoder_layer.7} parent=0 // pred_check_branch
    %18 = sbr.rel (%p16) target = $region17
  $region16: #{gemma_decoder_layer.7} parent=0 // pred_region
    %19 = vst [vmem:[#allocation2] sm:$0xff] 0.0
    %20 = vst [vmem:[#allocation2 + $0x8] sm:$0xff] 0.0
    %21 = vst [vmem:[#allocation2 + $0x10] sm:$0xff] 0.0
    %22 = vst [vmem:[#allocation2 + $0x18] sm:$0xff] 0.0
    %23 = vst [vmem:[#allocation2 + $0x20] sm:$0xff] 0.0
    %24 = vst [vmem:[#allocation2 + $0x28] sm:$0xff] 0.0
    %25 = vst [vmem:[#allocation2 + $0x30] sm:$0xff] 0.0
    %26 = vst [vmem:[#allocation2 + $0x38] sm:$0xff] 0.0
    %27 = vst [vmem:[#allocation2 + $0x40] sm:$0xff] 0.0
    %28 = vst [vmem:[#allocation2 + $0x48] sm:$0xff] 0.0
    %29 = vst [vmem:[#allocation2 + $0x50] sm:$0xff] 0.0
    %30 = vst [vmem:[#allocation2 + $0x58] sm:$0xff] 0.0
    %31 = vst [vmem:[#allocation2 + $0x60] sm:$0xff] 0.0
    %32 = vst [vmem:[#allocation2 + $0x68] sm:$0xff] 0.0
    %33 = vst [vmem:[#allocation2 + $0x70] sm:$0xff] 0.0
    %34 = vst [vmem:[#allocation2 + $0x78] sm:$0xff] 0.0
  $region17: #{gemma_decoder_layer.7} parent=0 // pred_fallthru
    _
  %v35 = vld [vmem:[#allocation2] sm:$0xff]
  %v36 = vld [vmem:[#allocation2 + $0x8] sm:$0xff]
  %v37 = vld [vmem:[#allocation2 + $0x10] sm:$0xff]
  %v38 = vld [vmem:[#allocation2 + $0x18] sm:$0xff]
  %v39 = vld [vmem:[#allocation2 + $0x20] sm:$0xff]
  %v40 = vld [vmem:[#allocation2 + $0x28] sm:$0xff]
  %v41 = vld [vmem:[#allocation2 + $0x30] sm:$0xff]
  %v42 = vld [vmem:[#allocation2 + $0x38] sm:$0xff]
  %v43 = vld [vmem:[#allocation2 + $0x40] sm:$0xff]
  %v44 = vld [vmem:[#allocation2 + $0x48] sm:$0xff]
  %v45 = vld [vmem:[#allocation2 + $0x50] sm:$0xff]
  %v46 = vld [vmem:[#allocation2 + $0x58] sm:$0xff]
  %v47 = vld [vmem:[#allocation2 + $0x60] sm:$0xff]
  %v48 = vld [vmem:[#allocation2 + $0x68] sm:$0xff]
  %v49 = vld [vmem:[#allocation2 + $0x70] sm:$0xff]
  %v50 = vld [vmem:[#allocation2 + $0x78] sm:$0xff]
  %v51 = vld [vmem:[%s0] sm:$0xff]
  %v52 = vld [vmem:[%s0 + $0x8] sm:$0xff]
  %v53 = vld [vmem:[%s0 + $0x10] sm:$0xff]
  %v54 = vld [vmem:[%s0 + $0x18] sm:$0xff]
  %v55 = vld [vmem:[%s0 + $0x20] sm:$0xff]
  %v56 = vld [vmem:[%s0 + $0x28] sm:$0xff]
  %v57 = vld [vmem:[%s0 + $0x30] sm:$0xff]
  %v58 = vld [vmem:[%s0 + $0x38] sm:$0xff]
  %v59 = vld [vmem:[%s0 + $0x40] sm:$0xff]
  %v60 = vld [vmem:[%s0 + $0x48] sm:$0xff]
  %v61 = vld [vmem:[%s0 + $0x50] sm:$0xff]
  %v62 = vld [vmem:[%s0 + $0x58] sm:$0xff]
  %v63 = vld [vmem:[%s0 + $0x60] sm:$0xff]
  %v64 = vld [vmem:[%s0 + $0x68] sm:$0xff]
  %v65 = vld [vmem:[%s0 + $0x70] sm:$0xff]
  %v66 = vld [vmem:[%s0 + $0x78] sm:$0xff]
  %v67 = vld [vmem:[%s0 + $0x80] sm:$0xff]
  %v68 = vld [vmem:[%s0 + $0x88] sm:$0xff]
  %v69 = vld [vmem:[%s0 + $0x90] sm:$0xff]
  %v70 = vld [vmem:[%s0 + $0x98] sm:$0xff]
  %v71 = vld [vmem:[%s0 + $0xa0] sm:$0xff]
  %v72 = vld [vmem:[%s0 + $0xa8] sm:$0xff]
  %v73 = vld [vmem:[%s0 + $0xb0] sm:$0xff]
  %v74 = vld [vmem:[%s0 + $0xb8] sm:$0xff]
  %v75 = vld [vmem:[%s0 + $0xc0] sm:$0xff]
  %v76 = vld [vmem:[%s0 + $0xc8] sm:$0xff]
  %v77 = vld [vmem:[%s0 + $0xd0] sm:$0xff]
  %v78 = vld [vmem:[%s0 + $0xd8] sm:$0xff]
  %v79 = vld [vmem:[%s0 + $0xe0] sm:$0xff]
  %v80 = vld [vmem:[%s0 + $0xe8] sm:$0xff]
  %v81 = vld [vmem:[%s0 + $0xf0] sm:$0xff]
  %v82 = vld [vmem:[%s0 + $0xf8] sm:$0xff]
  %v83 = vld [vmem:[%s1] sm:$0xf]
  %v84 = vld [vmem:[%s1 + $0x4] sm:$0xf]
  %v85 = vld [vmem:[%s1 + $0x8] sm:$0xf]
  %v86 = vld [vmem:[%s1 + $0xc] sm:$0xf]
  %v87 = vld [vmem:[%s1 + $0x10] sm:$0xf]
  %v88 = vld [vmem:[%s1 + $0x14] sm:$0xf]
  %v89 = vld [vmem:[%s1 + $0x18] sm:$0xf]
  %v90 = vld [vmem:[%s1 + $0x1c] sm:$0xf]
  %v91 = vld [vmem:[%s1 + $0x20] sm:$0xf]
  %v92 = vld [vmem:[%s1 + $0x24] sm:$0xf]
  %v93 = vld [vmem:[%s1 + $0x28] sm:$0xf]
  %v94 = vld [vmem:[%s1 + $0x2c] sm:$0xf]
  %v95 = vld [vmem:[%s1 + $0x30] sm:$0xf]
  %v96 = vld [vmem:[%s1 + $0x34] sm:$0xf]
  %v97 = vld [vmem:[%s1 + $0x38] sm:$0xf]
  %v98 = vld [vmem:[%s1 + $0x3c] sm:$0xf]
  %v99 = vld [vmem:[%s1 + $0x40] sm:$0xf]
  %v100 = vld [vmem:[%s1 + $0x44] sm:$0xf]
  %v101 = vld [vmem:[%s1 + $0x48] sm:$0xf]
  %v102 = vld [vmem:[%s1 + $0x4c] sm:$0xf]
  %v103 = vld [vmem:[%s1 + $0x50] sm:$0xf]
  %v104 = vld [vmem:[%s1 + $0x54] sm:$0xf]
  %v105 = vld [vmem:[%s1 + $0x58] sm:$0xf]
  %v106 = vld [vmem:[%s1 + $0x5c] sm:$0xf]
  %v107 = vld [vmem:[%s1 + $0x60] sm:$0xf]
  %v108 = vld [vmem:[%s1 + $0x64] sm:$0xf]
  %v109 = vld [vmem:[%s1 + $0x68] sm:$0xf]
  %v110 = vld [vmem:[%s1 + $0x6c] sm:$0xf]
  %v111 = vld [vmem:[%s1 + $0x70] sm:$0xf]
  %v112 = vld [vmem:[%s1 + $0x74] sm:$0xf]
  %v113 = vld [vmem:[%s1 + $0x78] sm:$0xf]
  %v114 = vld [vmem:[%s1 + $0x7c] sm:$0xf]
  %v115 = vld [vmem:[%s1 + $0x80] sm:$0xf]
  %v116 = vld [vmem:[%s1 + $0x84] sm:$0xf]
  %v117 = vld [vmem:[%s1 + $0x88] sm:$0xf]
  %v118 = vld [vmem:[%s1 + $0x8c] sm:$0xf]
  %v119 = vld [vmem:[%s1 + $0x90] sm:$0xf]
  %v120 = vld [vmem:[%s1 + $0x94] sm:$0xf]
  %v121 = vld [vmem:[%s1 + $0x98] sm:$0xf]
  %v122 = vld [vmem:[%s1 + $0x9c] sm:$0xf]
  %v123 = vld [vmem:[%s1 + $0xa0] sm:$0xf]
  %v124 = vld [vmem:[%s1 + $0xa4] sm:$0xf]
  %v125 = vld [vmem:[%s1 + $0xa8] sm:$0xf]
  %v126 = vld [vmem:[%s1 + $0xac] sm:$0xf]
  %v127 = vld [vmem:[%s1 + $0xb0] sm:$0xf]
  %v128 = vld [vmem:[%s1 + $0xb4] sm:$0xf]
  %v129 = vld [vmem:[%s1 + $0xb8] sm:$0xf]
  %v130 = vld [vmem:[%s1 + $0xbc] sm:$0xf]
  %v131 = vld [vmem:[%s1 + $0xc0] sm:$0xf]
  %v132 = vld [vmem:[%s1 + $0xc4] sm:$0xf]
  %v133 = vld [vmem:[%s1 + $0xc8] sm:$0xf]
  %v134 = vld [vmem:[%s1 + $0xcc] sm:$0xf]
  %v135 = vld [vmem:[%s1 + $0xd0] sm:$0xf]
  %v136 = vld [vmem:[%s1 + $0xd4] sm:$0xf]
  %v137 = vld [vmem:[%s1 + $0xd8] sm:$0xf]
  %v138 = vld [vmem:[%s1 + $0xdc] sm:$0xf]
  %v139 = vld [vmem:[%s1 + $0xe0] sm:$0xf]
  %v140 = vld [vmem:[%s1 + $0xe4] sm:$0xf]
  %v141 = vld [vmem:[%s1 + $0xe8] sm:$0xf]
  %v142 = vld [vmem:[%s1 + $0xec] sm:$0xf]
  %v143 = vld [vmem:[%s1 + $0xf0] sm:$0xf]
  %v144 = vld [vmem:[%s1 + $0xf4] sm:$0xf]
  %v145 = vld [vmem:[%s1 + $0xf8] sm:$0xf]
  %v146 = vld [vmem:[%s1 + $0xfc] sm:$0xf]
  %v179 = vunpack.c.l.b16 %v51
  %v180 = vunpack.c.h.b16 %v51
  %v181 = vunpack.c.l.b16 %v52
  %v182 = vunpack.c.h.b16 %v52
  %v183 = vunpack.c.l.b16 %v53
  %v184 = vunpack.c.h.b16 %v53
  %v185 = vunpack.c.l.b16 %v54
  %v186 = vunpack.c.h.b16 %v54
  %v187 = vunpack.c.l.b16 %v55
  %v188 = vunpack.c.h.b16 %v55
  %v189 = vunpack.c.l.b16 %v56
  %v190 = vunpack.c.h.b16 %v56
  %v191 = vunpack.c.l.b16 %v57
  %v192 = vunpack.c.h.b16 %v57
  %v193 = vunpack.c.l.b16 %v58
  %v194 = vunpack.c.h.b16 %v58
  %v195 = vunpack.c.l.b16 %v59
  %v196 = vunpack.c.h.b16 %v59
  %v197 = vunpack.c.l.b16 %v60
  %v198 = vunpack.c.h.b16 %v60
  %v199 = vunpack.c.l.b16 %v61
  %v200 = vunpack.c.h.b16 %v61
  %v201 = vunpack.c.l.b16 %v62
  %v202 = vunpack.c.h.b16 %v62
  %v203 = vunpack.c.l.b16 %v63
  %v204 = vunpack.c.h.b16 %v63
  %v205 = vunpack.c.l.b16 %v64
  %v206 = vunpack.c.h.b16 %v64
  %v207 = vunpack.c.l.b16 %v65
  %v208 = vunpack.c.h.b16 %v65
  %v209 = vunpack.c.l.b16 %v66
  %v210 = vunpack.c.h.b16 %v66
  %v211 = vunpack.c.l.b16 %v67
  %v212 = vunpack.c.h.b16 %v67
  %v213 = vunpack.c.l.b16 %v68
  %v214 = vunpack.c.h.b16 %v68
  %v215 = vunpack.c.l.b16 %v69
  %v216 = vunpack.c.h.b16 %v69
  %v217 = vunpack.c.l.b16 %v70
  %v218 = vunpack.c.h.b16 %v70
  %v219 = vunpack.c.l.b16 %v71
  %v220 = vunpack.c.h.b16 %v71
  %v221 = vunpack.c.l.b16 %v72
  %v222 = vunpack.c.h.b16 %v72
  %v223 = vunpack.c.l.b16 %v73
  %v224 = vunpack.c.h.b16 %v73
  %v225 = vunpack.c.l.b16 %v74
  %v226 = vunpack.c.h.b16 %v74
  %v227 = vunpack.c.l.b16 %v75
  %v228 = vunpack.c.h.b16 %v75
  %v229 = vunpack.c.l.b16 %v76
  %v230 = vunpack.c.h.b16 %v76
  %v231 = vunpack.c.l.b16 %v77
  %v232 = vunpack.c.h.b16 %v77
  %v233 = vunpack.c.l.b16 %v78
  %v234 = vunpack.c.h.b16 %v78
  %v235 = vunpack.c.l.b16 %v79
  %v236 = vunpack.c.h.b16 %v79
  %v237 = vunpack.c.l.b16 %v80
  %v238 = vunpack.c.h.b16 %v80
  %v239 = vunpack.c.l.b16 %v81
  %v240 = vunpack.c.h.b16 %v81
  %v241 = vunpack.c.l.b16 %v82
  %v242 = vunpack.c.h.b16 %v82
  %v243 = vpack.c.b16 %v183, %v179
  %v244 = vpack.c.b16 %v184, %v180
  %v245 = vpack.c.b16 %v185, %v181
  %v246 = vpack.c.b16 %v186, %v182
  %v247 = vpack.c.b16 %v191, %v187
  %v248 = vpack.c.b16 %v192, %v188
  %v249 = vpack.c.b16 %v193, %v189
  %v250 = vpack.c.b16 %v194, %v190
  %v251 = vpack.c.b16 %v199, %v195
  %v252 = vpack.c.b16 %v200, %v196
  %v253 = vpack.c.b16 %v201, %v197
  %v254 = vpack.c.b16 %v202, %v198
  %v255 = vpack.c.b16 %v207, %v203
  %v256 = vpack.c.b16 %v208, %v204
  %v257 = vpack.c.b16 %v209, %v205
  %v258 = vpack.c.b16 %v210, %v206
  %v259 = vpack.c.b16 %v215, %v211
  %v260 = vpack.c.b16 %v216, %v212
  %v261 = vpack.c.b16 %v217, %v213
  %v262 = vpack.c.b16 %v218, %v214
  %v263 = vpack.c.b16 %v223, %v219
  %v264 = vpack.c.b16 %v224, %v220
  %v265 = vpack.c.b16 %v225, %v221
  %v266 = vpack.c.b16 %v226, %v222
  %v267 = vpack.c.b16 %v231, %v227
  %v268 = vpack.c.b16 %v232, %v228
  %v269 = vpack.c.b16 %v233, %v229
  %v270 = vpack.c.b16 %v234, %v230
  %v271 = vpack.c.b16 %v239, %v235
  %v272 = vpack.c.b16 %v240, %v236
  %v273 = vpack.c.b16 %v241, %v237
  %v274 = vpack.c.b16 %v242, %v238
  %v371 = vunpack.c.l.b16 %v83
  %v372 = vunpack.c.l.b16 %v84
  %v373 = vunpack.c.l.b16 %v85
  %v374 = vunpack.c.l.b16 %v86
  %v375 = vunpack.c.l.b16 %v87
  %v376 = vunpack.c.l.b16 %v88
  %v377 = vunpack.c.l.b16 %v89
  %v378 = vunpack.c.l.b16 %v90
  %v379 = vunpack.c.l.b16 %v91
  %v380 = vunpack.c.l.b16 %v92
  %v381 = vunpack.c.l.b16 %v93
  %v382 = vunpack.c.l.b16 %v94
  %v383 = vunpack.c.l.b16 %v95
  %v384 = vunpack.c.l.b16 %v96
  %v385 = vunpack.c.l.b16 %v97
  %v386 = vunpack.c.l.b16 %v98
  %v387 = vunpack.c.l.b16 %v99
  %v388 = vunpack.c.l.b16 %v100
  %v389 = vunpack.c.l.b16 %v101
  %v390 = vunpack.c.l.b16 %v102
  %v391 = vunpack.c.l.b16 %v103
  %v392 = vunpack.c.l.b16 %v104
  %v393 = vunpack.c.l.b16 %v105
  %v394 = vunpack.c.l.b16 %v106
  %v395 = vunpack.c.l.b16 %v107
  %v396 = vunpack.c.l.b16 %v108
  %v397 = vunpack.c.l.b16 %v109
  %v398 = vunpack.c.l.b16 %v110
  %v399 = vunpack.c.l.b16 %v111
  %v400 = vunpack.c.l.b16 %v112
  %v401 = vunpack.c.l.b16 %v113
  %v402 = vunpack.c.l.b16 %v114
  %v403 = vunpack.c.l.b16 %v115
  %v404 = vunpack.c.l.b16 %v116
  %v405 = vunpack.c.l.b16 %v117
  %v406 = vunpack.c.l.b16 %v118
  %v407 = vunpack.c.l.b16 %v119
  %v408 = vunpack.c.l.b16 %v120
  %v409 = vunpack.c.l.b16 %v121
  %v410 = vunpack.c.l.b16 %v122
  %v411 = vunpack.c.l.b16 %v123
  %v412 = vunpack.c.l.b16 %v124
  %v413 = vunpack.c.l.b16 %v125
  %v414 = vunpack.c.l.b16 %v126
  %v415 = vunpack.c.l.b16 %v127
  %v416 = vunpack.c.l.b16 %v128
  %v417 = vunpack.c.l.b16 %v129
  %v418 = vunpack.c.l.b16 %v130
  %v419 = vunpack.c.l.b16 %v131
  %v420 = vunpack.c.l.b16 %v132
  %v421 = vunpack.c.l.b16 %v133
  %v422 = vunpack.c.l.b16 %v134
  %v423 = vunpack.c.l.b16 %v135
  %v424 = vunpack.c.l.b16 %v136
  %v425 = vunpack.c.l.b16 %v137
  %v426 = vunpack.c.l.b16 %v138
  %v427 = vunpack.c.l.b16 %v139
  %v428 = vunpack.c.l.b16 %v140
  %v429 = vunpack.c.l.b16 %v141
  %v430 = vunpack.c.l.b16 %v142
  %v431 = vunpack.c.l.b16 %v143
  %v432 = vunpack.c.l.b16 %v144
  %v433 = vunpack.c.l.b16 %v145
  %v434 = vunpack.c.l.b16 %v146
  %v435 = vpack.c.b16 %v372, %v371
  %v436 = vpack.c.b16 %v374, %v373
  %v437 = vpack.c.b16 %v376, %v375
  %v438 = vpack.c.b16 %v378, %v377
  %v439 = vpack.c.b16 %v380, %v379
  %v440 = vpack.c.b16 %v382, %v381
  %v441 = vpack.c.b16 %v384, %v383
  %v442 = vpack.c.b16 %v386, %v385
  %v443 = vpack.c.b16 %v388, %v387
  %v444 = vpack.c.b16 %v390, %v389
  %v445 = vpack.c.b16 %v392, %v391
  %v446 = vpack.c.b16 %v394, %v393
  %v447 = vpack.c.b16 %v396, %v395
  %v448 = vpack.c.b16 %v398, %v397
  %v449 = vpack.c.b16 %v400, %v399
  %v450 = vpack.c.b16 %v402, %v401
  %v451 = vpack.c.b16 %v404, %v403
  %v452 = vpack.c.b16 %v406, %v405
  %v453 = vpack.c.b16 %v408, %v407
  %v454 = vpack.c.b16 %v410, %v409
  %v455 = vpack.c.b16 %v412, %v411
  %v456 = vpack.c.b16 %v414, %v413
  %v457 = vpack.c.b16 %v416, %v415
  %v458 = vpack.c.b16 %v418, %v417
  %v459 = vpack.c.b16 %v420, %v419
  %v460 = vpack.c.b16 %v422, %v421
  %v461 = vpack.c.b16 %v424, %v423
  %v462 = vpack.c.b16 %v426, %v425
  %v463 = vpack.c.b16 %v428, %v427
  %v464 = vpack.c.b16 %v430, %v429
  %v465 = vpack.c.b16 %v432, %v431
  %v466 = vpack.c.b16 %v434, %v433
  %499 = vmatprep.subr.bf16.mxu0 0
  %500 = vmatpush1.bf16.msra.mxu0 %v435
  %501 = vmatprep.subr.bf16.mxu0 0
  %502 = vmatpush1.bf16.msra.mxu0 %v436
  %503 = vmatprep.subr.bf16.mxu0 0
  %504 = vmatpush1.bf16.msra.mxu0 %v437
  %505 = vmatprep.subr.bf16.mxu0 0
  %506 = vmatpush1.bf16.msra.mxu0 %v438
  %507 = vmatprep.subr.bf16.mxu0 0
  %508 = vmatpush1.bf16.msra.mxu0 %v439
  %509 = vmatprep.subr.bf16.mxu0 0
  %510 = vmatpush1.bf16.msra.mxu0 %v440
  %511 = vmatprep.subr.bf16.mxu0 0
  %512 = vmatpush1.bf16.msra.mxu0 %v441
  %513 = vmatprep.subr.bf16.mxu0 0
  %514 = vmatpush1.bf16.msra.mxu0 %v442
  %515 = vmatprep.subr.bf16.mxu0 0
  %516 = vmatpush1.bf16.msra.mxu0 %v443
  %517 = vmatprep.subr.bf16.mxu0 0
  %518 = vmatpush1.bf16.msra.mxu0 %v444
  %519 = vmatprep.subr.bf16.mxu0 0
  %520 = vmatpush1.bf16.msra.mxu0 %v445
  %521 = vmatprep.subr.bf16.mxu0 0
  %522 = vmatpush1.bf16.msra.mxu0 %v446
  %523 = vmatprep.subr.bf16.mxu0 0
  %524 = vmatpush1.bf16.msra.mxu0 %v447
  %525 = vmatprep.subr.bf16.mxu0 0
  %526 = vmatpush1.bf16.msra.mxu0 %v448
  %527 = vmatprep.subr.bf16.mxu0 0
  %528 = vmatpush1.bf16.msra.mxu0 %v449
  %529 = vmatprep.subr.bf16.mxu0 0
  %530 = vmatpush1.bf16.msra.mxu0 %v450
  %531 = vmatprep.mubr.bf16.mxu0 %v244
  %532 = vmatmul.mubr.bf16.gmra.mrb[0].mxu0 %v243
  %v533 = vpop.f32.mrb[0].mxu0
  %v534 = vadd.f32 0.0, %v533
  %v535 = vpop.f32.mrb[0].mxu0
  %v536 = vpop.f32.mrb[0].mxu0
  %v537 = vadd.f32 0.0, %v536
  %v538 = vpop.f32.mrb[0].mxu0
  %539 = vmatprep.mubr.bf16.mxu0 %v248
  %540 = vmatmul.mubr.bf16.gmra.mrb[0].mxu0 %v247
  %v541 = vpop.f32.mrb[0].mxu0
  %v542 = vadd.f32 0.0, %v541
  %v543 = vpop.f32.mrb[0].mxu0
  %v544 = vpop.f32.mrb[0].mxu0
  %v545 = vadd.f32 0.0, %v544
  %v546 = vpop.f32.mrb[0].mxu0
  %547 = vmatprep.mubr.bf16.mxu0 %v252
  %548 = vmatmul.mubr.bf16.gmra.mrb[0].mxu0 %v251
  %v549 = vpop.f32.mrb[0].mxu0
  %v550 = vadd.f32 0.0, %v549
  %v551 = vpop.f32.mrb[0].mxu0
  %v552 = vpop.f32.mrb[0].mxu0
  %v553 = vadd.f32 0.0, %v552
  %v554 = vpop.f32.mrb[0].mxu0
  %555 = vmatprep.mubr.bf16.mxu0 %v256
  %556 = vmatmul.mubr.bf16.gmra.mrb[0].mxu0 %v255
  %v557 = vpop.f32.mrb[0].mxu0
  %v558 = vadd.f32 0.0, %v557
  %v559 = vpop.f32.mrb[0].mxu0
  %v560 = vpop.f32.mrb[0].mxu0
  %v561 = vadd.f32 0.0, %v560
  %v562 = vpop.f32.mrb[0].mxu0
  %563 = vmatprep.mubr.bf16.mxu0 %v260
  %564 = vmatmul.mubr.bf16.gmra.mrb[0].mxu0 %v259
  %v565 = vpop.f32.mrb[0].mxu0
  %v566 = vadd.f32 0.0, %v565
  %v567 = vpop.f32.mrb[0].mxu0
  %v568 = vpop.f32.mrb[0].mxu0
  %v569 = vadd.f32 0.0, %v568
  %v570 = vpop.f32.mrb[0].mxu0
  %571 = vmatprep.mubr.bf16.mxu0 %v264
  %572 = vmatmul.mubr.bf16.gmra.mrb[0].mxu0 %v263
  %v573 = vpop.f32.mrb[0].mxu0
  %v574 = vadd.f32 0.0, %v573
  %v575 = vpop.f32.mrb[0].mxu0
  %v576 = vpop.f32.mrb[0].mxu0
  %v577 = vadd.f32 0.0, %v576
  %v578 = vpop.f32.mrb[0].mxu0
  %579 = vmatprep.mubr.bf16.mxu0 %v268
  %580 = vmatmul.mubr.bf16.gmra.mrb[0].mxu0 %v267
  %v581 = vpop.f32.mrb[0].mxu0
  %v582 = vadd.f32 0.0, %v581
  %v583 = vpop.f32.mrb[0].mxu0
  %v584 = vpop.f32.mrb[0].mxu0
  %v585 = vadd.f32 0.0, %v584
  %v586 = vpop.f32.mrb[0].mxu0
  %587 = vmatprep.mubr.bf16.mxu0 %v272
  %588 = vmatmul.mubr.bf16.gmra.mrb[0].mxu0 %v271
  %v589 = vpop.f32.mrb[0].mxu0
  %v590 = vadd.f32 0.0, %v589
  %v591 = vpop.f32.mrb[0].mxu0
  %v592 = vpop.f32.mrb[0].mxu0
  %v593 = vadd.f32 0.0, %v592
  %v594 = vpop.f32.mrb[0].mxu0
  %595 = vdwg.mxu0
  %596 = vmatprep.subr.bf16.mxu0 0
  %597 = vmatpush1.bf16.msra.mxu0 %v451
  %598 = vmatprep.subr.bf16.mxu0 0
  %599 = vmatpush1.bf16.msra.mxu0 %v452
  %600 = vmatprep.subr.bf16.mxu0 0
  %601 = vmatpush1.bf16.msra.mxu0 %v453
  %602 = vmatprep.subr.bf16.mxu0 0
  %603 = vmatpush1.bf16.msra.mxu0 %v454
  %604 = vmatprep.subr.bf16.mxu0 0
  %605 = vmatpush1.bf16.msra.mxu0 %v455
  %606 = vmatprep.subr.bf16.mxu0 0
  %607 = vmatpush1.bf16.msra.mxu0 %v456
  %608 = vmatprep.subr.bf16.mxu0 0
  %609 = vmatpush1.bf16.msra.mxu0 %v457
  %610 = vmatprep.subr.bf16.mxu0 0
  %611 = vmatpush1.bf16.msra.mxu0 %v458
  %612 = vmatprep.subr.bf16.mxu0 0
  %613 = vmatpush1.bf16.msra.mxu0 %v459
  %614 = vmatprep.subr.bf16.mxu0 0
  %615 = vmatpush1.bf16.msra.mxu0 %v460
  %616 = vmatprep.subr.bf16.mxu0 0
  %617 = vmatpush1.bf16.msra.mxu0 %v461
  %618 = vmatprep.subr.bf16.mxu0 0
  %619 = vmatpush1.bf16.msra.mxu0 %v462
  %620 = vmatprep.subr.bf16.mxu0 0
  %621 = vmatpush1.bf16.msra.mxu0 %v463
  %622 = vmatprep.subr.bf16.mxu0 0
  %623 = vmatpush1.bf16.msra.mxu0 %v464
  %624 = vmatprep.subr.bf16.mxu0 0
  %625 = vmatpush1.bf16.msra.mxu0 %v465
  %626 = vmatprep.subr.bf16.mxu0 0
  %627 = vmatpush1.bf16.msra.mxu0 %v466
  %628 = vmatprep.mubr.bf16.mxu0 %v246
  %629 = vmatmul.mubr.bf16.gmra.mrb[0].mxu0 %v245
  %v630 = vpop.f32.mrb[0].mxu0
  %v631 = vadd.f32 %v534, %v630
  %v632 = vpop.f32.mrb[0].mxu0
  %v633 = vpop.f32.mrb[0].mxu0
  %v634 = vadd.f32 %v537, %v633
  %v635 = vpop.f32.mrb[0].mxu0
  %636 = vmatprep.mubr.bf16.mxu0 %v250
  %637 = vmatmul.mubr.bf16.gmra.mrb[0].mxu0 %v249
  %v638 = vpop.f32.mrb[0].mxu0
  %v639 = vadd.f32 %v542, %v638
  %v640 = vpop.f32.mrb[0].mxu0
  %v641 = vpop.f32.mrb[0].mxu0
  %v642 = vadd.f32 %v545, %v641
  %v643 = vpop.f32.mrb[0].mxu0
  %644 = vmatprep.mubr.bf16.mxu0 %v254
  %645 = vmatmul.mubr.bf16.gmra.mrb[0].mxu0 %v253
  %v646 = vpop.f32.mrb[0].mxu0
  %v647 = vadd.f32 %v550, %v646
  %v648 = vpop.f32.mrb[0].mxu0
  %v649 = vpop.f32.mrb[0].mxu0
  %v650 = vadd.f32 %v553, %v649
  %v651 = vpop.f32.mrb[0].mxu0
  %652 = vmatprep.mubr.bf16.mxu0 %v258
  %653 = vmatmul.mubr.bf16.gmra.mrb[0].mxu0 %v257
  %v654 = vpop.f32.mrb[0].mxu0
  %v655 = vadd.f32 %v558, %v654
  %v656 = vpop.f32.mrb[0].mxu0
  %v657 = vpop.f32.mrb[0].mxu0
  %v658 = vadd.f32 %v561, %v657
  %v659 = vpop.f32.mrb[0].mxu0
  %660 = vmatprep.mubr.bf16.mxu0 %v262
  %661 = vmatmul.mubr.bf16.gmra.mrb[0].mxu0 %v261
  %v662 = vpop.f32.mrb[0].mxu0
  %v663 = vadd.f32 %v566, %v662
  %v664 = vpop.f32.mrb[0].mxu0
  %v665 = vpop.f32.mrb[0].mxu0
  %v666 = vadd.f32 %v569, %v665
  %v667 = vpop.f32.mrb[0].mxu0
  %668 = vmatprep.mubr.bf16.mxu0 %v266
  %669 = vmatmul.mubr.bf16.gmra.mrb[0].mxu0 %v265
  %v670 = vpop.f32.mrb[0].mxu0
  %v671 = vadd.f32 %v574, %v670
  %v672 = vpop.f32.mrb[0].mxu0
  %v673 = vpop.f32.mrb[0].mxu0
  %v674 = vadd.f32 %v577, %v673
  %v675 = vpop.f32.mrb[0].mxu0
  %676 = vmatprep.mubr.bf16.mxu0 %v270
  %677 = vmatmul.mubr.bf16.gmra.mrb[0].mxu0 %v269
  %v678 = vpop.f32.mrb[0].mxu0
  %v679 = vadd.f32 %v582, %v678
  %v680 = vpop.f32.mrb[0].mxu0
  %v681 = vpop.f32.mrb[0].mxu0
  %v682 = vadd.f32 %v585, %v681
  %v683 = vpop.f32.mrb[0].mxu0
  %684 = vmatprep.mubr.bf16.mxu0 %v274
  %685 = vmatmul.mubr.bf16.gmra.mrb[0].mxu0 %v273
  %v686 = vpop.f32.mrb[0].mxu0
  %v687 = vadd.f32 %v590, %v686
  %v688 = vpop.f32.mrb[0].mxu0
  %v689 = vpop.f32.mrb[0].mxu0
  %v690 = vadd.f32 %v593, %v689
  %v691 = vpop.f32.mrb[0].mxu0
  %692 = vdwg.mxu0
  %v693 = vadd.f32 %v35, %v631
  %v694 = vadd.f32 %v36, %v634
  %v695 = vadd.f32 %v37, %v639
  %v696 = vadd.f32 %v38, %v642
  %v697 = vadd.f32 %v39, %v647
  %v698 = vadd.f32 %v40, %v650
  %v699 = vadd.f32 %v41, %v655
  %v700 = vadd.f32 %v42, %v658
  %v701 = vadd.f32 %v43, %v663
  %v702 = vadd.f32 %v44, %v666
  %v703 = vadd.f32 %v45, %v671
  %v704 = vadd.f32 %v46, %v674
  %v705 = vadd.f32 %v47, %v679
  %v706 = vadd.f32 %v48, %v682
  %v707 = vadd.f32 %v49, %v687
  %v708 = vadd.f32 %v50, %v690
  %709 = vst [vmem:[#allocation2] sm:$0xff] %v693
  %710 = vst [vmem:[#allocation2 + $0x8] sm:$0xff] %v694
  %711 = vst [vmem:[#allocation2 + $0x10] sm:$0xff] %v695
  %712 = vst [vmem:[#allocation2 + $0x18] sm:$0xff] %v696
  %713 = vst [vmem:[#allocation2 + $0x20] sm:$0xff] %v697
  %714 = vst [vmem:[#allocation2 + $0x28] sm:$0xff] %v698
  %715 = vst [vmem:[#allocation2 + $0x30] sm:$0xff] %v699
  %716 = vst [vmem:[#allocation2 + $0x38] sm:$0xff] %v700
  %717 = vst [vmem:[#allocation2 + $0x40] sm:$0xff] %v701
  %718 = vst [vmem:[#allocation2 + $0x48] sm:$0xff] %v702
  %719 = vst [vmem:[#allocation2 + $0x50] sm:$0xff] %v703
  %720 = vst [vmem:[#allocation2 + $0x58] sm:$0xff] %v704
  %721 = vst [vmem:[#allocation2 + $0x60] sm:$0xff] %v705
  %722 = vst [vmem:[#allocation2 + $0x68] sm:$0xff] %v706
  %723 = vst [vmem:[#allocation2 + $0x70] sm:$0xff] %v707
  %724 = vst [vmem:[#allocation2 + $0x78] sm:$0xff] %v708
  // Predicated region
  $region18: #{gemma_decoder_layer.7} parent=0 // pred_check
    %p725 = pneg %p15
  $region19: #{gemma_decoder_layer.7} parent=0 // pred_check_branch
    %727 = sbr.rel (%p725) target = $region21
  $region20: #{gemma_decoder_layer.7} parent=0 // pred_region
    %v728 = vld [vmem:[#allocation2] sm:$0xff]
    %v729 = vld [vmem:[#allocation2 + $0x8] sm:$0xff]
    %v730 = vld [vmem:[#allocation2 + $0x10] sm:$0xff]
    %v731 = vld [vmem:[#allocation2 + $0x18] sm:$0xff]
    %v732 = vld [vmem:[#allocation2 + $0x20] sm:$0xff]
    %v733 = vld [vmem:[#allocation2 + $0x28] sm:$0xff]
    %v734 = vld [vmem:[#allocation2 + $0x30] sm:$0xff]
    %v735 = vld [vmem:[#allocation2 + $0x38] sm:$0xff]
    %v736 = vld [vmem:[#allocation2 + $0x40] sm:$0xff]
    %v737 = vld [vmem:[#allocation2 + $0x48] sm:$0xff]
    %v738 = vld [vmem:[#allocation2 + $0x50] sm:$0xff]
    %v739 = vld [vmem:[#allocation2 + $0x58] sm:$0xff]
    %v740 = vld [vmem:[#allocation2 + $0x60] sm:$0xff]
    %v741 = vld [vmem:[#allocation2 + $0x68] sm:$0xff]
    %v742 = vld [vmem:[#allocation2 + $0x70] sm:$0xff]
    %v743 = vld [vmem:[#allocation2 + $0x78] sm:$0xff]
    %v744 = vld [vmem:[%s2] sm:$0xff]
    %v745 = vld [vmem:[%s2 + $0x8] sm:$0xff]
    %v746 = vld [vmem:[%s2 + $0x10] sm:$0xff]
    %v747 = vld [vmem:[%s2 + $0x18] sm:$0xff]
    %v748 = vld [vmem:[%s2 + $0x20] sm:$0xff]
    %v749 = vld [vmem:[%s2 + $0x28] sm:$0xff]
    %v750 = vld [vmem:[%s2 + $0x30] sm:$0xff]
    %v751 = vld [vmem:[%s2 + $0x38] sm:$0xff]
    %v752 = vld [vmem:[%s2 + $0x40] sm:$0xff]
    %v753 = vld [vmem:[%s2 + $0x48] sm:$0xff]
    %v754 = vld [vmem:[%s2 + $0x50] sm:$0xff]
    %v755 = vld [vmem:[%s2 + $0x58] sm:$0xff]
    %v756 = vld [vmem:[%s2 + $0x60] sm:$0xff]
    %v757 = vld [vmem:[%s2 + $0x68] sm:$0xff]
    %v758 = vld [vmem:[%s2 + $0x70] sm:$0xff]
    %v759 = vld [vmem:[%s2 + $0x78] sm:$0xff]
    %v760 = vadd.f32 %v728, %v744
    %v761 = vadd.f32 %v729, %v745
    %v762 = vadd.f32 %v730, %v746
    %v763 = vadd.f32 %v731, %v747
    %v764 = vadd.f32 %v732, %v748
    %v765 = vadd.f32 %v733, %v749
    %v766 = vadd.f32 %v734, %v750
    %v767 = vadd.f32 %v735, %v751
    %v768 = vadd.f32 %v736, %v752
    %v769 = vadd.f32 %v737, %v753
    %v770 = vadd.f32 %v738, %v754
    %v771 = vadd.f32 %v739, %v755
    %v772 = vadd.f32 %v740, %v756
    %v773 = vadd.f32 %v741, %v757
    %v774 = vadd.f32 %v742, %v758
    %v775 = vadd.f32 %v743, %v759
    %776 = vst [vmem:[%s3] sm:$0xff] %v760
    %777 = vst [vmem:[%s3 + $0x8] sm:$0xff] %v761
    %778 = vst [vmem:[%s3 + $0x10] sm:$0xff] %v762
    %779 = vst [vmem:[%s3 + $0x18] sm:$0xff] %v763
    %780 = vst [vmem:[%s3 + $0x20] sm:$0xff] %v764
    %781 = vst [vmem:[%s3 + $0x28] sm:$0xff] %v765
    %782 = vst [vmem:[%s3 + $0x30] sm:$0xff] %v766
    %783 = vst [vmem:[%s3 + $0x38] sm:$0xff] %v767
    %784 = vst [vmem:[%s3 + $0x40] sm:$0xff] %v768
    %785 = vst [vmem:[%s3 + $0x48] sm:$0xff] %v769
    %786 = vst [vmem:[%s3 + $0x50] sm:$0xff] %v770
    %787 = vst [vmem:[%s3 + $0x58] sm:$0xff] %v771
    %788 = vst [vmem:[%s3 + $0x60] sm:$0xff] %v772
    %789 = vst [vmem:[%s3 + $0x68] sm:$0xff] %v773
    %790 = vst [vmem:[%s3 + $0x70] sm:$0xff] %v774
    %791 = vst [vmem:[%s3 + $0x78] sm:$0xff] %v775
  $region21: #{gemma_decoder_layer.7} parent=0 // pred_fallthru
    _
  // Predicated region
  $region22: #{gemma_decoder_layer.7} parent=0 // pred_check
    _
  $region23: #{gemma_decoder_layer.7} parent=0 // pred_check_branch
    %793 = sbr.rel (0) target = $region25
  $region24: #{gemma_decoder_layer.7} parent=0 // pred_region
    _
  $region25: #{gemma_decoder_layer.7} parent=0 // pred_fallthru
    _
  // Predicated region
  $region26: #{gemma_decoder_layer.7} parent=0 // pred_check
    _
  $region27: #{gemma_decoder_layer.7} parent=0 // pred_check_branch
    %795 = sbr.rel (0) target = $region29
  $region28: #{gemma_decoder_layer.7} parent=0 // pred_region
    _
  $region29: #{gemma_decoder_layer.7} parent=0 // pred_fallthru
    _

// kernel: gemma_decoder_layer.8
$region0: #{gemma_decoder_layer.8}
  #allocation0 [shape = 'u32[]', space=smem, size = 0x4, offset = 0x4, fixed_abs, tag = 'smem constant byte address 0x4 - core index']
  #allocation1 [shape = 'u32[144,128]{1,0:T(1,128)}', space=vmem, size = 0x12000, scoped, tag = 'internal scratch']
  #allocation2 [shape = 'bf16[128,128]{1,0:T(16,128)(2,1)}', space=vmem, size = 0x8000, scoped, tag = 'scratch operand']
  %s0 = inlined_call_operand.vmem [shape: f32[128,128], index: 0, kind: input, shape index: {}]
  %s1 = inlined_call_operand.vmem [shape: f32[1,128], index: 1, kind: input, shape index: {}]
  %s2 = inlined_call_operand.vmem [shape: bf16[128,256], index: 2, kind: input, shape index: {}]
  %s3 = inlined_call_operand.vmem [shape: bf16[128,256], index: 3, kind: input, shape index: {}]
  %s4 = inlined_call_operand.vmem [shape: bf16[128,256], index: 4, kind: output, shape index: {}]
  %s5 = sld [smem:[#allocation0]]
  $region30: #{gemma_decoder_layer.8} parent=0
    _
  %s7 = ssub.s32 1, %s5
  %s8 = scalar_select 0, %s7, %s5
  // Predicated region
  $region2: #{gemma_decoder_layer.8} parent=0 // pred_check
    _
  $region3: #{gemma_decoder_layer.8} parent=0 // pred_check_branch
    %10 = sbr.rel (0) target = $region5
  $region4: #{gemma_decoder_layer.8} parent=0 // pred_region
    _
  $region5: #{gemma_decoder_layer.8} parent=0 // pred_fallthru
    _
  // Predicated region
  $region6: #{gemma_decoder_layer.8} parent=0 // pred_check
    _
  $region7: #{gemma_decoder_layer.8} parent=0 // pred_check_branch
    %12 = sbr.rel (0) target = $region9
  $region8: #{gemma_decoder_layer.8} parent=0 // pred_region
    _
  $region9: #{gemma_decoder_layer.8} parent=0 // pred_fallthru
    _
  // Predicated region
  $region10: #{gemma_decoder_layer.8} parent=0 // pred_check
    _
  $region11: #{gemma_decoder_layer.8} parent=0 // pred_check_branch
    %14 = sbr.rel (0) target = $region13
  $region12: #{gemma_decoder_layer.8} parent=0 // pred_region
    _
  $region13: #{gemma_decoder_layer.8} parent=0 // pred_fallthru
    _
  // Predicated region
  $region14: #{gemma_decoder_layer.8} parent=0 // pred_check
    _
  $region15: #{gemma_decoder_layer.8} parent=0 // pred_check_branch
    %16 = sbr.rel (0) target = $region17
  $region16: #{gemma_decoder_layer.8} parent=0 // pred_region
    _
  $region17: #{gemma_decoder_layer.8} parent=0 // pred_fallthru
    _
  %p18 = scmp.eq.s32.totalorder 0, 0
  // Predicated region
  $region18: #{gemma_decoder_layer.8} parent=0 // pred_check
    %p19 = pneg %p18
  $region19: #{gemma_decoder_layer.8} parent=0 // pred_check_branch
    %21 = sbr.rel (%p19) target = $region21
  $region20: #{gemma_decoder_layer.8} parent=0 // pred_region
    %v22 = vld [vmem:[%s0] sm:$0xff]
    %v23 = vld [vmem:[%s0 + $0x8] sm:$0xff]
    %v24 = vld [vmem:[%s0 + $0x10] sm:$0xff]
    %v25 = vld [vmem:[%s0 + $0x18] sm:$0xff]
    %v26 = vld [vmem:[%s0 + $0x20] sm:$0xff]
    %v27 = vld [vmem:[%s0 + $0x28] sm:$0xff]
    %v28 = vld [vmem:[%s0 + $0x30] sm:$0xff]
    %v29 = vld [vmem:[%s0 + $0x38] sm:$0xff]
    %v30 = vld [vmem:[%s0 + $0x40] sm:$0xff]
    %v31 = vld [vmem:[%s0 + $0x48] sm:$0xff]
    %v32 = vld [vmem:[%s0 + $0x50] sm:$0xff]
    %v33 = vld [vmem:[%s0 + $0x58] sm:$0xff]
    %v34 = vld [vmem:[%s0 + $0x60] sm:$0xff]
    %v35 = vld [vmem:[%s0 + $0x68] sm:$0xff]
    %v36 = vld [vmem:[%s0 + $0x70] sm:$0xff]
    %v37 = vld [vmem:[%s0 + $0x78] sm:$0xff]
    %v38 = vmul.f32 %v22, %v22
    %v39 = vmul.f32 %v23, %v23
    %v40 = vmul.f32 %v24, %v24
    %v41 = vmul.f32 %v25, %v25
    %v42 = vmul.f32 %v26, %v26
    %v43 = vmul.f32 %v27, %v27
    %v44 = vmul.f32 %v28, %v28
    %v45 = vmul.f32 %v29, %v29
    %v46 = vmul.f32 %v30, %v30
    %v47 = vmul.f32 %v31, %v31
    %v48 = vmul.f32 %v32, %v32
    %v49 = vmul.f32 %v33, %v33
    %v50 = vmul.f32 %v34, %v34
    %v51 = vmul.f32 %v35, %v35
    %v52 = vmul.f32 %v36, %v36
    %v53 = vmul.f32 %v37, %v37
    %54 = vadd.xlane.f32.xlu0 %v38
    %v55 = vpop.xlane.xlu0 %54
    %56 = vadd.xlane.f32.xlu0 %v39
    %v57 = vpop.xlane.xlu0 %56
    %58 = vadd.xlane.f32.xlu0 %v40
    %v59 = vpop.xlane.xlu0 %58
    %60 = vadd.xlane.f32.xlu0 %v41
    %v61 = vpop.xlane.xlu0 %60
    %62 = vadd.xlane.f32.xlu0 %v42
    %v63 = vpop.xlane.xlu0 %62
    %64 = vadd.xlane.f32.xlu0 %v43
    %v65 = vpop.xlane.xlu0 %64
    %66 = vadd.xlane.f32.xlu0 %v44
    %v67 = vpop.xlane.xlu0 %66
    %68 = vadd.xlane.f32.xlu0 %v45
    %v69 = vpop.xlane.xlu0 %68
    %70 = vadd.xlane.f32.xlu0 %v46
    %v71 = vpop.xlane.xlu0 %70
    %72 = vadd.xlane.f32.xlu0 %v47
    %v73 = vpop.xlane.xlu0 %72
    %74 = vadd.xlane.f32.xlu0 %v48
    %v75 = vpop.xlane.xlu0 %74
    %76 = vadd.xlane.f32.xlu0 %v49
    %v77 = vpop.xlane.xlu0 %76
    %78 = vadd.xlane.f32.xlu0 %v50
    %v79 = vpop.xlane.xlu0 %78
    %80 = vadd.xlane.f32.xlu0 %v51
    %v81 = vpop.xlane.xlu0 %80
    %82 = vadd.xlane.f32.xlu0 %v52
    %v83 = vpop.xlane.xlu0 %82
    %84 = vadd.xlane.f32.xlu0 %v53
    %v85 = vpop.xlane.xlu0 %84
    %v86 = vrcp.pop 128.0
    %v87 = vmul.f32 %v55, %v86
    %v88 = vmul.f32 %v57, %v86
    %v89 = vmul.f32 %v59, %v86
    %v90 = vmul.f32 %v61, %v86
    %v91 = vmul.f32 %v63, %v86
    %v92 = vmul.f32 %v65, %v86
    %v93 = vmul.f32 %v67, %v86
    %v94 = vmul.f32 %v69, %v86
    %v95 = vmul.f32 %v71, %v86
    %v96 = vmul.f32 %v73, %v86
    %v97 = vmul.f32 %v75, %v86
    %v98 = vmul.f32 %v77, %v86
    %v99 = vmul.f32 %v79, %v86
    %v100 = vmul.f32 %v81, %v86
    %v101 = vmul.f32 %v83, %v86
    %v102 = vmul.f32 %v85, %v86
    %v103 = vadd.f32 %v87, 1e-06
    %v104 = vadd.f32 %v88, 1e-06
    %v105 = vadd.f32 %v89, 1e-06
    %v106 = vadd.f32 %v90, 1e-06
    %v107 = vadd.f32 %v91, 1e-06
    %v108 = vadd.f32 %v92, 1e-06
    %v109 = vadd.f32 %v93, 1e-06
    %v110 = vadd.f32 %v94, 1e-06
    %v111 = vadd.f32 %v95, 1e-06
    %v112 = vadd.f32 %v96, 1e-06
    %v113 = vadd.f32 %v97, 1e-06
    %v114 = vadd.f32 %v98, 1e-06
    %v115 = vadd.f32 %v99, 1e-06
    %v116 = vadd.f32 %v100, 1e-06
    %v117 = vadd.f32 %v101, 1e-06
    %v118 = vadd.f32 %v102, 1e-06
    %v119 = vrsqrt.pop %v103
    %v120 = vrsqrt.pop %v104
    %v121 = vrsqrt.pop %v105
    %v122 = vrsqrt.pop %v106
    %v123 = vrsqrt.pop %v107
    %v124 = vrsqrt.pop %v108
    %v125 = vrsqrt.pop %v109
    %v126 = vrsqrt.pop %v110
    %v127 = vrsqrt.pop %v111
    %v128 = vrsqrt.pop %v112
    %v129 = vrsqrt.pop %v113
    %v130 = vrsqrt.pop %v114
    %v131 = vrsqrt.pop %v115
    %v132 = vrsqrt.pop %v116
    %v133 = vrsqrt.pop %v117
    %v134 = vrsqrt.pop %v118
    %v135 = vmul.f32 %v22, %v119
    %v136 = vmul.f32 %v23, %v120
    %v137 = vmul.f32 %v24, %v121
    %v138 = vmul.f32 %v25, %v122
    %v139 = vmul.f32 %v26, %v123
    %v140 = vmul.f32 %v27, %v124
    %v141 = vmul.f32 %v28, %v125
    %v142 = vmul.f32 %v29, %v126
    %v143 = vmul.f32 %v30, %v127
    %v144 = vmul.f32 %v31, %v128
    %v145 = vmul.f32 %v32, %v129
    %v146 = vmul.f32 %v33, %v130
    %v147 = vmul.f32 %v34, %v131
    %v148 = vmul.f32 %v35, %v132
    %v149 = vmul.f32 %v36, %v133
    %v150 = vmul.f32 %v37, %v134
    %v151 = vld [vmem:[%s1] sm:$0x1]
    %v152 = vadd.f32 %v151, 1.0
    %v154 = vlaneseq
    %v155 = vshrl.u32 %v154, 7
    %v156 = vsub.s32 0, %v155
    %v157 = vrot.slane %v152, %v156
    %v159 = vmul.f32 %v135, %v157
    %v160 = vmul.f32 %v136, %v157
    %v161 = vmul.f32 %v137, %v157
    %v162 = vmul.f32 %v138, %v157
    %v163 = vmul.f32 %v139, %v157
    %v164 = vmul.f32 %v140, %v157
    %v165 = vmul.f32 %v141, %v157
    %v166 = vmul.f32 %v142, %v157
    %v167 = vmul.f32 %v143, %v157
    %v168 = vmul.f32 %v144, %v157
    %v169 = vmul.f32 %v145, %v157
    %v170 = vmul.f32 %v146, %v157
    %v171 = vmul.f32 %v147, %v157
    %v172 = vmul.f32 %v148, %v157
    %v173 = vmul.f32 %v149, %v157
    %v174 = vmul.f32 %v150, %v157
    %v175 = vpack.c.bf16 %v160, %v159
    %v176 = vpack.c.bf16 %v162, %v161
    %v177 = vpack.c.bf16 %v164, %v163
    %v178 = vpack.c.bf16 %v166, %v165
    %v179 = vpack.c.bf16 %v168, %v167
    %v180 = vpack.c.bf16 %v170, %v169
    %v181 = vpack.c.bf16 %v172, %v171
    %v182 = vpack.c.bf16 %v174, %v173
    %183 = vst [vmem:[#allocation2] sm:$0xff] %v175
    %184 = vst [vmem:[#allocation2 + $0x8] sm:$0xff] %v176
    %185 = vst [vmem:[#allocation2 + $0x10] sm:$0xff] %v177
    %186 = vst [vmem:[#allocation2 + $0x18] sm:$0xff] %v178
    %187 = vst [vmem:[#allocation2 + $0x20] sm:$0xff] %v179
    %188 = vst [vmem:[#allocation2 + $0x28] sm:$0xff] %v180
    %189 = vst [vmem:[#allocation2 + $0x30] sm:$0xff] %v181
    %190 = vst [vmem:[#allocation2 + $0x38] sm:$0xff] %v182
  $region21: #{gemma_decoder_layer.8} parent=0 // pred_fallthru
    _
  %v191 = vld [vmem:[#allocation2] sm:$0xff]
  %v192 = vld [vmem:[#allocation2 + $0x8] sm:$0xff]
  %v193 = vld [vmem:[#allocation2 + $0x10] sm:$0xff]
  %v194 = vld [vmem:[#allocation2 + $0x18] sm:$0xff]
  %v195 = vld [vmem:[#allocation2 + $0x20] sm:$0xff]
  %v196 = vld [vmem:[#allocation2 + $0x28] sm:$0xff]
  %v197 = vld [vmem:[#allocation2 + $0x30] sm:$0xff]
  %v198 = vld [vmem:[#allocation2 + $0x38] sm:$0xff]
  %v199 = vld [vmem:[%s2] sm:$0xff]
  %v200 = vld [vmem:[%s2 + $0x8] sm:$0xff]
  %v201 = vld [vmem:[%s2 + $0x10] sm:$0xff]
  %v202 = vld [vmem:[%s2 + $0x18] sm:$0xff]
  %v203 = vld [vmem:[%s2 + $0x20] sm:$0xff]
  %v204 = vld [vmem:[%s2 + $0x28] sm:$0xff]
  %v205 = vld [vmem:[%s2 + $0x30] sm:$0xff]
  %v206 = vld [vmem:[%s2 + $0x38] sm:$0xff]
  %v207 = vld [vmem:[%s2 + $0x40] sm:$0xff]
  %v208 = vld [vmem:[%s2 + $0x48] sm:$0xff]
  %v209 = vld [vmem:[%s2 + $0x50] sm:$0xff]
  %v210 = vld [vmem:[%s2 + $0x58] sm:$0xff]
  %v211 = vld [vmem:[%s2 + $0x60] sm:$0xff]
  %v212 = vld [vmem:[%s2 + $0x68] sm:$0xff]
  %v213 = vld [vmem:[%s2 + $0x70] sm:$0xff]
  %v214 = vld [vmem:[%s2 + $0x78] sm:$0xff]
  %v231 = vunpack.c.l.b16 %v199
  %v232 = vunpack.c.h.b16 %v199
  %v233 = vunpack.c.l.b16 %v200
  %v234 = vunpack.c.h.b16 %v200
  %v235 = vunpack.c.l.b16 %v201
  %v236 = vunpack.c.h.b16 %v201
  %v237 = vunpack.c.l.b16 %v202
  %v238 = vunpack.c.h.b16 %v202
  %v239 = vunpack.c.l.b16 %v203
  %v240 = vunpack.c.h.b16 %v203
  %v241 = vunpack.c.l.b16 %v204
  %v242 = vunpack.c.h.b16 %v204
  %v243 = vunpack.c.l.b16 %v205
  %v244 = vunpack.c.h.b16 %v205
  %v245 = vunpack.c.l.b16 %v206
  %v246 = vunpack.c.h.b16 %v206
  %v247 = vunpack.c.l.b16 %v207
  %v248 = vunpack.c.h.b16 %v207
  %v249 = vunpack.c.l.b16 %v208
  %v250 = vunpack.c.h.b16 %v208
  %v251 = vunpack.c.l.b16 %v209
  %v252 = vunpack.c.h.b16 %v209
  %v253 = vunpack.c.l.b16 %v210
  %v254 = vunpack.c.h.b16 %v210
  %v255 = vunpack.c.l.b16 %v211
  %v256 = vunpack.c.h.b16 %v211
  %v257 = vunpack.c.l.b16 %v212
  %v258 = vunpack.c.h.b16 %v212
  %v259 = vunpack.c.l.b16 %v213
  %v260 = vunpack.c.h.b16 %v213
  %v261 = vunpack.c.l.b16 %v214
  %v262 = vunpack.c.h.b16 %v214
  %v263 = vpack.c.b16 %v233, %v231
  %v264 = vpack.c.b16 %v234, %v232
  %v265 = vpack.c.b16 %v237, %v235
  %v266 = vpack.c.b16 %v238, %v236
  %v267 = vpack.c.b16 %v241, %v239
  %v268 = vpack.c.b16 %v242, %v240
  %v269 = vpack.c.b16 %v245, %v243
  %v270 = vpack.c.b16 %v246, %v244
  %v271 = vpack.c.b16 %v249, %v247
  %v272 = vpack.c.b16 %v250, %v248
  %v273 = vpack.c.b16 %v253, %v251
  %v274 = vpack.c.b16 %v254, %v252
  %v275 = vpack.c.b16 %v257, %v255
  %v276 = vpack.c.b16 %v258, %v256
  %v277 = vpack.c.b16 %v261, %v259
  %v278 = vpack.c.b16 %v262, %v260
  %295 = vmatprep.subr.bf16.mxu0 %v264
  %296 = vmatpush1.bf16.msra.mxu0 %v263
  %297 = vmatprep.subr.bf16.mxu0 %v266
  %298 = vmatpush1.bf16.msra.mxu0 %v265
  %299 = vmatprep.subr.bf16.mxu0 %v268
  %300 = vmatpush1.bf16.msra.mxu0 %v267
  %301 = vmatprep.subr.bf16.mxu0 %v270
  %302 = vmatpush1.bf16.msra.mxu0 %v269
  %303 = vmatprep.subr.bf16.mxu0 %v272
  %304 = vmatpush1.bf16.msra.mxu0 %v271
  %305 = vmatprep.subr.bf16.mxu0 %v274
  %306 = vmatpush1.bf16.msra.mxu0 %v273
  %307 = vmatprep.subr.bf16.mxu0 %v276
  %308 = vmatpush1.bf16.msra.mxu0 %v275
  %309 = vmatprep.subr.bf16.mxu0 %v278
  %310 = vmatpush1.bf16.msra.mxu0 %v277
  %311 = vmatprep.subr.bf16.mxu0 0
  %312 = vmatpush1.bf16.msra.mxu0 0
  %313 = vmatprep.subr.bf16.mxu0 0
  %314 = vmatpush1.bf16.msra.mxu0 0
  %315 = vmatprep.subr.bf16.mxu0 0
  %316 = vmatpush1.bf16.msra.mxu0 0
  %317 = vmatprep.subr.bf16.mxu0 0
  %318 = vmatpush1.bf16.msra.mxu0 0
  %319 = vmatprep.subr.bf16.mxu0 0
  %320 = vmatpush1.bf16.msra.mxu0 0
  %321 = vmatprep.subr.bf16.mxu0 0
  %322 = vmatpush1.bf16.msra.mxu0 0
  %323 = vmatprep.subr.bf16.mxu0 0
  %324 = vmatpush1.bf16.msra.mxu0 0
  %325 = vmatprep.subr.bf16.mxu0 0
  %326 = vmatpush1.bf16.msra.mxu0 0
  %327 = vmatprep.mubr.bf16.mxu0 0
  %328 = vmatmul.mubr.bf16.gmra.mrb[0].mxu0 %v191
  %v329 = vpop.f32.mrb[0].mxu0
  %v330 = vadd.f32 0.0, %v329
  %v331 = vpop.f32.mrb[0].mxu0
  %v332 = vadd.f32 0.0, %v331
  %v333 = vpop.f32.mrb[0].mxu0
  %v334 = vadd.f32 0.0, %v333
  %v335 = vpop.f32.mrb[0].mxu0
  %v336 = vadd.f32 0.0, %v335
  %337 = vmatprep.mubr.bf16.mxu0 0
  %338 = vmatmul.mubr.bf16.gmra.mrb[0].mxu0 %v192
  %v339 = vpop.f32.mrb[0].mxu0
  %v340 = vadd.f32 0.0, %v339
  %v341 = vpop.f32.mrb[0].mxu0
  %v342 = vadd.f32 0.0, %v341
  %v343 = vpop.f32.mrb[0].mxu0
  %v344 = vadd.f32 0.0, %v343
  %v345 = vpop.f32.mrb[0].mxu0
  %v346 = vadd.f32 0.0, %v345
  %347 = vmatprep.mubr.bf16.mxu0 0
  %348 = vmatmul.mubr.bf16.gmra.mrb[0].mxu0 %v193
  %v349 = vpop.f32.mrb[0].mxu0
  %v350 = vadd.f32 0.0, %v349
  %v351 = vpop.f32.mrb[0].mxu0
  %v352 = vadd.f32 0.0, %v351
  %v353 = vpop.f32.mrb[0].mxu0
  %v354 = vadd.f32 0.0, %v353
  %v355 = vpop.f32.mrb[0].mxu0
  %v356 = vadd.f32 0.0, %v355
  %357 = vmatprep.mubr.bf16.mxu0 0
  %358 = vmatmul.mubr.bf16.gmra.mrb[0].mxu0 %v194
  %v359 = vpop.f32.mrb[0].mxu0
  %v360 = vadd.f32 0.0, %v359
  %v361 = vpop.f32.mrb[0].mxu0
  %v362 = vadd.f32 0.0, %v361
  %v363 = vpop.f32.mrb[0].mxu0
  %v364 = vadd.f32 0.0, %v363
  %v365 = vpop.f32.mrb[0].mxu0
  %v366 = vadd.f32 0.0, %v365
  %367 = vmatprep.mubr.bf16.mxu0 0
  %368 = vmatmul.mubr.bf16.gmra.mrb[0].mxu0 %v195
  %v369 = vpop.f32.mrb[0].mxu0
  %v370 = vadd.f32 0.0, %v369
  %v371 = vpop.f32.mrb[0].mxu0
  %v372 = vadd.f32 0.0, %v371
  %v373 = vpop.f32.mrb[0].mxu0
  %v374 = vadd.f32 0.0, %v373
  %v375 = vpop.f32.mrb[0].mxu0
  %v376 = vadd.f32 0.0, %v375
  %377 = vmatprep.mubr.bf16.mxu0 0
  %378 = vmatmul.mubr.bf16.gmra.mrb[0].mxu0 %v196
  %v379 = vpop.f32.mrb[0].mxu0
  %v380 = vadd.f32 0.0, %v379
  %v381 = vpop.f32.mrb[0].mxu0
  %v382 = vadd.f32 0.0, %v381
  %v383 = vpop.f32.mrb[0].mxu0
  %v384 = vadd.f32 0.0, %v383
  %v385 = vpop.f32.mrb[0].mxu0
  %v386 = vadd.f32 0.0, %v385
  %387 = vmatprep.mubr.bf16.mxu0 0
  %388 = vmatmul.mubr.bf16.gmra.mrb[0].mxu0 %v197
  %v389 = vpop.f32.mrb[0].mxu0
  %v390 = vadd.f32 0.0, %v389
  %v391 = vpop.f32.mrb[0].mxu0
  %v392 = vadd.f32 0.0, %v391
  %v393 = vpop.f32.mrb[0].mxu0
  %v394 = vadd.f32 0.0, %v393
  %v395 = vpop.f32.mrb[0].mxu0
  %v396 = vadd.f32 0.0, %v395
  %397 = vmatprep.mubr.bf16.mxu0 0
  %398 = vmatmul.mubr.bf16.gmra.mrb[0].mxu0 %v198
  %v399 = vpop.f32.mrb[0].mxu0
  %v400 = vadd.f32 0.0, %v399
  %v401 = vpop.f32.mrb[0].mxu0
  %v402 = vadd.f32 0.0, %v401
  %v403 = vpop.f32.mrb[0].mxu0
  %v404 = vadd.f32 0.0, %v403
  %v405 = vpop.f32.mrb[0].mxu0
  %v406 = vadd.f32 0.0, %v405
  %407 = vdwg.mxu0
  %v408 = vld [vmem:[%s3] sm:$0xff]
  %v409 = vld [vmem:[%s3 + $0x8] sm:$0xff]
  %v410 = vld [vmem:[%s3 + $0x10] sm:$0xff]
  %v411 = vld [vmem:[%s3 + $0x18] sm:$0xff]
  %v412 = vld [vmem:[%s3 + $0x20] sm:$0xff]
  %v413 = vld [vmem:[%s3 + $0x28] sm:$0xff]
  %v414 = vld [vmem:[%s3 + $0x30] sm:$0xff]
  %v415 = vld [vmem:[%s3 + $0x38] sm:$0xff]
  %v416 = vld [vmem:[%s3 + $0x40] sm:$0xff]
  %v417 = vld [vmem:[%s3 + $0x48] sm:$0xff]
  %v418 = vld [vmem:[%s3 + $0x50] sm:$0xff]
  %v419 = vld [vmem:[%s3 + $0x58] sm:$0xff]
  %v420 = vld [vmem:[%s3 + $0x60] sm:$0xff]
  %v421 = vld [vmem:[%s3 + $0x68] sm:$0xff]
  %v422 = vld [vmem:[%s3 + $0x70] sm:$0xff]
  %v423 = vld [vmem:[%s3 + $0x78] sm:$0xff]
  %v440 = vunpack.c.l.b16 %v408
  %v441 = vunpack.c.h.b16 %v408
  %v442 = vunpack.c.l.b16 %v409
  %v443 = vunpack.c.h.b16 %v409
  %v444 = vunpack.c.l.b16 %v410
  %v445 = vunpack.c.h.b16 %v410
  %v446 = vunpack.c.l.b16 %v411
  %v447 = vunpack.c.h.b16 %v411
  %v448 = vunpack.c.l.b16 %v412
  %v449 = vunpack.c.h.b16 %v412
  %v450 = vunpack.c.l.b16 %v413
  %v451 = vunpack.c.h.b16 %v413
  %v452 = vunpack.c.l.b16 %v414
  %v453 = vunpack.c.h.b16 %v414
  %v454 = vunpack.c.l.b16 %v415
  %v455 = vunpack.c.h.b16 %v415
  %v456 = vunpack.c.l.b16 %v416
  %v457 = vunpack.c.h.b16 %v416
  %v458 = vunpack.c.l.b16 %v417
  %v459 = vunpack.c.h.b16 %v417
  %v460 = vunpack.c.l.b16 %v418
  %v461 = vunpack.c.h.b16 %v418
  %v462 = vunpack.c.l.b16 %v419
  %v463 = vunpack.c.h.b16 %v419
  %v464 = vunpack.c.l.b16 %v420
  %v465 = vunpack.c.h.b16 %v420
  %v466 = vunpack.c.l.b16 %v421
  %v467 = vunpack.c.h.b16 %v421
  %v468 = vunpack.c.l.b16 %v422
  %v469 = vunpack.c.h.b16 %v422
  %v470 = vunpack.c.l.b16 %v423
  %v471 = vunpack.c.h.b16 %v423
  %v472 = vpack.c.b16 %v442, %v440
  %v473 = vpack.c.b16 %v443, %v441
  %v474 = vpack.c.b16 %v446, %v444
  %v475 = vpack.c.b16 %v447, %v445
  %v476 = vpack.c.b16 %v450, %v448
  %v477 = vpack.c.b16 %v451, %v449
  %v478 = vpack.c.b16 %v454, %v452
  %v479 = vpack.c.b16 %v455, %v453
  %v480 = vpack.c.b16 %v458, %v456
  %v481 = vpack.c.b16 %v459, %v457
  %v482 = vpack.c.b16 %v462, %v460
  %v483 = vpack.c.b16 %v463, %v461
  %v484 = vpack.c.b16 %v466, %v464
  %v485 = vpack.c.b16 %v467, %v465
  %v486 = vpack.c.b16 %v470, %v468
  %v487 = vpack.c.b16 %v471, %v469
  %504 = vmatprep.subr.bf16.mxu0 %v473
  %505 = vmatpush1.bf16.msra.mxu0 %v472
  %506 = vmatprep.subr.bf16.mxu0 %v475
  %507 = vmatpush1.bf16.msra.mxu0 %v474
  %508 = vmatprep.subr.bf16.mxu0 %v477
  %509 = vmatpush1.bf16.msra.mxu0 %v476
  %510 = vmatprep.subr.bf16.mxu0 %v479
  %511 = vmatpush1.bf16.msra.mxu0 %v478
  %512 = vmatprep.subr.bf16.mxu0 %v481
  %513 = vmatpush1.bf16.msra.mxu0 %v480
  %514 = vmatprep.subr.bf16.mxu0 %v483
  %515 = vmatpush1.bf16.msra.mxu0 %v482
  %516 = vmatprep.subr.bf16.mxu0 %v485
  %517 = vmatpush1.bf16.msra.mxu0 %v484
  %518 = vmatprep.subr.bf16.mxu0 %v487
  %519 = vmatpush1.bf16.msra.mxu0 %v486
  %520 = vmatprep.subr.bf16.mxu0 0
  %521 = vmatpush1.bf16.msra.mxu0 0
  %522 = vmatprep.subr.bf16.mxu0 0
  %523 = vmatpush1.bf16.msra.mxu0 0
  %524 = vmatprep.subr.bf16.mxu0 0
  %525 = vmatpush1.bf16.msra.mxu0 0
  %526 = vmatprep.subr.bf16.mxu0 0
  %527 = vmatpush1.bf16.msra.mxu0 0
  %528 = vmatprep.subr.bf16.mxu0 0
  %529 = vmatpush1.bf16.msra.mxu0 0
  %530 = vmatprep.subr.bf16.mxu0 0
  %531 = vmatpush1.bf16.msra.mxu0 0
  %532 = vmatprep.subr.bf16.mxu0 0
  %533 = vmatpush1.bf16.msra.mxu0 0
  %534 = vmatprep.subr.bf16.mxu0 0
  %535 = vmatpush1.bf16.msra.mxu0 0
  %536 = vmatprep.mubr.bf16.mxu0 0
  %537 = vmatmul.mubr.bf16.gmra.mrb[0].mxu0 %v191
  %v538 = vpop.f32.mrb[0].mxu0
  %v539 = vadd.f32 0.0, %v538
  %v540 = vpop.f32.mrb[0].mxu0
  %v541 = vadd.f32 0.0, %v540
  %v542 = vpop.f32.mrb[0].mxu0
  %v543 = vadd.f32 0.0, %v542
  %v544 = vpop.f32.mrb[0].mxu0
  %v545 = vadd.f32 0.0, %v544
  %546 = vmatprep.mubr.bf16.mxu0 0
  %547 = vmatmul.mubr.bf16.gmra.mrb[0].mxu0 %v192
  %v548 = vpop.f32.mrb[0].mxu0
  %v549 = vadd.f32 0.0, %v548
  %v550 = vpop.f32.mrb[0].mxu0
  %v551 = vadd.f32 0.0, %v550
  %v552 = vpop.f32.mrb[0].mxu0
  %v553 = vadd.f32 0.0, %v552
  %v554 = vpop.f32.mrb[0].mxu0
  %v555 = vadd.f32 0.0, %v554
  %556 = vmatprep.mubr.bf16.mxu0 0
  %557 = vmatmul.mubr.bf16.gmra.mrb[0].mxu0 %v193
  %v558 = vpop.f32.mrb[0].mxu0
  %v559 = vadd.f32 0.0, %v558
  %v560 = vpop.f32.mrb[0].mxu0
  %v561 = vadd.f32 0.0, %v560
  %v562 = vpop.f32.mrb[0].mxu0
  %v563 = vadd.f32 0.0, %v562
  %v564 = vpop.f32.mrb[0].mxu0
  %v565 = vadd.f32 0.0, %v564
  %566 = vmatprep.mubr.bf16.mxu0 0
  %567 = vmatmul.mubr.bf16.gmra.mrb[0].mxu0 %v194
  %v568 = vpop.f32.mrb[0].mxu0
  %v569 = vadd.f32 0.0, %v568
  %v570 = vpop.f32.mrb[0].mxu0
  %v571 = vadd.f32 0.0, %v570
  %v572 = vpop.f32.mrb[0].mxu0
  %v573 = vadd.f32 0.0, %v572
  %v574 = vpop.f32.mrb[0].mxu0
  %v575 = vadd.f32 0.0, %v574
  %576 = vmatprep.mubr.bf16.mxu0 0
  %577 = vmatmul.mubr.bf16.gmra.mrb[0].mxu0 %v195
  %v578 = vpop.f32.mrb[0].mxu0
  %v579 = vadd.f32 0.0, %v578
  %v580 = vpop.f32.mrb[0].mxu0
  %v581 = vadd.f32 0.0, %v580
  %v582 = vpop.f32.mrb[0].mxu0
  %v583 = vadd.f32 0.0, %v582
  %v584 = vpop.f32.mrb[0].mxu0
  %v585 = vadd.f32 0.0, %v584
  %586 = vmatprep.mubr.bf16.mxu0 0
  %587 = vmatmul.mubr.bf16.gmra.mrb[0].mxu0 %v196
  %v588 = vpop.f32.mrb[0].mxu0
  %v589 = vadd.f32 0.0, %v588
  %v590 = vpop.f32.mrb[0].mxu0
  %v591 = vadd.f32 0.0, %v590
  %v592 = vpop.f32.mrb[0].mxu0
  %v593 = vadd.f32 0.0, %v592
  %v594 = vpop.f32.mrb[0].mxu0
  %v595 = vadd.f32 0.0, %v594
  %596 = vmatprep.mubr.bf16.mxu0 0
  %597 = vmatmul.mubr.bf16.gmra.mrb[0].mxu0 %v197
  %v598 = vpop.f32.mrb[0].mxu0
  %v599 = vadd.f32 0.0, %v598
  %v600 = vpop.f32.mrb[0].mxu0
  %v601 = vadd.f32 0.0, %v600
  %v602 = vpop.f32.mrb[0].mxu0
  %v603 = vadd.f32 0.0, %v602
  %v604 = vpop.f32.mrb[0].mxu0
  %v605 = vadd.f32 0.0, %v604
  %606 = vmatprep.mubr.bf16.mxu0 0
  %607 = vmatmul.mubr.bf16.gmra.mrb[0].mxu0 %v198
  %v608 = vpop.f32.mrb[0].mxu0
  %v609 = vadd.f32 0.0, %v608
  %v610 = vpop.f32.mrb[0].mxu0
  %v611 = vadd.f32 0.0, %v610
  %v612 = vpop.f32.mrb[0].mxu0
  %v613 = vadd.f32 0.0, %v612
  %v614 = vpop.f32.mrb[0].mxu0
  %v615 = vadd.f32 0.0, %v614
  %616 = vdwg.mxu0
  %v617 = vmul.f32 %v330, 0.5
  %v618 = vmul.f32 %v332, 0.5
  %v619 = vmul.f32 %v334, 0.5
  %v620 = vmul.f32 %v336, 0.5
  %v621 = vmul.f32 %v340, 0.5
  %v622 = vmul.f32 %v342, 0.5
  %v623 = vmul.f32 %v344, 0.5
  %v624 = vmul.f32 %v346, 0.5
  %v625 = vmul.f32 %v350, 0.5
  %v626 = vmul.f32 %v352, 0.5
  %v627 = vmul.f32 %v354, 0.5
  %v628 = vmul.f32 %v356, 0.5
  %v629 = vmul.f32 %v360, 0.5
  %v630 = vmul.f32 %v362, 0.5
  %v631 = vmul.f32 %v364, 0.5
  %v632 = vmul.f32 %v366, 0.5
  %v633 = vmul.f32 %v370, 0.5
  %v634 = vmul.f32 %v372, 0.5
  %v635 = vmul.f32 %v374, 0.5
  %v636 = vmul.f32 %v376, 0.5
  %v637 = vmul.f32 %v380, 0.5
  %v638 = vmul.f32 %v382, 0.5
  %v639 = vmul.f32 %v384, 0.5
  %v640 = vmul.f32 %v386, 0.5
  %v641 = vmul.f32 %v390, 0.5
  %v642 = vmul.f32 %v392, 0.5
  %v643 = vmul.f32 %v394, 0.5
  %v644 = vmul.f32 %v396, 0.5
  %v645 = vmul.f32 %v400, 0.5
  %v646 = vmul.f32 %v402, 0.5
  %v647 = vmul.f32 %v404, 0.5
  %v648 = vmul.f32 %v406, 0.5
  %v649 = vmul.f32 %v330, 0.044715
  %v650 = vmul.f32 %v332, 0.044715
  %v651 = vmul.f32 %v334, 0.044715
  %v652 = vmul.f32 %v336, 0.044715
  %v653 = vmul.f32 %v340, 0.044715
  %v654 = vmul.f32 %v342, 0.044715
  %v655 = vmul.f32 %v344, 0.044715
  %v656 = vmul.f32 %v346, 0.044715
  %v657 = vmul.f32 %v350, 0.044715
  %v658 = vmul.f32 %v352, 0.044715
  %v659 = vmul.f32 %v354, 0.044715
  %v660 = vmul.f32 %v356, 0.044715
  %v661 = vmul.f32 %v360, 0.044715
  %v662 = vmul.f32 %v362, 0.044715
  %v663 = vmul.f32 %v364, 0.044715
  %v664 = vmul.f32 %v366, 0.044715
  %v665 = vmul.f32 %v370, 0.044715
  %v666 = vmul.f32 %v372, 0.044715
  %v667 = vmul.f32 %v374, 0.044715
  %v668 = vmul.f32 %v376, 0.044715
  %v669 = vmul.f32 %v380, 0.044715
  %v670 = vmul.f32 %v382, 0.044715
  %v671 = vmul.f32 %v384, 0.044715
  %v672 = vmul.f32 %v386, 0.044715
  %v673 = vmul.f32 %v390, 0.044715
  %v674 = vmul.f32 %v392, 0.044715
  %v675 = vmul.f32 %v394, 0.044715
  %v676 = vmul.f32 %v396, 0.044715
  %v677 = vmul.f32 %v400, 0.044715
  %v678 = vmul.f32 %v402, 0.044715
  %v679 = vmul.f32 %v404, 0.044715
  %v680 = vmul.f32 %v406, 0.044715
  %v681 = vmul.f32 %v649, %v330
  %v682 = vmul.f32 %v650, %v332
  %v683 = vmul.f32 %v651, %v334
  %v684 = vmul.f32 %v652, %v336
  %v685 = vmul.f32 %v653, %v340
  %v686 = vmul.f32 %v654, %v342
  %v687 = vmul.f32 %v655, %v344
  %v688 = vmul.f32 %v656, %v346
  %v689 = vmul.f32 %v657, %v350
  %v690 = vmul.f32 %v658, %v352
  %v691 = vmul.f32 %v659, %v354
  %v692 = vmul.f32 %v660, %v356
  %v693 = vmul.f32 %v661, %v360
  %v694 = vmul.f32 %v662, %v362
  %v695 = vmul.f32 %v663, %v364
  %v696 = vmul.f32 %v664, %v366
  %v697 = vmul.f32 %v665, %v370
  %v698 = vmul.f32 %v666, %v372
  %v699 = vmul.f32 %v667, %v374
  %v700 = vmul.f32 %v668, %v376
  %v701 = vmul.f32 %v669, %v380
  %v702 = vmul.f32 %v670, %v382
  %v703 = vmul.f32 %v671, %v384
  %v704 = vmul.f32 %v672, %v386
  %v705 = vmul.f32 %v673, %v390
  %v706 = vmul.f32 %v674, %v392
  %v707 = vmul.f32 %v675, %v394
  %v708 = vmul.f32 %v676, %v396
  %v709 = vmul.f32 %v677, %v400
  %v710 = vmul.f32 %v678, %v402
  %v711 = vmul.f32 %v679, %v404
  %v712 = vmul.f32 %v680, %v406
  %v713 = vmul.f32 %v681, %v330
  %v714 = vmul.f32 %v682, %v332
  %v715 = vmul.f32 %v683, %v334
  %v716 = vmul.f32 %v684, %v336
  %v717 = vmul.f32 %v685, %v340
  %v718 = vmul.f32 %v686, %v342
  %v719 = vmul.f32 %v687, %v344
  %v720 = vmul.f32 %v688, %v346
  %v721 = vmul.f32 %v689, %v350
  %v722 = vmul.f32 %v690, %v352
  %v723 = vmul.f32 %v691, %v354
  %v724 = vmul.f32 %v692, %v356
  %v725 = vmul.f32 %v693, %v360
  %v726 = vmul.f32 %v694, %v362
  %v727 = vmul.f32 %v695, %v364
  %v728 = vmul.f32 %v696, %v366
  %v729 = vmul.f32 %v697, %v370
  %v730 = vmul.f32 %v698, %v372
  %v731 = vmul.f32 %v699, %v374
  %v732 = vmul.f32 %v700, %v376
  %v733 = vmul.f32 %v701, %v380
  %v734 = vmul.f32 %v702, %v382
  %v735 = vmul.f32 %v703, %v384
  %v736 = vmul.f32 %v704, %v386
  %v737 = vmul.f32 %v705, %v390
  %v738 = vmul.f32 %v706, %v392
  %v739 = vmul.f32 %v707, %v394
  %v740 = vmul.f32 %v708, %v396
  %v741 = vmul.f32 %v709, %v400
  %v742 = vmul.f32 %v710, %v402
  %v743 = vmul.f32 %v711, %v404
  %v744 = vmul.f32 %v712, %v406
  %v745 = vadd.f32 %v330, %v713
  %v746 = vadd.f32 %v332, %v714
  %v747 = vadd.f32 %v334, %v715
  %v748 = vadd.f32 %v336, %v716
  %v749 = vadd.f32 %v340, %v717
  %v750 = vadd.f32 %v342, %v718
  %v751 = vadd.f32 %v344, %v719
  %v752 = vadd.f32 %v346, %v720
  %v753 = vadd.f32 %v350, %v721
  %v754 = vadd.f32 %v352, %v722
  %v755 = vadd.f32 %v354, %v723
  %v756 = vadd.f32 %v356, %v724
  %v757 = vadd.f32 %v360, %v725
  %v758 = vadd.f32 %v362, %v726
  %v759 = vadd.f32 %v364, %v727
  %v760 = vadd.f32 %v366, %v728
  %v761 = vadd.f32 %v370, %v729
  %v762 = vadd.f32 %v372, %v730
  %v763 = vadd.f32 %v374, %v731
  %v764 = vadd.f32 %v376, %v732
  %v765 = vadd.f32 %v380, %v733
  %v766 = vadd.f32 %v382, %v734
  %v767 = vadd.f32 %v384, %v735
  %v768 = vadd.f32 %v386, %v736
  %v769 = vadd.f32 %v390, %v737
  %v770 = vadd.f32 %v392, %v738
  %v771 = vadd.f32 %v394, %v739
  %v772 = vadd.f32 %v396, %v740
  %v773 = vadd.f32 %v400, %v741
  %v774 = vadd.f32 %v402, %v742
  %v775 = vadd.f32 %v404, %v743
  %v776 = vadd.f32 %v406, %v744
  %v777 = vmul.f32 %v745, 0.7978846
  %v778 = vmul.f32 %v746, 0.7978846
  %v779 = vmul.f32 %v747, 0.7978846
  %v780 = vmul.f32 %v748, 0.7978846
  %v781 = vmul.f32 %v749, 0.7978846
  %v782 = vmul.f32 %v750, 0.7978846
  %v783 = vmul.f32 %v751, 0.7978846
  %v784 = vmul.f32 %v752, 0.7978846
  %v785 = vmul.f32 %v753, 0.7978846
  %v786 = vmul.f32 %v754, 0.7978846
  %v787 = vmul.f32 %v755, 0.7978846
  %v788 = vmul.f32 %v756, 0.7978846
  %v789 = vmul.f32 %v757, 0.7978846
  %v790 = vmul.f32 %v758, 0.7978846
  %v791 = vmul.f32 %v759, 0.7978846
  %v792 = vmul.f32 %v760, 0.7978846
  %v793 = vmul.f32 %v761, 0.7978846
  %v794 = vmul.f32 %v762, 0.7978846
  %v795 = vmul.f32 %v763, 0.7978846
  %v796 = vmul.f32 %v764, 0.7978846
  %v797 = vmul.f32 %v765, 0.7978846
  %v798 = vmul.f32 %v766, 0.7978846
  %v799 = vmul.f32 %v767, 0.7978846
  %v800 = vmul.f32 %v768, 0.7978846
  %v801 = vmul.f32 %v769, 0.7978846
  %v802 = vmul.f32 %v770, 0.7978846
  %v803 = vmul.f32 %v771, 0.7978846
  %v804 = vmul.f32 %v772, 0.7978846
  %v805 = vmul.f32 %v773, 0.7978846
  %v806 = vmul.f32 %v774, 0.7978846
  %v807 = vmul.f32 %v775, 0.7978846
  %v808 = vmul.f32 %v776, 0.7978846
  %v809 = vtanh.pop %v777
  %v810 = vtanh.pop %v778
  %v811 = vtanh.pop %v779
  %v812 = vtanh.pop %v780
  %v813 = vtanh.pop %v781
  %v814 = vtanh.pop %v782
  %v815 = vtanh.pop %v783
  %v816 = vtanh.pop %v784
  %v817 = vtanh.pop %v785
  %v818 = vtanh.pop %v786
  %v819 = vtanh.pop %v787
  %v820 = vtanh.pop %v788
  %v821 = vtanh.pop %v789
  %v822 = vtanh.pop %v790
  %v823 = vtanh.pop %v791
  %v824 = vtanh.pop %v792
  %v825 = vtanh.pop %v793
  %v826 = vtanh.pop %v794
  %v827 = vtanh.pop %v795
  %v828 = vtanh.pop %v796
  %v829 = vtanh.pop %v797
  %v830 = vtanh.pop %v798
  %v831 = vtanh.pop %v799
  %v832 = vtanh.pop %v800
  %v833 = vtanh.pop %v801
  %v834 = vtanh.pop %v802
  %v835 = vtanh.pop %v803
  %v836 = vtanh.pop %v804
  %v837 = vtanh.pop %v805
  %v838 = vtanh.pop %v806
  %v839 = vtanh.pop %v807
  %v840 = vtanh.pop %v808
  %v841 = vadd.f32 %v809, 1.0
  %v842 = vadd.f32 %v810, 1.0
  %v843 = vadd.f32 %v811, 1.0
  %v844 = vadd.f32 %v812, 1.0
  %v845 = vadd.f32 %v813, 1.0
  %v846 = vadd.f32 %v814, 1.0
  %v847 = vadd.f32 %v815, 1.0
  %v848 = vadd.f32 %v816, 1.0
  %v849 = vadd.f32 %v817, 1.0
  %v850 = vadd.f32 %v818, 1.0
  %v851 = vadd.f32 %v819, 1.0
  %v852 = vadd.f32 %v820, 1.0
  %v853 = vadd.f32 %v821, 1.0
  %v854 = vadd.f32 %v822, 1.0
  %v855 = vadd.f32 %v823, 1.0
  %v856 = vadd.f32 %v824, 1.0
  %v857 = vadd.f32 %v825, 1.0
  %v858 = vadd.f32 %v826, 1.0
  %v859 = vadd.f32 %v827, 1.0
  %v860 = vadd.f32 %v828, 1.0
  %v861 = vadd.f32 %v829, 1.0
  %v862 = vadd.f32 %v830, 1.0
  %v863 = vadd.f32 %v831, 1.0
  %v864 = vadd.f32 %v832, 1.0
  %v865 = vadd.f32 %v833, 1.0
  %v866 = vadd.f32 %v834, 1.0
  %v867 = vadd.f32 %v835, 1.0
  %v868 = vadd.f32 %v836, 1.0
  %v869 = vadd.f32 %v837, 1.0
  %v870 = vadd.f32 %v838, 1.0
  %v871 = vadd.f32 %v839, 1.0
  %v872 = vadd.f32 %v840, 1.0
  %v873 = vmul.f32 %v617, %v841
  %v874 = vmul.f32 %v618, %v842
  %v875 = vmul.f32 %v619, %v843
  %v876 = vmul.f32 %v620, %v844
  %v877 = vmul.f32 %v621, %v845
  %v878 = vmul.f32 %v622, %v846
  %v879 = vmul.f32 %v623, %v847
  %v880 = vmul.f32 %v624, %v848
  %v881 = vmul.f32 %v625, %v849
  %v882 = vmul.f32 %v626, %v850
  %v883 = vmul.f32 %v627, %v851
  %v884 = vmul.f32 %v628, %v852
  %v885 = vmul.f32 %v629, %v853
  %v886 = vmul.f32 %v630, %v854
  %v887 = vmul.f32 %v631, %v855
  %v888 = vmul.f32 %v632, %v856
  %v889 = vmul.f32 %v633, %v857
  %v890 = vmul.f32 %v634, %v858
  %v891 = vmul.f32 %v635, %v859
  %v892 = vmul.f32 %v636, %v860
  %v893 = vmul.f32 %v637, %v861
  %v894 = vmul.f32 %v638, %v862
  %v895 = vmul.f32 %v639, %v863
  %v896 = vmul.f32 %v640, %v864
  %v897 = vmul.f32 %v641, %v865
  %v898 = vmul.f32 %v642, %v866
  %v899 = vmul.f32 %v643, %v867
  %v900 = vmul.f32 %v644, %v868
  %v901 = vmul.f32 %v645, %v869
  %v902 = vmul.f32 %v646, %v870
  %v903 = vmul.f32 %v647, %v871
  %v904 = vmul.f32 %v648, %v872
  %v905 = vmul.f32 %v873, %v539
  %v906 = vmul.f32 %v874, %v541
  %v907 = vmul.f32 %v875, %v543
  %v908 = vmul.f32 %v876, %v545
  %v909 = vmul.f32 %v877, %v549
  %v910 = vmul.f32 %v878, %v551
  %v911 = vmul.f32 %v879, %v553
  %v912 = vmul.f32 %v880, %v555
  %v913 = vmul.f32 %v881, %v559
  %v914 = vmul.f32 %v882, %v561
  %v915 = vmul.f32 %v883, %v563
  %v916 = vmul.f32 %v884, %v565
  %v917 = vmul.f32 %v885, %v569
  %v918 = vmul.f32 %v886, %v571
  %v919 = vmul.f32 %v887, %v573
  %v920 = vmul.f32 %v888, %v575
  %v921 = vmul.f32 %v889, %v579
  %v922 = vmul.f32 %v890, %v581
  %v923 = vmul.f32 %v891, %v583
  %v924 = vmul.f32 %v892, %v585
  %v925 = vmul.f32 %v893, %v589
  %v926 = vmul.f32 %v894, %v591
  %v927 = vmul.f32 %v895, %v593
  %v928 = vmul.f32 %v896, %v595
  %v929 = vmul.f32 %v897, %v599
  %v930 = vmul.f32 %v898, %v601
  %v931 = vmul.f32 %v899, %v603
  %v932 = vmul.f32 %v900, %v605
  %v933 = vmul.f32 %v901, %v609
  %v934 = vmul.f32 %v902, %v611
  %v935 = vmul.f32 %v903, %v613
  %v936 = vmul.f32 %v904, %v615
  %v937 = vpack.c.bf16 %v907, %v905
  %v938 = vpack.c.bf16 %v908, %v906
  %v939 = vpack.c.bf16 %v911, %v909
  %v940 = vpack.c.bf16 %v912, %v910
  %v941 = vpack.c.bf16 %v915, %v913
  %v942 = vpack.c.bf16 %v916, %v914
  %v943 = vpack.c.bf16 %v919, %v917
  %v944 = vpack.c.bf16 %v920, %v918
  %v945 = vpack.c.bf16 %v923, %v921
  %v946 = vpack.c.bf16 %v924, %v922
  %v947 = vpack.c.bf16 %v927, %v925
  %v948 = vpack.c.bf16 %v928, %v926
  %v949 = vpack.c.bf16 %v931, %v929
  %v950 = vpack.c.bf16 %v932, %v930
  %v951 = vpack.c.bf16 %v935, %v933
  %v952 = vpack.c.bf16 %v936, %v934
  %v969 = vunpack.c.l.b16 %v937
  %v970 = vunpack.c.l.b16 %v938
  %v971 = vunpack.c.h.b16 %v937
  %v972 = vunpack.c.h.b16 %v938
  %v973 = vunpack.c.l.b16 %v939
  %v974 = vunpack.c.l.b16 %v940
  %v975 = vunpack.c.h.b16 %v939
  %v976 = vunpack.c.h.b16 %v940
  %v977 = vunpack.c.l.b16 %v941
  %v978 = vunpack.c.l.b16 %v942
  %v979 = vunpack.c.h.b16 %v941
  %v980 = vunpack.c.h.b16 %v942
  %v981 = vunpack.c.l.b16 %v943
  %v982 = vunpack.c.l.b16 %v944
  %v983 = vunpack.c.h.b16 %v943
  %v984 = vunpack.c.h.b16 %v944
  %v985 = vunpack.c.l.b16 %v945
  %v986 = vunpack.c.l.b16 %v946
  %v987 = vunpack.c.h.b16 %v945
  %v988 = vunpack.c.h.b16 %v946
  %v989 = vunpack.c.l.b16 %v947
  %v990 = vunpack.c.l.b16 %v948
  %v991 = vunpack.c.h.b16 %v947
  %v992 = vunpack.c.h.b16 %v948
  %v993 = vunpack.c.l.b16 %v949
  %v994 = vunpack.c.l.b16 %v950
  %v995 = vunpack.c.h.b16 %v949
  %v996 = vunpack.c.h.b16 %v950
  %v997 = vunpack.c.l.b16 %v951
  %v998 = vunpack.c.l.b16 %v952
  %v999 = vunpack.c.h.b16 %v951
  %v1000 = vunpack.c.h.b16 %v952
  %v1001 = vpack.c.b16 %v970, %v969
  %v1002 = vpack.c.b16 %v972, %v971
  %v1003 = vpack.c.b16 %v974, %v973
  %v1004 = vpack.c.b16 %v976, %v975
  %v1005 = vpack.c.b16 %v978, %v977
  %v1006 = vpack.c.b16 %v980, %v979
  %v1007 = vpack.c.b16 %v982, %v981
  %v1008 = vpack.c.b16 %v984, %v983
  %v1009 = vpack.c.b16 %v986, %v985
  %v1010 = vpack.c.b16 %v988, %v987
  %v1011 = vpack.c.b16 %v990, %v989
  %v1012 = vpack.c.b16 %v992, %v991
  %v1013 = vpack.c.b16 %v994, %v993
  %v1014 = vpack.c.b16 %v996, %v995
  %v1015 = vpack.c.b16 %v998, %v997
  %v1016 = vpack.c.b16 %v1000, %v999
  %1033 = vst [vmem:[%s4] sm:$0xff] %v1001
  %1034 = vst [vmem:[%s4 + $0x8] sm:$0xff] %v1002
  %1035 = vst [vmem:[%s4 + $0x10] sm:$0xff] %v1003
  %1036 = vst [vmem:[%s4 + $0x18] sm:$0xff] %v1004
  %1037 = vst [vmem:[%s4 + $0x20] sm:$0xff] %v1005
  %1038 = vst [vmem:[%s4 + $0x28] sm:$0xff] %v1006
  %1039 = vst [vmem:[%s4 + $0x30] sm:$0xff] %v1007
  %1040 = vst [vmem:[%s4 + $0x38] sm:$0xff] %v1008
  %1041 = vst [vmem:[%s4 + $0x40] sm:$0xff] %v1009
  %1042 = vst [vmem:[%s4 + $0x48] sm:$0xff] %v1010
  %1043 = vst [vmem:[%s4 + $0x50] sm:$0xff] %v1011
  %1044 = vst [vmem:[%s4 + $0x58] sm:$0xff] %v1012
  %1045 = vst [vmem:[%s4 + $0x60] sm:$0xff] %v1013
  %1046 = vst [vmem:[%s4 + $0x68] sm:$0xff] %v1014
  %1047 = vst [vmem:[%s4 + $0x70] sm:$0xff] %v1015
  %1048 = vst [vmem:[%s4 + $0x78] sm:$0xff] %v1016
  // Predicated region
  $region22: #{gemma_decoder_layer.8} parent=0 // pred_check
    _
  $region23: #{gemma_decoder_layer.8} parent=0 // pred_check_branch
    %1050 = sbr.rel (0) target = $region25
  $region24: #{gemma_decoder_layer.8} parent=0 // pred_region
    _
  $region25: #{gemma_decoder_layer.8} parent=0 // pred_fallthru
    _
  // Predicated region
  $region26: #{gemma_decoder_layer.8} parent=0 // pred_check
    _
  $region27: #{gemma_decoder_layer.8} parent=0 // pred_check_branch
    %1052 = sbr.rel (0) target = $region29
  $region28: #{gemma_decoder_layer.8} parent=0 // pred_region
    _
  $region29: #{gemma_decoder_layer.8} parent=0 // pred_fallthru
    _

// kernel: gemma_decoder_layer.6
$region0: #{gemma_decoder_layer.6}
  #allocation0 [shape = 'u32[]', space=smem, size = 0x4, offset = 0x4, fixed_abs, tag = 'smem constant byte address 0x4 - core index']
  #allocation1 [shape = 'u32[144,128]{1,0:T(1,128)}', space=vmem, size = 0x12000, scoped, tag = 'internal scratch']
  #allocation2 [shape = 'bf16[32,128]{1,0:T(16,128)(2,1)}', space=vmem, size = 0x2000, scoped, tag = 'scratch operand']
  #allocation3 [shape = 'f32[8,4,1]{2,1,0:T(4,128)}', space=vmem, size = 0x4000, scoped, tag = 'scratch operand']
  #allocation4 [shape = 'f32[8,4,1]{2,1,0:T(4,128)}', space=vmem, size = 0x4000, scoped, tag = 'scratch operand']
  #allocation5 [shape = 'f32[8,4,128]{2,1,0:T(4,128)}', space=vmem, size = 0x4000, scoped, tag = 'scratch operand']
  %s0 = inlined_call_operand.vmem [shape: bf16[2,8,512], index: 0, kind: input, shape index: {}]
  %s1 = inlined_call_operand.vmem [shape: bf16[2,8,128], index: 1, kind: input, shape index: {}]
  %s2 = inlined_call_operand.vmem [shape: bf16[2,8,128], index: 2, kind: input, shape index: {}]
  %s3 = inlined_call_operand.vmem [shape: f32[2,8,128], index: 3, kind: input, shape index: {}, may-alias: {3,5}]
  %s4 = inlined_call_operand.vmem [shape: f32[2,8,128], index: 4, kind: input, shape index: {}, may-alias: {4,6}]
  %s5 = inlined_call_operand.vmem [shape: f32[2,8,128], index: 5, kind: input, shape index: {}, may-alias: {3,5}]
  %s6 = inlined_call_operand.vmem [shape: f32[2,8,128], index: 6, kind: input, shape index: {}, may-alias: {4,6}]
  %s7 = inlined_call_operand.vmem [shape: f32[2,8,8], index: 7, kind: input, shape index: {}]
  %s8 = inlined_call_operand.vmem [shape: bf16[2,8,512], index: 8, kind: output, shape index: {}]
  %s9 = sld [smem:[#allocation0]]
  $region73: #{gemma_decoder_layer.6} parent=0
    _
  %s11 = ssub.s32 1, %s9
  %s12 = scalar_select 0, %s11, %s9
  loop: start=0, step=1, limit=4
  $region2: #{gemma_decoder_layer.6} parent=0 // loop_pre_header
    _
  $region3: #{gemma_decoder_layer.6} parent=0 // loop_header
    %s14 = sphi 0, %s18
    %p15 = scmp.ge.s32.totalorder %s14, 4
    %s21 = sphi 0, %s47
    %s22 = sphi 0, %s43
    %s23 = sphi 0, %s39
    %s24 = sphi 0, %s35
    %s25 = sphi 0, %s21
    %s26 = sphi 0, %s22
    %s27 = sphi 0, %s23
    %s28 = sphi 0, %s24
    %s29 = sphi 0, %s25
    %s30 = sphi 0, %s26
    %s31 = sphi 0, %s27
    %s32 = sphi 0, %s28
    %s54 = sphi 0, %s56
    %s57 = sphi 0, %s54
    %s58 = sphi 0, %s57
    %s74 = sphi 0, %s58
    %s84 = sphi 0, %s86
    %s87 = sphi 0, %s84
    %s88 = sphi 0, %s87
    %s104 = sphi 0, %s88
    %s114 = sphi 0, %s116
    %s117 = sphi 0, %s114
    %s118 = sphi 0, %s117
    %s134 = sphi 0, %s118
    %s142 = sphi 0, %s144
    %s145 = sphi 0, %s142
    %s146 = sphi 0, %s145
    %s162 = sphi 0, %s146
    %s170 = sphi 0, %s172
    %s173 = sphi 0, %s170
    %s174 = sphi 0, %s173
    %s190 = sphi 0, %s174
    %s198 = sphi 0, %s200
    %s201 = sphi 0, %s198
    %s202 = sphi 0, %s201
    %s218 = sphi 0, %s202
    %s226 = sphi 0, %s228
    %s229 = sphi 0, %s226
    %s230 = sphi 0, %s229
    %s246 = sphi 0, %s230
    %s256 = sphi 0, %s258
    %s259 = sphi 0, %s256
    %s260 = sphi 0, %s259
    %s276 = sphi 0, %s260
    %s286 = sphi 0, %s288
    %s289 = sphi 0, %s286
    %s290 = sphi 0, %s289
    %s306 = sphi 0, %s290
  $region4: #{gemma_decoder_layer.6} parent=0 // loop_header_branch
    %17 = sbr.rel (%p15) target = $region8
  $region5: #{gemma_decoder_layer.6} parent=0 // loop_body
    %s19 = ssub.s32 %s14, 1
    %s20 = ssub.s32 %s14, 2
    %s33 = sadd.s32 1, %s24
    %p34 = scmp.ge.s32.totalorder %s33, 1
    %s35 = scalar_select %p34, 0, %s33
    %s36 = sadd.s32 1, %s23
    %s37 = scalar_select %p34, %s36, %s23
    %p38 = scmp.ge.s32.totalorder %s37, 1
    %s39 = scalar_select %p38, 0, %s37
    %s40 = sadd.s32 1, %s22
    %s41 = scalar_select %p38, %s40, %s22
    %p42 = scmp.ge.s32.totalorder %s41, 1
    %s43 = scalar_select %p42, 0, %s41
    %s44 = sadd.s32 1, %s21
    %s45 = scalar_select %p42, %s44, %s21
    %p46 = scmp.ge.s32.totalorder %s45, 2
    %s47 = scalar_select %p46, 0, %s45
    %s48 = ssub.s32 %s21, %s47
    %s49 = ssub.s32 %s23, %s39
    %s50 = sor.u32 %s48, %s49
    %s51 = ssub.s32 %s22, %s43
    %s52 = sor.u32 %s50, %s51
    %p53 = scmp.eq.s32.totalorder %s52, 0
    %s55 = sadd.s32 %s54, 1
    %s56 = scalar_select %p53, %s54, %s55
    %p59 = pneg %p53
    %p60 = scmp.eq.s32.totalorder %s14, 1
    %p61 = por %p59, %p60
    %p62 = scmp.ne.s32.totalorder %s54, %s57
    %p63 = scmp.eq.s32.totalorder %s14, 0
    %p64 = por %p62, %p63
    %p65 = scmp.ne.s32.totalorder %s54, %s57
    %p66 = scmp.eq.s32.totalorder %s19, 1
    %p67 = por %p65, %p66
    %p68 = scmp.ne.s32.totalorder %s57, %s58
    %p69 = scmp.eq.s32.totalorder %s19, 0
    %p70 = por %p68, %p69
    %p71 = scmp.ne.s32.totalorder %s57, %s58
    %p72 = scmp.eq.s32.totalorder %s20, 1
    %p73 = por %p71, %p72
    %p75 = scmp.ne.s32.totalorder %s58, %s74
    %p76 = scmp.eq.s32.totalorder %s20, 0
    %p77 = por %p75, %p76
    %s78 = ssub.s32 %s21, %s47
    %s79 = ssub.s32 %s24, %s35
    %s80 = sor.u32 %s78, %s79
    %s81 = ssub.s32 %s22, %s43
    %s82 = sor.u32 %s80, %s81
    %p83 = scmp.eq.s32.totalorder %s82, 0
    %s85 = sadd.s32 %s84, 1
    %s86 = scalar_select %p83, %s84, %s85
    %p89 = pneg %p83
    %p90 = scmp.eq.s32.totalorder %s14, 1
    %p91 = por %p89, %p90
    %p92 = scmp.ne.s32.totalorder %s84, %s87
    %p93 = scmp.eq.s32.totalorder %s14, 0
    %p94 = por %p92, %p93
    %p95 = scmp.ne.s32.totalorder %s84, %s87
    %p96 = scmp.eq.s32.totalorder %s19, 1
    %p97 = por %p95, %p96
    %p98 = scmp.ne.s32.totalorder %s87, %s88
    %p99 = scmp.eq.s32.totalorder %s19, 0
    %p100 = por %p98, %p99
    %p101 = scmp.ne.s32.totalorder %s87, %s88
    %p102 = scmp.eq.s32.totalorder %s20, 1
    %p103 = por %p101, %p102
    %p105 = scmp.ne.s32.totalorder %s88, %s104
    %p106 = scmp.eq.s32.totalorder %s20, 0
    %p107 = por %p105, %p106
    %s108 = ssub.s32 %s21, %s47
    %s109 = ssub.s32 %s24, %s35
    %s110 = sor.u32 %s108, %s109
    %s111 = ssub.s32 %s22, %s43
    %s112 = sor.u32 %s110, %s111
    %p113 = scmp.eq.s32.totalorder %s112, 0
    %s115 = sadd.s32 %s114, 1
    %s116 = scalar_select %p113, %s114, %s115
    %p119 = pneg %p113
    %p120 = scmp.eq.s32.totalorder %s14, 1
    %p121 = por %p119, %p120
    %p122 = scmp.ne.s32.totalorder %s114, %s117
    %p123 = scmp.eq.s32.totalorder %s14, 0
    %p124 = por %p122, %p123
    %p125 = scmp.ne.s32.totalorder %s114, %s117
    %p126 = scmp.eq.s32.totalorder %s19, 1
    %p127 = por %p125, %p126
    %p128 = scmp.ne.s32.totalorder %s117, %s118
    %p129 = scmp.eq.s32.totalorder %s19, 0
    %p130 = por %p128, %p129
    %p131 = scmp.ne.s32.totalorder %s117, %s118
    %p132 = scmp.eq.s32.totalorder %s20, 1
    %p133 = por %p131, %p132
    %p135 = scmp.ne.s32.totalorder %s118, %s134
    %p136 = scmp.eq.s32.totalorder %s20, 0
    %p137 = por %p135, %p136
    %s138 = ssub.s32 %s21, %s47
    %s139 = ssub.s32 %s23, %s39
    %s140 = sor.u32 %s138, %s139
    %p141 = scmp.eq.s32.totalorder %s140, 0
    %s143 = sadd.s32 %s142, 1
    %s144 = scalar_select %p141, %s142, %s143
    %p147 = pneg %p141
    %p148 = scmp.eq.s32.totalorder %s14, 1
    %p149 = por %p147, %p148
    %p150 = scmp.ne.s32.totalorder %s142, %s145
    %p151 = scmp.eq.s32.totalorder %s14, 0
    %p152 = por %p150, %p151
    %p153 = scmp.ne.s32.totalorder %s142, %s145
    %p154 = scmp.eq.s32.totalorder %s19, 1
    %p155 = por %p153, %p154
    %p156 = scmp.ne.s32.totalorder %s145, %s146
    %p157 = scmp.eq.s32.totalorder %s19, 0
    %p158 = por %p156, %p157
    %p159 = scmp.ne.s32.totalorder %s145, %s146
    %p160 = scmp.eq.s32.totalorder %s20, 1
    %p161 = por %p159, %p160
    %p163 = scmp.ne.s32.totalorder %s146, %s162
    %p164 = scmp.eq.s32.totalorder %s20, 0
    %p165 = por %p163, %p164
    %s166 = ssub.s32 %s21, %s47
    %s167 = ssub.s32 %s23, %s39
    %s168 = sor.u32 %s166, %s167
    %p169 = scmp.eq.s32.totalorder %s168, 0
    %s171 = sadd.s32 %s170, 1
    %s172 = scalar_select %p169, %s170, %s171
    %p175 = pneg %p169
    %p176 = scmp.eq.s32.totalorder %s14, 1
    %p177 = por %p175, %p176
    %p178 = scmp.ne.s32.totalorder %s170, %s173
    %p179 = scmp.eq.s32.totalorder %s14, 0
    %p180 = por %p178, %p179
    %p181 = scmp.ne.s32.totalorder %s170, %s173
    %p182 = scmp.eq.s32.totalorder %s19, 1
    %p183 = por %p181, %p182
    %p184 = scmp.ne.s32.totalorder %s173, %s174
    %p185 = scmp.eq.s32.totalorder %s19, 0
    %p186 = por %p184, %p185
    %p187 = scmp.ne.s32.totalorder %s173, %s174
    %p188 = scmp.eq.s32.totalorder %s20, 1
    %p189 = por %p187, %p188
    %p191 = scmp.ne.s32.totalorder %s174, %s190
    %p192 = scmp.eq.s32.totalorder %s20, 0
    %p193 = por %p191, %p192
    %s194 = ssub.s32 %s21, %s47
    %s195 = ssub.s32 %s24, %s35
    %s196 = sor.u32 %s194, %s195
    %p197 = scmp.eq.s32.totalorder %s196, 0
    %s199 = sadd.s32 %s198, 1
    %s200 = scalar_select %p197, %s198, %s199
    %p203 = pneg %p197
    %p204 = scmp.eq.s32.totalorder %s14, 1
    %p205 = por %p203, %p204
    %p206 = scmp.ne.s32.totalorder %s198, %s201
    %p207 = scmp.eq.s32.totalorder %s14, 0
    %p208 = por %p206, %p207
    %p209 = scmp.ne.s32.totalorder %s198, %s201
    %p210 = scmp.eq.s32.totalorder %s19, 1
    %p211 = por %p209, %p210
    %p212 = scmp.ne.s32.totalorder %s201, %s202
    %p213 = scmp.eq.s32.totalorder %s19, 0
    %p214 = por %p212, %p213
    %p215 = scmp.ne.s32.totalorder %s201, %s202
    %p216 = scmp.eq.s32.totalorder %s20, 1
    %p217 = por %p215, %p216
    %p219 = scmp.ne.s32.totalorder %s202, %s218
    %p220 = scmp.eq.s32.totalorder %s20, 0
    %p221 = por %p219, %p220
    %s222 = ssub.s32 %s21, %s47
    %s223 = ssub.s32 %s24, %s35
    %s224 = sor.u32 %s222, %s223
    %p225 = scmp.eq.s32.totalorder %s224, 0
    %s227 = sadd.s32 %s226, 1
    %s228 = scalar_select %p225, %s226, %s227
    %p231 = pneg %p225
    %p232 = scmp.eq.s32.totalorder %s14, 1
    %p233 = por %p231, %p232
    %p234 = scmp.ne.s32.totalorder %s226, %s229
    %p235 = scmp.eq.s32.totalorder %s14, 0
    %p236 = por %p234, %p235
    %p237 = scmp.ne.s32.totalorder %s226, %s229
    %p238 = scmp.eq.s32.totalorder %s19, 1
    %p239 = por %p237, %p238
    %p240 = scmp.ne.s32.totalorder %s229, %s230
    %p241 = scmp.eq.s32.totalorder %s19, 0
    %p242 = por %p240, %p241
    %p243 = scmp.ne.s32.totalorder %s229, %s230
    %p244 = scmp.eq.s32.totalorder %s20, 1
    %p245 = por %p243, %p244
    %p247 = scmp.ne.s32.totalorder %s230, %s246
    %p248 = scmp.eq.s32.totalorder %s20, 0
    %p249 = por %p247, %p248
    %s250 = ssub.s32 %s21, %s47
    %s251 = ssub.s32 %s23, %s39
    %s252 = sor.u32 %s250, %s251
    %s253 = ssub.s32 %s24, %s35
    %s254 = sor.u32 %s252, %s253
    %p255 = scmp.eq.s32.totalorder %s254, 0
    %s257 = sadd.s32 %s256, 1
    %s258 = scalar_select %p255, %s256, %s257
    %p261 = pneg %p255
    %p262 = scmp.eq.s32.totalorder %s14, 1
    %p263 = por %p261, %p262
    %p264 = scmp.ne.s32.totalorder %s256, %s259
    %p265 = scmp.eq.s32.totalorder %s14, 0
    %p266 = por %p264, %p265
    %p267 = scmp.ne.s32.totalorder %s256, %s259
    %p268 = scmp.eq.s32.totalorder %s19, 1
    %p269 = por %p267, %p268
    %p270 = scmp.ne.s32.totalorder %s259, %s260
    %p271 = scmp.eq.s32.totalorder %s19, 0
    %p272 = por %p270, %p271
    %p273 = scmp.ne.s32.totalorder %s259, %s260
    %p274 = scmp.eq.s32.totalorder %s20, 1
    %p275 = por %p273, %p274
    %p277 = scmp.ne.s32.totalorder %s260, %s276
    %p278 = scmp.eq.s32.totalorder %s20, 0
    %p279 = por %p277, %p278
    %s280 = ssub.s32 %s21, %s47
    %s281 = ssub.s32 %s23, %s39
    %s282 = sor.u32 %s280, %s281
    %s283 = ssub.s32 %s22, %s43
    %s284 = sor.u32 %s282, %s283
    %p285 = scmp.eq.s32.totalorder %s284, 0
    %s287 = sadd.s32 %s286, 1
    %s288 = scalar_select %p285, %s286, %s287
    %p291 = pneg %p285
    %p292 = scmp.eq.s32.totalorder %s14, 1
    %p293 = por %p291, %p292
    %p294 = scmp.ne.s32.totalorder %s286, %s289
    %p295 = scmp.eq.s32.totalorder %s14, 0
    %p296 = por %p294, %p295
    %p297 = scmp.ne.s32.totalorder %s286, %s289
    %p298 = scmp.eq.s32.totalorder %s19, 1
    %p299 = por %p297, %p298
    %p300 = scmp.ne.s32.totalorder %s289, %s290
    %p301 = scmp.eq.s32.totalorder %s19, 0
    %p302 = por %p300, %p301
    %p303 = scmp.ne.s32.totalorder %s289, %s290
    %p304 = scmp.eq.s32.totalorder %s20, 1
    %p305 = por %p303, %p304
    %p307 = scmp.ne.s32.totalorder %s290, %s306
    %p308 = scmp.eq.s32.totalorder %s20, 0
    %p309 = por %p307, %p308
    %p310 = scmp.le.s32.totalorder 1, %s14
    %p311 = scmp.lt.s32.totalorder %s14, 3
    %p312 = pnand %p310, %p311
    %p313 = pneg %p312
    // Predicated region
    $region9: #{gemma_decoder_layer.6} parent=5 // pred_check
      _
    $region10: #{gemma_decoder_layer.6} parent=5 // pred_check_branch
      %315 = sbr.rel (%p312) target = $region12
    $region11: #{gemma_decoder_layer.6} parent=5 // pred_region
      %s316 = ssub.s32 %s14, 1
    $region12: #{gemma_decoder_layer.6} parent=5 // pred_fallthru
      _
    %p317 = scmp.lt.s32.totalorder %s14, 2
    // Predicated region
    $region13: #{gemma_decoder_layer.6} parent=5 // pred_check
      %p318 = pneg %p317
    $region14: #{gemma_decoder_layer.6} parent=5 // pred_check_branch
      %320 = sbr.rel (%p318) target = $region16
    $region15: #{gemma_decoder_layer.6} parent=5 // pred_region
      // Predicated region
      $region17: #{gemma_decoder_layer.6} parent=15 // pred_check
        %p321 = pneg %p64
      $region18: #{gemma_decoder_layer.6} parent=15 // pred_check_branch
        %323 = sbr.rel (%p321) target = $region20
      $region19: #{gemma_decoder_layer.6} parent=15 // pred_region
        %s324 = smul.u32 4, %s22
        %p325 = scmp.lt.s32.totalorder %s21, 1
        %s326 = scalar_select %p325, %s21, 1
        %p327 = scmp.lt.s32.totalorder %s23, 0
        %s328 = scalar_select %p327, %s23, 0
        %p329 = scmp.lt.s32.totalorder %s324, 3
        %s330 = scalar_select %p329, %s324, 3
        %s331 = smul.addr %s328, 4
        %s332 = sadd.s32 %s330, %s331
        %s333 = smul.addr %s326, 4
        %s334 = sadd.s32 %s332, %s333
        %s335 = smul.addr %s334, 4
        %s336 = scalar_lea.vmem %s0, %s335
        %s337 = smul.u32 4, %s22
      $region20: #{gemma_decoder_layer.6} parent=15 // pred_fallthru
        _
      // Predicated region
      $region21: #{gemma_decoder_layer.6} parent=15 // pred_check
        %p338 = pneg %p94
      $region22: #{gemma_decoder_layer.6} parent=15 // pred_check_branch
        %340 = sbr.rel (%p338) target = $region24
      $region23: #{gemma_decoder_layer.6} parent=15 // pred_region
        %p341 = scmp.lt.s32.totalorder %s21, 1
        %s342 = scalar_select %p341, %s21, 1
        %p343 = scmp.lt.s32.totalorder %s24, 0
        %s344 = scalar_select %p343, %s24, 0
        %p345 = scmp.lt.s32.totalorder %s22, 0
        %s346 = scalar_select %p345, %s22, 0
        %s347 = sadd.s32 %s346, %s344
        %s348 = sadd.s32 %s347, %s342
        %s349 = smul.addr %s348, 4
        %s350 = scalar_lea.vmem %s1, %s349
      $region24: #{gemma_decoder_layer.6} parent=15 // pred_fallthru
        _
      // Predicated region
      $region25: #{gemma_decoder_layer.6} parent=15 // pred_check
        %p351 = pneg %p124
      $region26: #{gemma_decoder_layer.6} parent=15 // pred_check_branch
        %353 = sbr.rel (%p351) target = $region28
      $region27: #{gemma_decoder_layer.6} parent=15 // pred_region
        %p354 = scmp.lt.s32.totalorder %s21, 1
        %s355 = scalar_select %p354, %s21, 1
        %p356 = scmp.lt.s32.totalorder %s24, 0
        %s357 = scalar_select %p356, %s24, 0
        %p358 = scmp.lt.s32.totalorder %s22, 0
        %s359 = scalar_select %p358, %s22, 0
        %s360 = sadd.s32 %s359, %s357
        %s361 = sadd.s32 %s360, %s355
        %s362 = smul.addr %s361, 4
        %s363 = scalar_lea.vmem %s2, %s362
      $region28: #{gemma_decoder_layer.6} parent=15 // pred_fallthru
        _
      // Predicated region
      $region29: #{gemma_decoder_layer.6} parent=15 // pred_check
        %p364 = pneg %p152
      $region30: #{gemma_decoder_layer.6} parent=15 // pred_check_branch
        %366 = sbr.rel (%p364) target = $region32
      $region31: #{gemma_decoder_layer.6} parent=15 // pred_region
        %p367 = scmp.lt.s32.totalorder %s21, 1
        %s368 = scalar_select %p367, %s21, 1
        %p369 = scmp.lt.s32.totalorder %s23, 0
        %s370 = scalar_select %p369, %s23, 0
        %s371 = sadd.s32 %s370, %s368
        %s372 = smul.addr %s371, 8
        %s373 = scalar_lea.vmem %s3, %s372
      $region32: #{gemma_decoder_layer.6} parent=15 // pred_fallthru
        _
      // Predicated region
      $region33: #{gemma_decoder_layer.6} parent=15 // pred_check
        %p374 = pneg %p180
      $region34: #{gemma_decoder_layer.6} parent=15 // pred_check_branch
        %376 = sbr.rel (%p374) target = $region36
      $region35: #{gemma_decoder_layer.6} parent=15 // pred_region
        %p377 = scmp.lt.s32.totalorder %s21, 1
        %s378 = scalar_select %p377, %s21, 1
        %p379 = scmp.lt.s32.totalorder %s23, 0
        %s380 = scalar_select %p379, %s23, 0
        %s381 = sadd.s32 %s380, %s378
        %s382 = smul.addr %s381, 8
        %s383 = scalar_lea.vmem %s4, %s382
      $region36: #{gemma_decoder_layer.6} parent=15 // pred_fallthru
        _
      // Predicated region
      $region37: #{gemma_decoder_layer.6} parent=15 // pred_check
        %p384 = pneg %p208
      $region38: #{gemma_decoder_layer.6} parent=15 // pred_check_branch
        %386 = sbr.rel (%p384) target = $region40
      $region39: #{gemma_decoder_layer.6} parent=15 // pred_region
        %p387 = scmp.lt.s32.totalorder %s21, 1
        %s388 = scalar_select %p387, %s21, 1
        %p389 = scmp.lt.s32.totalorder %s24, 0
        %s390 = scalar_select %p389, %s24, 0
        %s391 = sadd.s32 %s390, %s388
        %s392 = smul.addr %s391, 8
        %s393 = scalar_lea.vmem %s5, %s392
      $region40: #{gemma_decoder_layer.6} parent=15 // pred_fallthru
        _
      // Predicated region
      $region41: #{gemma_decoder_layer.6} parent=15 // pred_check
        %p394 = pneg %p236
      $region42: #{gemma_decoder_layer.6} parent=15 // pred_check_branch
        %396 = sbr.rel (%p394) target = $region44
      $region43: #{gemma_decoder_layer.6} parent=15 // pred_region
        %p397 = scmp.lt.s32.totalorder %s21, 1
        %s398 = scalar_select %p397, %s21, 1
        %p399 = scmp.lt.s32.totalorder %s24, 0
        %s400 = scalar_select %p399, %s24, 0
        %s401 = sadd.s32 %s400, %s398
        %s402 = smul.addr %s401, 8
        %s403 = scalar_lea.vmem %s6, %s402
      $region44: #{gemma_decoder_layer.6} parent=15 // pred_fallthru
        _
      // Predicated region
      $region45: #{gemma_decoder_layer.6} parent=15 // pred_check
        %p404 = pneg %p266
      $region46: #{gemma_decoder_layer.6} parent=15 // pred_check_branch
        %406 = sbr.rel (%p404) target = $region48
      $region47: #{gemma_decoder_layer.6} parent=15 // pred_region
        %p407 = scmp.lt.s32.totalorder %s21, 1
        %s408 = scalar_select %p407, %s21, 1
        %p409 = scmp.lt.s32.totalorder %s23, 0
        %s410 = scalar_select %p409, %s23, 0
        %p411 = scmp.lt.s32.totalorder %s24, 0
        %s412 = scalar_select %p411, %s24, 0
        %s413 = sadd.s32 %s412, %s410
        %s414 = sadd.s32 %s413, %s408
        %s415 = smul.addr %s414, 8
        %s416 = scalar_lea.vmem %s7, %s415
      $region48: #{gemma_decoder_layer.6} parent=15 // pred_fallthru
        _
    $region16: #{gemma_decoder_layer.6} parent=5 // pred_fallthru
      _
    %p417 = scmp.le.s32.totalorder 1, %s14
    %p418 = scmp.lt.s32.totalorder %s14, 3
    %p419 = pnand %p417, %p418
    %p420 = pneg %p419
    // Predicated region
    $region49: #{gemma_decoder_layer.6} parent=5 // pred_check
      _
    $region50: #{gemma_decoder_layer.6} parent=5 // pred_check_branch
      %422 = sbr.rel (%p419) target = $region52
    $region51: #{gemma_decoder_layer.6} parent=5 // pred_region
      %s423 = ssub.s32 %s14, 1
      %s424 = smul.u32 4, %s26
      %p425 = scmp.lt.s32.totalorder %s25, 1
      %s426 = scalar_select %p425, %s25, 1
      %p427 = scmp.lt.s32.totalorder %s27, 0
      %s428 = scalar_select %p427, %s27, 0
      %p429 = scmp.lt.s32.totalorder %s424, 3
      %s430 = scalar_select %p429, %s424, 3
      %s431 = smul.addr %s428, 4
      %s432 = sadd.s32 %s430, %s431
      %s433 = smul.addr %s426, 4
      %s434 = sadd.s32 %s432, %s433
      %s435 = smul.addr %s434, 4
      %s436 = scalar_lea.vmem %s0, %s435
      %p437 = pneg %p70
      %p438 = pneg %p67
      %p439 = scmp.lt.s32.totalorder %s25, 1
      %s440 = scalar_select %p439, %s25, 1
      %p441 = scmp.lt.s32.totalorder %s28, 0
      %s442 = scalar_select %p441, %s28, 0
      %p443 = scmp.lt.s32.totalorder %s26, 0
      %s444 = scalar_select %p443, %s26, 0
      %s445 = sadd.s32 %s444, %s442
      %s446 = sadd.s32 %s445, %s440
      %s447 = smul.addr %s446, 4
      %s448 = scalar_lea.vmem %s1, %s447
      %p449 = pneg %p100
      %p450 = pneg %p97
      %p451 = scmp.lt.s32.totalorder %s25, 1
      %s452 = scalar_select %p451, %s25, 1
      %p453 = scmp.lt.s32.totalorder %s28, 0
      %s454 = scalar_select %p453, %s28, 0
      %p455 = scmp.lt.s32.totalorder %s26, 0
      %s456 = scalar_select %p455, %s26, 0
      %s457 = sadd.s32 %s456, %s454
      %s458 = sadd.s32 %s457, %s452
      %s459 = smul.addr %s458, 4
      %s460 = scalar_lea.vmem %s2, %s459
      %p461 = pneg %p130
      %p462 = pneg %p127
      %p463 = scmp.lt.s32.totalorder %s25, 1
      %s464 = scalar_select %p463, %s25, 1
      %p465 = scmp.lt.s32.totalorder %s27, 0
      %s466 = scalar_select %p465, %s27, 0
      %s467 = sadd.s32 %s466, %s464
      %s468 = smul.addr %s467, 8
      %s469 = scalar_lea.vmem %s3, %s468
      %p470 = pneg %p158
      %p471 = pneg %p155
      %p472 = scmp.lt.s32.totalorder %s25, 1
      %s473 = scalar_select %p472, %s25, 1
      %p474 = scmp.lt.s32.totalorder %s27, 0
      %s475 = scalar_select %p474, %s27, 0
      %s476 = sadd.s32 %s475, %s473
      %s477 = smul.addr %s476, 8
      %s478 = scalar_lea.vmem %s4, %s477
      %p479 = pneg %p186
      %p480 = pneg %p183
      %p481 = scmp.lt.s32.totalorder %s25, 1
      %s482 = scalar_select %p481, %s25, 1
      %p483 = scmp.lt.s32.totalorder %s28, 0
      %s484 = scalar_select %p483, %s28, 0
      %s485 = sadd.s32 %s484, %s482
      %s486 = smul.addr %s485, 8
      %s487 = scalar_lea.vmem %s5, %s486
      %p488 = pneg %p214
      %p489 = pneg %p211
      %p490 = scmp.lt.s32.totalorder %s25, 1
      %s491 = scalar_select %p490, %s25, 1
      %p492 = scmp.lt.s32.totalorder %s28, 0
      %s493 = scalar_select %p492, %s28, 0
      %s494 = sadd.s32 %s493, %s491
      %s495 = smul.addr %s494, 8
      %s496 = scalar_lea.vmem %s6, %s495
      %p497 = pneg %p242
      %p498 = pneg %p239
      %p499 = scmp.lt.s32.totalorder %s25, 1
      %s500 = scalar_select %p499, %s25, 1
      %p501 = scmp.lt.s32.totalorder %s27, 0
      %s502 = scalar_select %p501, %s27, 0
      %p503 = scmp.lt.s32.totalorder %s28, 0
      %s504 = scalar_select %p503, %s28, 0
      %s505 = sadd.s32 %s504, %s502
      %s506 = sadd.s32 %s505, %s500
      %s507 = smul.addr %s506, 8
      %s508 = scalar_lea.vmem %s7, %s507
      %p509 = pneg %p272
      %p510 = pneg %p269
      %p511 = pneg %p302
      %p512 = pneg %p299
      %s513 = smul.u32 4, %s26
      %p514 = scmp.lt.s32.totalorder %s25, 1
      %s515 = scalar_select %p514, %s25, 1
      %p516 = scmp.lt.s32.totalorder %s27, 0
      %s517 = scalar_select %p516, %s27, 0
      %p518 = scmp.lt.s32.totalorder %s513, 3
      %s519 = scalar_select %p518, %s513, 3
      %s520 = smul.addr %s517, 4
      %s521 = sadd.s32 %s519, %s520
      %s522 = smul.addr %s515, 4
      %s523 = sadd.s32 %s521, %s522
      %s524 = smul.addr %s523, 4
      %s525 = scalar_lea.vmem %s8, %s524
      %s526 = smul.u32 4, %s26
      %p527 = scmp.lt.s32.totalorder %s25, 1
      %s528 = scalar_select %p527, %s25, 1
      %p529 = scmp.lt.s32.totalorder %s27, 0
      %s530 = scalar_select %p529, %s27, 0
      %p531 = scmp.lt.s32.totalorder %s526, 3
      %s532 = scalar_select %p531, %s526, 3
      %s533 = smul.addr %s530, 4
      %s534 = sadd.s32 %s532, %s533
      %s535 = smul.addr %s528, 4
      %s536 = sadd.s32 %s534, %s535
      %s537 = smul.addr %s536, 4
      %s538 = scalar_lea.vmem %s0, %s537
      %s539 = smul.u32 4, %s26
      %p540 = scmp.lt.s32.totalorder %s25, 1
      %s541 = scalar_select %p540, %s25, 1
      %p542 = scmp.lt.s32.totalorder %s28, 0
      %s543 = scalar_select %p542, %s28, 0
      %p544 = scmp.lt.s32.totalorder %s26, 0
      %s545 = scalar_select %p544, %s26, 0
      %s546 = sadd.s32 %s545, %s543
      %s547 = sadd.s32 %s546, %s541
      %s548 = smul.addr %s547, 4
      %s549 = scalar_lea.vmem %s1, %s548
      %p550 = scmp.lt.s32.totalorder %s25, 1
      %s551 = scalar_select %p550, %s25, 1
      %p552 = scmp.lt.s32.totalorder %s28, 0
      %s553 = scalar_select %p552, %s28, 0
      %p554 = scmp.lt.s32.totalorder %s26, 0
      %s555 = scalar_select %p554, %s26, 0
      %s556 = sadd.s32 %s555, %s553
      %s557 = sadd.s32 %s556, %s551
      %s558 = smul.addr %s557, 4
      %s559 = scalar_lea.vmem %s2, %s558
      %p560 = scmp.lt.s32.totalorder %s25, 1
      %s561 = scalar_select %p560, %s25, 1
      %p562 = scmp.lt.s32.totalorder %s27, 0
      %s563 = scalar_select %p562, %s27, 0
      %s564 = sadd.s32 %s563, %s561
      %s565 = smul.addr %s564, 8
      %s566 = scalar_lea.vmem %s3, %s565
      %p567 = scmp.lt.s32.totalorder %s25, 1
      %s568 = scalar_select %p567, %s25, 1
      %p569 = scmp.lt.s32.totalorder %s27, 0
      %s570 = scalar_select %p569, %s27, 0
      %s571 = sadd.s32 %s570, %s568
      %s572 = smul.addr %s571, 8
      %s573 = scalar_lea.vmem %s4, %s572
      %p574 = scmp.lt.s32.totalorder %s25, 1
      %s575 = scalar_select %p574, %s25, 1
      %p576 = scmp.lt.s32.totalorder %s28, 0
      %s577 = scalar_select %p576, %s28, 0
      %s578 = sadd.s32 %s577, %s575
      %s579 = smul.addr %s578, 8
      %s580 = scalar_lea.vmem %s5, %s579
      %p581 = scmp.lt.s32.totalorder %s25, 1
      %s582 = scalar_select %p581, %s25, 1
      %p583 = scmp.lt.s32.totalorder %s28, 0
      %s584 = scalar_select %p583, %s28, 0
      %s585 = sadd.s32 %s584, %s582
      %s586 = smul.addr %s585, 8
      %s587 = scalar_lea.vmem %s6, %s586
      %p588 = scmp.lt.s32.totalorder %s25, 1
      %s589 = scalar_select %p588, %s25, 1
      %p590 = scmp.lt.s32.totalorder %s27, 0
      %s591 = scalar_select %p590, %s27, 0
      %p592 = scmp.lt.s32.totalorder %s28, 0
      %s593 = scalar_select %p592, %s28, 0
      %s594 = sadd.s32 %s593, %s591
      %s595 = sadd.s32 %s594, %s589
      %s596 = smul.addr %s595, 8
      %s597 = scalar_lea.vmem %s7, %s596
      %s598 = smul.u32 4, %s26
      %p599 = scmp.lt.s32.totalorder %s25, 1
      %s600 = scalar_select %p599, %s25, 1
      %p601 = scmp.lt.s32.totalorder %s27, 0
      %s602 = scalar_select %p601, %s27, 0
      %p603 = scmp.lt.s32.totalorder %s598, 3
      %s604 = scalar_select %p603, %s598, 3
      %s605 = smul.addr %s602, 4
      %s606 = sadd.s32 %s604, %s605
      %s607 = smul.addr %s600, 4
      %s608 = sadd.s32 %s606, %s607
      %s609 = smul.addr %s608, 4
      %s610 = scalar_lea.vmem %s8, %s609
      %s611 = smul.u32 4, %s26
      %p613 = scmp.eq.s32.totalorder %s28, 0
      // Predicated region
      $region53: #{gemma_decoder_layer.6} parent=51 // pred_check
        %p614 = pneg %p613
      $region54: #{gemma_decoder_layer.6} parent=51 // pred_check_branch
        %616 = sbr.rel (%p614) target = $region56
      $region55: #{gemma_decoder_layer.6} parent=51 // pred_region
        %v617 = vld [vmem:[%s538] sm:$0xff]
        %v618 = vld [vmem:[%s538 + $0x8] sm:$0xff]
        %v619 = vunpack.c.l.bf16 %v617
        %v620 = vunpack.c.h.bf16 %v617
        %v621 = vunpack.c.l.bf16 %v618
        %v622 = vunpack.c.h.bf16 %v618
        %v623 = vcombine.low %v619, %v621
        %v624 = vcombine.high %v619, %v621
        %v626 = vunpack.c.l.s4 1983009808
        %v627 = vunpack.c.0.s8 %v626
        %v628 = vlaneseq
        %v629 = vshrl.u32 %v628, 7
        %v630 = vsub.s32 %v627, %v629
        %v631 = vrot.slane %v623, %v630
        %v633 = vunpack.c.l.s4 1983009808
        %v634 = vunpack.c.0.s8 %v633
        %v635 = vlaneseq
        %v636 = vshrl.u32 %v635, 7
        %v637 = vsub.s32 %v634, %v636
        %v638 = vrot.slane %v624, %v637
        %v639 = vcombine.low %v620, %v622
        %v640 = vcombine.high %v620, %v622
        %v642 = vunpack.c.l.s4 1983009808
        %v643 = vunpack.c.0.s8 %v642
        %v644 = vlaneseq
        %v645 = vshrl.u32 %v644, 7
        %v646 = vsub.s32 %v643, %v645
        %v647 = vrot.slane %v639, %v646
        %v649 = vunpack.c.l.s4 1983009808
        %v650 = vunpack.c.0.s8 %v649
        %v651 = vlaneseq
        %v652 = vshrl.u32 %v651, 7
        %v653 = vsub.s32 %v650, %v652
        %v654 = vrot.slane %v640, %v653
        %v655 = vcombine.low %v631, %v647
        %v656 = vcombine.high %v631, %v647
        %v658 = vunpack.c.l.s4 1934713408
        %v659 = vunpack.c.0.s8 %v658
        %v660 = vlaneseq
        %v661 = vshrl.u32 %v660, 7
        %v662 = vsub.s32 %v659, %v661
        %v663 = vrot.slane %v655, %v662
        %v665 = vunpack.c.l.s4 1934713408
        %v666 = vunpack.c.0.s8 %v665
        %v667 = vlaneseq
        %v668 = vshrl.u32 %v667, 7
        %v669 = vsub.s32 %v666, %v668
        %v670 = vrot.slane %v656, %v669
        %v671 = vcombine.low %v638, %v654
        %v672 = vcombine.high %v638, %v654
        %v674 = vunpack.c.l.s4 1934713408
        %v675 = vunpack.c.0.s8 %v674
        %v676 = vlaneseq
        %v677 = vshrl.u32 %v676, 7
        %v678 = vsub.s32 %v675, %v677
        %v679 = vrot.slane %v671, %v678
        %v681 = vunpack.c.l.s4 1934713408
        %v682 = vunpack.c.0.s8 %v681
        %v683 = vlaneseq
        %v684 = vshrl.u32 %v683, 7
        %v685 = vsub.s32 %v682, %v684
        %v686 = vrot.slane %v672, %v685
        %v687 = vcombine.high %v663, 0.0
        %v688 = vcombine.high %v670, 0.0
        %v689 = vcombine.high %v679, 0.0
        %v690 = vcombine.high %v686, 0.0
        %v691 = vld [vmem:[%s566] sm:$0xff]
        %v693 = vcombine.high %v691, %v691
        %v695 = vunpack.c.l.s4 1966171168
        %v696 = vunpack.c.0.s8 %v695
        %v697 = vlaneseq
        %v698 = vshrl.u32 %v697, 7
        %v699 = vsub.s32 %v696, %v698
        %v700 = vrot.slane %v691, %v699
        %v702 = vunpack.c.l.s4 1966171168
        %v703 = vunpack.c.0.s8 %v702
        %v704 = vlaneseq
        %v705 = vshrl.u32 %v704, 7
        %v706 = vsub.s32 %v703, %v705
        %v707 = vrot.slane %v693, %v706
        %v708 = vcombine.high %v700, %v700
        %v709 = vcombine.high %v707, %v707
        %v711 = vunpack.c.l.s4 1966171168
        %v712 = vunpack.c.0.s8 %v711
        %v713 = vlaneseq
        %v714 = vshrl.u32 %v713, 7
        %v715 = vsub.s32 %v712, %v714
        %v716 = vrot.slane %v700, %v715
        %v718 = vunpack.c.l.s4 1966171168
        %v719 = vunpack.c.0.s8 %v718
        %v720 = vlaneseq
        %v721 = vshrl.u32 %v720, 7
        %v722 = vsub.s32 %v719, %v721
        %v723 = vrot.slane %v707, %v722
        %v725 = vunpack.c.l.s4 1966171168
        %v726 = vunpack.c.0.s8 %v725
        %v727 = vlaneseq
        %v728 = vshrl.u32 %v727, 7
        %v729 = vsub.s32 %v726, %v728
        %v730 = vrot.slane %v708, %v729
        %v732 = vunpack.c.l.s4 1966171168
        %v733 = vunpack.c.0.s8 %v732
        %v734 = vlaneseq
        %v735 = vshrl.u32 %v734, 7
        %v736 = vsub.s32 %v733, %v735
        %v737 = vrot.slane %v709, %v736
        %v738 = vcombine.high %v716, %v716
        %v739 = vcombine.high %v723, %v723
        %v740 = vcombine.high %v730, %v730
        %v741 = vcombine.high %v737, %v737
        %v742 = vld [vmem:[%s573] sm:$0xff]
        %v744 = vcombine.high %v742, %v742
        %v746 = vunpack.c.l.s4 1966171168
        %v747 = vunpack.c.0.s8 %v746
        %v748 = vlaneseq
        %v749 = vshrl.u32 %v748, 7
        %v750 = vsub.s32 %v747, %v749
        %v751 = vrot.slane %v742, %v750
        %v753 = vunpack.c.l.s4 1966171168
        %v754 = vunpack.c.0.s8 %v753
        %v755 = vlaneseq
        %v756 = vshrl.u32 %v755, 7
        %v757 = vsub.s32 %v754, %v756
        %v758 = vrot.slane %v744, %v757
        %v759 = vcombine.high %v751, %v751
        %v760 = vcombine.high %v758, %v758
        %v762 = vunpack.c.l.s4 1966171168
        %v763 = vunpack.c.0.s8 %v762
        %v764 = vlaneseq
        %v765 = vshrl.u32 %v764, 7
        %v766 = vsub.s32 %v763, %v765
        %v767 = vrot.slane %v751, %v766
        %v769 = vunpack.c.l.s4 1966171168
        %v770 = vunpack.c.0.s8 %v769
        %v771 = vlaneseq
        %v772 = vshrl.u32 %v771, 7
        %v773 = vsub.s32 %v770, %v772
        %v774 = vrot.slane %v758, %v773
        %v776 = vunpack.c.l.s4 1966171168
        %v777 = vunpack.c.0.s8 %v776
        %v778 = vlaneseq
        %v779 = vshrl.u32 %v778, 7
        %v780 = vsub.s32 %v777, %v779
        %v781 = vrot.slane %v759, %v780
        %v783 = vunpack.c.l.s4 1966171168
        %v784 = vunpack.c.0.s8 %v783
        %v785 = vlaneseq
        %v786 = vshrl.u32 %v785, 7
        %v787 = vsub.s32 %v784, %v786
        %v788 = vrot.slane %v760, %v787
        %v789 = vcombine.high %v767, %v767
        %v790 = vcombine.high %v774, %v774
        %v791 = vcombine.high %v781, %v781
        %v792 = vcombine.high %v788, %v788
        %v793 = vlaneseq
        %v794 = vshrl.u32 %v793, 7
        %v795 = vsub.s32 0, %v794
        %v796 = vrot.slane %v716, %v795
        %v797 = vlaneseq
        %v798 = vshrl.u32 %v797, 7
        %v799 = vsub.s32 0, %v798
        %v800 = vrot.slane %v730, %v799
        %v801 = vlaneseq
        %v802 = vshrl.u32 %v801, 7
        %v803 = vsub.s32 0, %v802
        %v804 = vrot.slane %v738, %v803
        %v805 = vlaneseq
        %v806 = vshrl.u32 %v805, 7
        %v807 = vsub.s32 0, %v806
        %v808 = vrot.slane %v740, %v807
        %v809 = vlaneseq
        %v810 = vshrl.u32 %v809, 7
        %v811 = vsub.s32 0, %v810
        %v812 = vrot.slane %v723, %v811
        %v813 = vlaneseq
        %v814 = vshrl.u32 %v813, 7
        %v815 = vsub.s32 0, %v814
        %v816 = vrot.slane %v737, %v815
        %v817 = vlaneseq
        %v818 = vshrl.u32 %v817, 7
        %v819 = vsub.s32 0, %v818
        %v820 = vrot.slane %v739, %v819
        %v821 = vlaneseq
        %v822 = vshrl.u32 %v821, 7
        %v823 = vsub.s32 0, %v822
        %v824 = vrot.slane %v741, %v823
        %v833 = vmul.f32 %v663, %v796
        %v834 = vmul.f32 %v687, %v800
        %v835 = vmul.f32 %v670, %v804
        %v836 = vmul.f32 %v688, %v808
        %v837 = vmul.f32 %v679, %v812
        %v838 = vmul.f32 %v689, %v816
        %v839 = vmul.f32 %v686, %v820
        %v840 = vmul.f32 %v690, %v824
        %v841 = vsub.f32 0.0, %v663
        %v842 = vsub.f32 0.0, %v687
        %v843 = vsub.f32 0.0, %v670
        %v844 = vsub.f32 0.0, %v688
        %v845 = vsub.f32 0.0, %v679
        %v846 = vsub.f32 0.0, %v689
        %v847 = vsub.f32 0.0, %v686
        %v848 = vsub.f32 0.0, %v690
        %857 = vrot.lane.b32.xlu0 %v841, 64
        %v858 = vpop.permute.xlu0 %857
        %859 = vrot.lane.b32.xlu0 %v842, 64
        %v860 = vpop.permute.xlu0 %859
        %861 = vrot.lane.b32.xlu0 %v843, 64
        %v862 = vpop.permute.xlu0 %861
        %863 = vrot.lane.b32.xlu0 %v844, 64
        %v864 = vpop.permute.xlu0 %863
        %865 = vrot.lane.b32.xlu0 %v845, 64
        %v866 = vpop.permute.xlu0 %865
        %867 = vrot.lane.b32.xlu0 %v846, 64
        %v868 = vpop.permute.xlu0 %867
        %869 = vrot.lane.b32.xlu0 %v847, 64
        %v870 = vpop.permute.xlu0 %869
        %871 = vrot.lane.b32.xlu0 %v848, 64
        %v872 = vpop.permute.xlu0 %871
        %889 = vrot.lane.b32.xlu0 %v663, 64
        %v890 = vpop.permute.xlu0 %889
        %891 = vrot.lane.b32.xlu0 %v687, 64
        %v892 = vpop.permute.xlu0 %891
        %893 = vrot.lane.b32.xlu0 %v670, 64
        %v894 = vpop.permute.xlu0 %893
        %895 = vrot.lane.b32.xlu0 %v688, 64
        %v896 = vpop.permute.xlu0 %895
        %897 = vrot.lane.b32.xlu0 %v679, 64
        %v898 = vpop.permute.xlu0 %897
        %899 = vrot.lane.b32.xlu0 %v689, 64
        %v900 = vpop.permute.xlu0 %899
        %901 = vrot.lane.b32.xlu0 %v686, 64
        %v902 = vpop.permute.xlu0 %901
        %903 = vrot.lane.b32.xlu0 %v690, 64
        %v904 = vpop.permute.xlu0 %903
        %vm913 = vcmask 523264
        %v914 = vsel %vm913, %v858, %v890
        %v915 = vsel %vm913, %v860, %v892
        %v916 = vsel %vm913, %v862, %v894
        %v917 = vsel %vm913, %v864, %v896
        %v918 = vsel %vm913, %v866, %v898
        %v919 = vsel %vm913, %v868, %v900
        %v920 = vsel %vm913, %v870, %v902
        %v921 = vsel %vm913, %v872, %v904
        %v922 = vlaneseq
        %v923 = vshrl.u32 %v922, 7
        %v924 = vsub.s32 0, %v923
        %v925 = vrot.slane %v767, %v924
        %v926 = vlaneseq
        %v927 = vshrl.u32 %v926, 7
        %v928 = vsub.s32 0, %v927
        %v929 = vrot.slane %v781, %v928
        %v930 = vlaneseq
        %v931 = vshrl.u32 %v930, 7
        %v932 = vsub.s32 0, %v931
        %v933 = vrot.slane %v789, %v932
        %v934 = vlaneseq
        %v935 = vshrl.u32 %v934, 7
        %v936 = vsub.s32 0, %v935
        %v937 = vrot.slane %v791, %v936
        %v938 = vlaneseq
        %v939 = vshrl.u32 %v938, 7
        %v940 = vsub.s32 0, %v939
        %v941 = vrot.slane %v774, %v940
        %v942 = vlaneseq
        %v943 = vshrl.u32 %v942, 7
        %v944 = vsub.s32 0, %v943
        %v945 = vrot.slane %v788, %v944
        %v946 = vlaneseq
        %v947 = vshrl.u32 %v946, 7
        %v948 = vsub.s32 0, %v947
        %v949 = vrot.slane %v790, %v948
        %v950 = vlaneseq
        %v951 = vshrl.u32 %v950, 7
        %v952 = vsub.s32 0, %v951
        %v953 = vrot.slane %v792, %v952
        %v962 = vmul.f32 %v914, %v925
        %v963 = vmul.f32 %v915, %v929
        %v964 = vmul.f32 %v916, %v933
        %v965 = vmul.f32 %v917, %v937
        %v966 = vmul.f32 %v918, %v941
        %v967 = vmul.f32 %v919, %v945
        %v968 = vmul.f32 %v920, %v949
        %v969 = vmul.f32 %v921, %v953
        %v970 = vadd.f32 %v833, %v962
        %v971 = vadd.f32 %v834, %v963
        %v972 = vadd.f32 %v835, %v964
        %v973 = vadd.f32 %v836, %v965
        %v974 = vadd.f32 %v837, %v966
        %v975 = vadd.f32 %v838, %v967
        %v976 = vadd.f32 %v839, %v968
        %v977 = vadd.f32 %v840, %v969
        %v978 = vmul.f32 %v970, 0.088388346
        %v979 = vmul.f32 %v971, 0.088388346
        %v980 = vmul.f32 %v972, 0.088388346
        %v981 = vmul.f32 %v973, 0.088388346
        %v982 = vmul.f32 %v974, 0.088388346
        %v983 = vmul.f32 %v975, 0.088388346
        %v984 = vmul.f32 %v976, 0.088388346
        %v985 = vmul.f32 %v977, 0.088388346
        %v994 = vcombine.low %v978, %v979
        %v995 = vcombine.low %v980, %v981
        %v996 = vcombine.low %v982, %v983
        %v997 = vcombine.low %v984, %v985
        %v1002 = vpack.c.bf16 %v995, %v994
        %v1003 = vpack.c.bf16 %v997, %v996
        %1004 = vst [vmem:[#allocation2] sm:$0xff] %v1002
        %1005 = vst [vmem:[#allocation2 + $0x8] sm:$0xff] %v1003
        %vm1006 = vcmask 3072
        %1007 = vst.msk [vmem:[#allocation3] sm:$0xf] %vm1006, -inf
        %1008 = vst.msk [vmem:[#allocation3 + $0x4] sm:$0xf] %vm1006, -inf
        %1009 = vst.msk [vmem:[#allocation3 + $0x8] sm:$0xf] %vm1006, -inf
        %1010 = vst.msk [vmem:[#allocation3 + $0xc] sm:$0xf] %vm1006, -inf
        %1011 = vst.msk [vmem:[#allocation3 + $0x10] sm:$0xf] %vm1006, -inf
        %1012 = vst.msk [vmem:[#allocation3 + $0x14] sm:$0xf] %vm1006, -inf
        %1013 = vst.msk [vmem:[#allocation3 + $0x18] sm:$0xf] %vm1006, -inf
        %1014 = vst.msk [vmem:[#allocation3 + $0x1c] sm:$0xf] %vm1006, -inf
        %1015 = vst.msk [vmem:[#allocation4] sm:$0xf] %vm1006, 0.0
        %1016 = vst.msk [vmem:[#allocation4 + $0x4] sm:$0xf] %vm1006, 0.0
        %1017 = vst.msk [vmem:[#allocation4 + $0x8] sm:$0xf] %vm1006, 0.0
        %1018 = vst.msk [vmem:[#allocation4 + $0xc] sm:$0xf] %vm1006, 0.0
        %1019 = vst.msk [vmem:[#allocation4 + $0x10] sm:$0xf] %vm1006, 0.0
        %1020 = vst.msk [vmem:[#allocation4 + $0x14] sm:$0xf] %vm1006, 0.0
        %1021 = vst.msk [vmem:[#allocation4 + $0x18] sm:$0xf] %vm1006, 0.0
        %1022 = vst.msk [vmem:[#allocation4 + $0x1c] sm:$0xf] %vm1006, 0.0
        %1023 = vst [vmem:[#allocation5] sm:$0xf] 0.0
        %1024 = vst [vmem:[#allocation5 + $0x4] sm:$0xf] 0.0
        %1025 = vst [vmem:[#allocation5 + $0x8] sm:$0xf] 0.0
        %1026 = vst [vmem:[#allocation5 + $0xc] sm:$0xf] 0.0
        %1027 = vst [vmem:[#allocation5 + $0x10] sm:$0xf] 0.0
        %1028 = vst [vmem:[#allocation5 + $0x14] sm:$0xf] 0.0
        %1029 = vst [vmem:[#allocation5 + $0x18] sm:$0xf] 0.0
        %1030 = vst [vmem:[#allocation5 + $0x1c] sm:$0xf] 0.0
      $region56: #{gemma_decoder_layer.6} parent=51 // pred_fallthru
        _
      %v1031 = vld [vmem:[%s549] sm:$0xf]
      %v1032 = vunpack.c.l.bf16 %v1031
      %v1033 = vld [vmem:[%s580] sm:$0xff]
      %v1034 = vmul.f32 %v1032, %v1033
      %v1035 = vsub.f32 0.0, %v1032
      %1037 = vrot.lane.b32.xlu0 %v1035, 64
      %v1038 = vpop.permute.xlu0 %1037
      %1041 = vrot.lane.b32.xlu0 %v1032, 64
      %v1042 = vpop.permute.xlu0 %1041
      %vm1044 = vcmask 523264
      %v1045 = vsel %vm1044, %v1038, %v1042
      %v1046 = vld [vmem:[%s587] sm:$0xff]
      %v1047 = vmul.f32 %v1045, %v1046
      %v1048 = vadd.f32 %v1034, %v1047
      %v1049 = vpack.c.bf16 %v1048, %v1048
      %v1050 = vld [vmem:[%s559] sm:$0xf]
      %v1051 = vld [vmem:[#allocation2] sm:$0xff]
      %v1052 = vld [vmem:[#allocation2 + $0x8] sm:$0xff]
      %1053 = vmatprep.subr.bf16.mxu0 0
      %1054 = vmatpush1.bf16.xpose.msra.mxu0 %v1049
      %1055 = vmatprep.subr.bf16.mxu0 0
      %1056 = vmatpush1.bf16.xpose.msra.mxu0 0
      %1057 = vmatprep.subr.bf16.mxu0 0
      %1058 = vmatpush1.bf16.xpose.msra.mxu0 0
      %1059 = vmatprep.subr.bf16.mxu0 0
      %1060 = vmatpush1.bf16.xpose.msra.mxu0 0
      %1061 = vmatprep.subr.bf16.mxu0 0
      %1062 = vmatpush1.bf16.xpose.msra.mxu0 0
      %1063 = vmatprep.subr.bf16.mxu0 0
      %1064 = vmatpush1.bf16.xpose.msra.mxu0 0
      %1065 = vmatprep.subr.bf16.mxu0 0
      %1066 = vmatpush1.bf16.xpose.msra.mxu0 0
      %1067 = vmatprep.subr.bf16.mxu0 0
      %1068 = vmatpush1.bf16.xpose.msra.mxu0 0
      %1069 = vmatprep.subr.bf16.mxu0 0
      %1070 = vmatpush1.bf16.xpose.msra.mxu0 0
      %1071 = vmatprep.subr.bf16.mxu0 0
      %1072 = vmatpush1.bf16.xpose.msra.mxu0 0
      %1073 = vmatprep.subr.bf16.mxu0 0
      %1074 = vmatpush1.bf16.xpose.msra.mxu0 0
      %1075 = vmatprep.subr.bf16.mxu0 0
      %1076 = vmatpush1.bf16.xpose.msra.mxu0 0
      %1077 = vmatprep.subr.bf16.mxu0 0
      %1078 = vmatpush1.bf16.xpose.msra.mxu0 0
      %1079 = vmatprep.subr.bf16.mxu0 0
      %1080 = vmatpush1.bf16.xpose.msra.mxu0 0
      %1081 = vmatprep.subr.bf16.mxu0 0
      %1082 = vmatpush1.bf16.xpose.msra.mxu0 0
      %1083 = vmatprep.subr.bf16.mxu0 0
      %1084 = vmatpush1.bf16.xpose.msra.mxu0 0
      %1085 = vmatprep.mubr.bf16.mxu0 0
      %1086 = vmatmul.mubr.bf16.gmra.mrb[0].mxu0 %v1051
      %v1087 = vpop.f32.mrb[0].mxu0
      %v1088 = vadd.f32 0.0, %v1087
      %v1089 = vpop.f32.mrb[0].mxu0
      %v1090 = vpop.f32.mrb[0].mxu0
      %v1091 = vadd.f32 0.0, %v1090
      %v1092 = vpop.f32.mrb[0].mxu0
      %1093 = vmatprep.mubr.bf16.mxu0 0
      %1094 = vmatmul.mubr.bf16.gmra.mrb[0].mxu0 %v1052
      %v1095 = vpop.f32.mrb[0].mxu0
      %v1096 = vadd.f32 0.0, %v1095
      %v1097 = vpop.f32.mrb[0].mxu0
      %v1098 = vpop.f32.mrb[0].mxu0
      %v1099 = vadd.f32 0.0, %v1098
      %v1100 = vpop.f32.mrb[0].mxu0
      %1101 = vdwg.mxu0
      %v1106 = vcombine.high %v1088, %v1088
      %v1107 = vcombine.high %v1091, %v1091
      %v1108 = vcombine.high %v1096, %v1096
      %v1109 = vcombine.high %v1099, %v1099
      %v1114 = vld [vmem:[%s597] sm:$0xff]
      %v1116 = vcombine.high %v1114, %v1114
      %v1118 = vunpack.c.l.s4 1966171168
      %v1119 = vunpack.c.0.s8 %v1118
      %v1120 = vlaneseq
      %v1121 = vshrl.u32 %v1120, 7
      %v1122 = vsub.s32 %v1119, %v1121
      %v1123 = vrot.slane %v1114, %v1122
      %v1125 = vunpack.c.l.s4 1966171168
      %v1126 = vunpack.c.0.s8 %v1125
      %v1127 = vlaneseq
      %v1128 = vshrl.u32 %v1127, 7
      %v1129 = vsub.s32 %v1126, %v1128
      %v1130 = vrot.slane %v1116, %v1129
      %v1131 = vcombine.high %v1123, %v1123
      %v1132 = vcombine.high %v1130, %v1130
      %v1134 = vunpack.c.l.s4 1966171168
      %v1135 = vunpack.c.0.s8 %v1134
      %v1136 = vlaneseq
      %v1137 = vshrl.u32 %v1136, 7
      %v1138 = vsub.s32 %v1135, %v1137
      %v1139 = vrot.slane %v1123, %v1138
      %v1141 = vunpack.c.l.s4 1966171168
      %v1142 = vunpack.c.0.s8 %v1141
      %v1143 = vlaneseq
      %v1144 = vshrl.u32 %v1143, 7
      %v1145 = vsub.s32 %v1142, %v1144
      %v1146 = vrot.slane %v1130, %v1145
      %v1148 = vunpack.c.l.s4 1966171168
      %v1149 = vunpack.c.0.s8 %v1148
      %v1150 = vlaneseq
      %v1151 = vshrl.u32 %v1150, 7
      %v1152 = vsub.s32 %v1149, %v1151
      %v1153 = vrot.slane %v1131, %v1152
      %v1155 = vunpack.c.l.s4 1966171168
      %v1156 = vunpack.c.0.s8 %v1155
      %v1157 = vlaneseq
      %v1158 = vshrl.u32 %v1157, 7
      %v1159 = vsub.s32 %v1156, %v1158
      %v1160 = vrot.slane %v1132, %v1159
      %v1161 = vcombine.high %v1139, %v1139
      %v1162 = vcombine.high %v1146, %v1146
      %v1163 = vcombine.high %v1153, %v1153
      %v1164 = vcombine.high %v1160, %v1160
      %v1165 = vlaneseq
      %v1166 = vshrl.u32 %v1165, 7
      %v1167 = vsub.s32 0, %v1166
      %v1168 = vrot.slane %v1139, %v1167
      %v1169 = vlaneseq
      %v1170 = vshrl.u32 %v1169, 7
      %v1171 = vsub.s32 0, %v1170
      %v1172 = vrot.slane %v1153, %v1171
      %v1173 = vlaneseq
      %v1174 = vshrl.u32 %v1173, 7
      %v1175 = vsub.s32 0, %v1174
      %v1176 = vrot.slane %v1161, %v1175
      %v1177 = vlaneseq
      %v1178 = vshrl.u32 %v1177, 7
      %v1179 = vsub.s32 0, %v1178
      %v1180 = vrot.slane %v1163, %v1179
      %v1181 = vlaneseq
      %v1182 = vshrl.u32 %v1181, 7
      %v1183 = vsub.s32 0, %v1182
      %v1184 = vrot.slane %v1146, %v1183
      %v1185 = vlaneseq
      %v1186 = vshrl.u32 %v1185, 7
      %v1187 = vsub.s32 0, %v1186
      %v1188 = vrot.slane %v1160, %v1187
      %v1189 = vlaneseq
      %v1190 = vshrl.u32 %v1189, 7
      %v1191 = vsub.s32 0, %v1190
      %v1192 = vrot.slane %v1162, %v1191
      %v1193 = vlaneseq
      %v1194 = vshrl.u32 %v1193, 7
      %v1195 = vsub.s32 0, %v1194
      %v1196 = vrot.slane %v1164, %v1195
      %v1205 = vadd.f32 %v1088, %v1168
      %v1206 = vadd.f32 %v1106, %v1172
      %v1207 = vadd.f32 %v1091, %v1176
      %v1208 = vadd.f32 %v1107, %v1180
      %v1209 = vadd.f32 %v1096, %v1184
      %v1210 = vadd.f32 %v1108, %v1188
      %v1211 = vadd.f32 %v1099, %v1192
      %v1212 = vadd.f32 %v1109, %v1196
      %v1213 = vld [vmem:[#allocation3] sm:$0xf]
      %v1214 = vld [vmem:[#allocation3 + $0x4] sm:$0xf]
      %v1215 = vld [vmem:[#allocation3 + $0x8] sm:$0xf]
      %v1216 = vld [vmem:[#allocation3 + $0xc] sm:$0xf]
      %v1217 = vld [vmem:[#allocation3 + $0x10] sm:$0xf]
      %v1218 = vld [vmem:[#allocation3 + $0x14] sm:$0xf]
      %v1219 = vld [vmem:[#allocation3 + $0x18] sm:$0xf]
      %v1220 = vld [vmem:[#allocation3 + $0x1c] sm:$0xf]
      %vm1221 = vcmask 60416
      %v1222 = vsel %vm1221, %v1205, -inf
      %1223 = vmax.xlane.f32.xlu0 %v1222
      %v1224 = vpop.xlane.xlu0 %1223
      %v1225 = vsel %vm1221, %v1206, -inf
      %1226 = vmax.xlane.f32.xlu0 %v1225
      %v1227 = vpop.xlane.xlu0 %1226
      %v1228 = vsel %vm1221, %v1207, -inf
      %1229 = vmax.xlane.f32.xlu0 %v1228
      %v1230 = vpop.xlane.xlu0 %1229
      %v1231 = vsel %vm1221, %v1208, -inf
      %1232 = vmax.xlane.f32.xlu0 %v1231
      %v1233 = vpop.xlane.xlu0 %1232
      %v1234 = vsel %vm1221, %v1209, -inf
      %1235 = vmax.xlane.f32.xlu0 %v1234
      %v1236 = vpop.xlane.xlu0 %1235
      %v1237 = vsel %vm1221, %v1210, -inf
      %1238 = vmax.xlane.f32.xlu0 %v1237
      %v1239 = vpop.xlane.xlu0 %1238
      %v1240 = vsel %vm1221, %v1211, -inf
      %1241 = vmax.xlane.f32.xlu0 %v1240
      %v1242 = vpop.xlane.xlu0 %1241
      %v1243 = vsel %vm1221, %v1212, -inf
      %1244 = vmax.xlane.f32.xlu0 %v1243
      %v1245 = vpop.xlane.xlu0 %1244
      %v1246 = vmax.f32 %v1213, %v1224
      %v1247 = vmax.f32 %v1214, %v1227
      %v1248 = vmax.f32 %v1215, %v1230
      %v1249 = vmax.f32 %v1216, %v1233
      %v1250 = vmax.f32 %v1217, %v1236
      %v1251 = vmax.f32 %v1218, %v1239
      %v1252 = vmax.f32 %v1219, %v1242
      %v1253 = vmax.f32 %v1220, %v1245
      %v1254 = vsub.f32 %v1213, %v1246
      %v1255 = vsub.f32 %v1214, %v1247
      %v1256 = vsub.f32 %v1215, %v1248
      %v1257 = vsub.f32 %v1216, %v1249
      %v1258 = vsub.f32 %v1217, %v1250
      %v1259 = vsub.f32 %v1218, %v1251
      %v1260 = vsub.f32 %v1219, %v1252
      %v1261 = vsub.f32 %v1220, %v1253
      %v1262 = vmul.f32 %v1254, 1.442695
      %v1263 = vpow.pop %v1262
      %v1264 = vmul.f32 %v1255, 1.442695
      %v1265 = vpow.pop %v1264
      %v1266 = vmul.f32 %v1256, 1.442695
      %v1267 = vpow.pop %v1266
      %v1268 = vmul.f32 %v1257, 1.442695
      %v1269 = vpow.pop %v1268
      %v1270 = vmul.f32 %v1258, 1.442695
      %v1271 = vpow.pop %v1270
      %v1272 = vmul.f32 %v1259, 1.442695
      %v1273 = vpow.pop %v1272
      %v1274 = vmul.f32 %v1260, 1.442695
      %v1275 = vpow.pop %v1274
      %v1276 = vmul.f32 %v1261, 1.442695
      %v1277 = vpow.pop %v1276
      %1279 = vset.pattern.permute.xlu0 0
      %1280 = vperm.xlu0 %1279, %v1246
      %v1281 = vpop.permute.xlu0 %1280
      %1284 = vset.pattern.permute.xlu0 0
      %1285 = vperm.xlu0 %1284, %v1247
      %v1286 = vpop.permute.xlu0 %1285
      %1289 = vset.pattern.permute.xlu0 0
      %1290 = vperm.xlu0 %1289, %v1248
      %v1291 = vpop.permute.xlu0 %1290
      %1294 = vset.pattern.permute.xlu0 0
      %1295 = vperm.xlu0 %1294, %v1249
      %v1296 = vpop.permute.xlu0 %1295
      %1299 = vset.pattern.permute.xlu0 0
      %1300 = vperm.xlu0 %1299, %v1250
      %v1301 = vpop.permute.xlu0 %1300
      %1304 = vset.pattern.permute.xlu0 0
      %1305 = vperm.xlu0 %1304, %v1251
      %v1306 = vpop.permute.xlu0 %1305
      %1309 = vset.pattern.permute.xlu0 0
      %1310 = vperm.xlu0 %1309, %v1252
      %v1311 = vpop.permute.xlu0 %1310
      %1314 = vset.pattern.permute.xlu0 0
      %1315 = vperm.xlu0 %1314, %v1253
      %v1316 = vpop.permute.xlu0 %1315
      %v1318 = vsub.f32 %v1205, %v1281
      %v1319 = vsub.f32 %v1206, %v1286
      %v1320 = vsub.f32 %v1207, %v1291
      %v1321 = vsub.f32 %v1208, %v1296
      %v1322 = vsub.f32 %v1209, %v1301
      %v1323 = vsub.f32 %v1210, %v1306
      %v1324 = vsub.f32 %v1211, %v1311
      %v1325 = vsub.f32 %v1212, %v1316
      %v1326 = vmul.f32 %v1318, 1.442695
      %v1327 = vpow.pop %v1326
      %v1328 = vmul.f32 %v1319, 1.442695
      %v1329 = vpow.pop %v1328
      %v1330 = vmul.f32 %v1320, 1.442695
      %v1331 = vpow.pop %v1330
      %v1332 = vmul.f32 %v1321, 1.442695
      %v1333 = vpow.pop %v1332
      %v1334 = vmul.f32 %v1322, 1.442695
      %v1335 = vpow.pop %v1334
      %v1336 = vmul.f32 %v1323, 1.442695
      %v1337 = vpow.pop %v1336
      %v1338 = vmul.f32 %v1324, 1.442695
      %v1339 = vpow.pop %v1338
      %v1340 = vmul.f32 %v1325, 1.442695
      %v1341 = vpow.pop %v1340
      %v1342 = vld [vmem:[#allocation4] sm:$0xf]
      %v1343 = vld [vmem:[#allocation4 + $0x4] sm:$0xf]
      %v1344 = vld [vmem:[#allocation4 + $0x8] sm:$0xf]
      %v1345 = vld [vmem:[#allocation4 + $0xc] sm:$0xf]
      %v1346 = vld [vmem:[#allocation4 + $0x10] sm:$0xf]
      %v1347 = vld [vmem:[#allocation4 + $0x14] sm:$0xf]
      %v1348 = vld [vmem:[#allocation4 + $0x18] sm:$0xf]
      %v1349 = vld [vmem:[#allocation4 + $0x1c] sm:$0xf]
      %v1350 = vmul.f32 %v1263, %v1342
      %v1351 = vmul.f32 %v1265, %v1343
      %v1352 = vmul.f32 %v1267, %v1344
      %v1353 = vmul.f32 %v1269, %v1345
      %v1354 = vmul.f32 %v1271, %v1346
      %v1355 = vmul.f32 %v1273, %v1347
      %v1356 = vmul.f32 %v1275, %v1348
      %v1357 = vmul.f32 %v1277, %v1349
      %v1358 = vsel %vm1221, %v1327, 0.0
      %1359 = vadd.xlane.f32.xlu0 %v1358
      %v1360 = vpop.xlane.xlu0 %1359
      %v1361 = vsel %vm1221, %v1329, 0.0
      %1362 = vadd.xlane.f32.xlu0 %v1361
      %v1363 = vpop.xlane.xlu0 %1362
      %v1364 = vsel %vm1221, %v1331, 0.0
      %1365 = vadd.xlane.f32.xlu0 %v1364
      %v1366 = vpop.xlane.xlu0 %1365
      %v1367 = vsel %vm1221, %v1333, 0.0
      %1368 = vadd.xlane.f32.xlu0 %v1367
      %v1369 = vpop.xlane.xlu0 %1368
      %v1370 = vsel %vm1221, %v1335, 0.0
      %1371 = vadd.xlane.f32.xlu0 %v1370
      %v1372 = vpop.xlane.xlu0 %1371
      %v1373 = vsel %vm1221, %v1337, 0.0
      %1374 = vadd.xlane.f32.xlu0 %v1373
      %v1375 = vpop.xlane.xlu0 %1374
      %v1376 = vsel %vm1221, %v1339, 0.0
      %1377 = vadd.xlane.f32.xlu0 %v1376
      %v1378 = vpop.xlane.xlu0 %1377
      %v1379 = vsel %vm1221, %v1341, 0.0
      %1380 = vadd.xlane.f32.xlu0 %v1379
      %v1381 = vpop.xlane.xlu0 %1380
      %v1382 = vadd.f32 %v1350, %v1360
      %v1383 = vadd.f32 %v1351, %v1363
      %v1384 = vadd.f32 %v1352, %v1366
      %v1385 = vadd.f32 %v1353, %v1369
      %v1386 = vadd.f32 %v1354, %v1372
      %v1387 = vadd.f32 %v1355, %v1375
      %v1388 = vadd.f32 %v1356, %v1378
      %v1389 = vadd.f32 %v1357, %v1381
      %vm1390 = vcmask 3072
      %1391 = vst.msk [vmem:[#allocation4] sm:$0xf] %vm1390, %v1382
      %1392 = vst.msk [vmem:[#allocation4 + $0x4] sm:$0xf] %vm1390, %v1383
      %1393 = vst.msk [vmem:[#allocation4 + $0x8] sm:$0xf] %vm1390, %v1384
      %1394 = vst.msk [vmem:[#allocation4 + $0xc] sm:$0xf] %vm1390, %v1385
      %1395 = vst.msk [vmem:[#allocation4 + $0x10] sm:$0xf] %vm1390, %v1386
      %1396 = vst.msk [vmem:[#allocation4 + $0x14] sm:$0xf] %vm1390, %v1387
      %1397 = vst.msk [vmem:[#allocation4 + $0x18] sm:$0xf] %vm1390, %v1388
      %1398 = vst.msk [vmem:[#allocation4 + $0x1c] sm:$0xf] %vm1390, %v1389
      %v1407 = vcombine.low %v1327, %v1329
      %v1408 = vcombine.low %v1331, %v1333
      %v1409 = vcombine.low %v1335, %v1337
      %v1410 = vcombine.low %v1339, %v1341
      %v1415 = vpack.c.bf16 %v1408, %v1407
      %v1416 = vpack.c.bf16 %v1410, %v1409
      %vm1417 = vcmask 64512
      %v1419 = vsel %vm1417, %v1415, 0
      %v1422 = vsel %vm1417, %v1416, 0
      %vm1424 = vcmask 1043456
      %v1426 = vsel %vm1424, %v1050, 0
      %1428 = vmatprep.subr.bf16.mxu0 0
      %1429 = vmatpush1.bf16.msra.mxu0 %v1426
      %1430 = vmatprep.subr.bf16.mxu0 0
      %1431 = vmatpush1.bf16.msra.mxu0 0
      %1432 = vmatprep.subr.bf16.mxu0 0
      %1433 = vmatpush1.bf16.msra.mxu0 0
      %1434 = vmatprep.subr.bf16.mxu0 0
      %1435 = vmatpush1.bf16.msra.mxu0 0
      %1436 = vmatprep.subr.bf16.mxu0 0
      %1437 = vmatpush1.bf16.msra.mxu0 0
      %1438 = vmatprep.subr.bf16.mxu0 0
      %1439 = vmatpush1.bf16.msra.mxu0 0
      %1440 = vmatprep.subr.bf16.mxu0 0
      %1441 = vmatpush1.bf16.msra.mxu0 0
      %1442 = vmatprep.subr.bf16.mxu0 0
      %1443 = vmatpush1.bf16.msra.mxu0 0
      %1444 = vmatprep.subr.bf16.mxu0 0
      %1445 = vmatpush1.bf16.msra.mxu0 0
      %1446 = vmatprep.subr.bf16.mxu0 0
      %1447 = vmatpush1.bf16.msra.mxu0 0
      %1448 = vmatprep.subr.bf16.mxu0 0
      %1449 = vmatpush1.bf16.msra.mxu0 0
      %1450 = vmatprep.subr.bf16.mxu0 0
      %1451 = vmatpush1.bf16.msra.mxu0 0
      %1452 = vmatprep.subr.bf16.mxu0 0
      %1453 = vmatpush1.bf16.msra.mxu0 0
      %1454 = vmatprep.subr.bf16.mxu0 0
      %1455 = vmatpush1.bf16.msra.mxu0 0
      %1456 = vmatprep.subr.bf16.mxu0 0
      %1457 = vmatpush1.bf16.msra.mxu0 0
      %1458 = vmatprep.subr.bf16.mxu0 0
      %1459 = vmatpush1.bf16.msra.mxu0 0
      %1460 = vmatprep.mubr.bf16.mxu0 0
      %1461 = vmatmul.mubr.bf16.gmra.mrb[0].mxu0 %v1419
      %v1462 = vpop.f32.mrb[0].mxu0
      %v1463 = vadd.f32 0.0, %v1462
      %v1464 = vpop.f32.mrb[0].mxu0
      %v1465 = vpop.f32.mrb[0].mxu0
      %v1466 = vadd.f32 0.0, %v1465
      %v1467 = vpop.f32.mrb[0].mxu0
      %1468 = vmatprep.mubr.bf16.mxu0 0
      %1469 = vmatmul.mubr.bf16.gmra.mrb[0].mxu0 %v1422
      %v1470 = vpop.f32.mrb[0].mxu0
      %v1471 = vadd.f32 0.0, %v1470
      %v1472 = vpop.f32.mrb[0].mxu0
      %v1473 = vpop.f32.mrb[0].mxu0
      %v1474 = vadd.f32 0.0, %v1473
      %v1475 = vpop.f32.mrb[0].mxu0
      %1476 = vdwg.mxu0
      %v1477 = vld [vmem:[#allocation5] sm:$0xf]
      %v1478 = vld [vmem:[#allocation5 + $0x4] sm:$0xf]
      %v1479 = vld [vmem:[#allocation5 + $0x8] sm:$0xf]
      %v1480 = vld [vmem:[#allocation5 + $0xc] sm:$0xf]
      %v1481 = vld [vmem:[#allocation5 + $0x10] sm:$0xf]
      %v1482 = vld [vmem:[#allocation5 + $0x14] sm:$0xf]
      %v1483 = vld [vmem:[#allocation5 + $0x18] sm:$0xf]
      %v1484 = vld [vmem:[#allocation5 + $0x1c] sm:$0xf]
      %1486 = vset.pattern.permute.xlu0 0
      %1487 = vperm.xlu0 %1486, %v1263
      %v1488 = vpop.permute.xlu0 %1487
      %1491 = vset.pattern.permute.xlu0 0
      %1492 = vperm.xlu0 %1491, %v1265
      %v1493 = vpop.permute.xlu0 %1492
      %1496 = vset.pattern.permute.xlu0 0
      %1497 = vperm.xlu0 %1496, %v1267
      %v1498 = vpop.permute.xlu0 %1497
      %1501 = vset.pattern.permute.xlu0 0
      %1502 = vperm.xlu0 %1501, %v1269
      %v1503 = vpop.permute.xlu0 %1502
      %1506 = vset.pattern.permute.xlu0 0
      %1507 = vperm.xlu0 %1506, %v1271
      %v1508 = vpop.permute.xlu0 %1507
      %1511 = vset.pattern.permute.xlu0 0
      %1512 = vperm.xlu0 %1511, %v1273
      %v1513 = vpop.permute.xlu0 %1512
      %1516 = vset.pattern.permute.xlu0 0
      %1517 = vperm.xlu0 %1516, %v1275
      %v1518 = vpop.permute.xlu0 %1517
      %1521 = vset.pattern.permute.xlu0 0
      %1522 = vperm.xlu0 %1521, %v1277
      %v1523 = vpop.permute.xlu0 %1522
      %v1525 = vmul.f32 %v1488, %v1477
      %v1526 = vmul.f32 %v1493, %v1478
      %v1527 = vmul.f32 %v1498, %v1479
      %v1528 = vmul.f32 %v1503, %v1480
      %v1529 = vmul.f32 %v1508, %v1481
      %v1530 = vmul.f32 %v1513, %v1482
      %v1531 = vmul.f32 %v1518, %v1483
      %v1532 = vmul.f32 %v1523, %v1484
      %v1537 = vcombine.high %v1463, %v1463
      %v1538 = vcombine.high %v1466, %v1466
      %v1539 = vcombine.high %v1471, %v1471
      %v1540 = vcombine.high %v1474, %v1474
      %v1545 = vadd.f32 %v1525, %v1463
      %v1546 = vadd.f32 %v1526, %v1537
      %v1547 = vadd.f32 %v1527, %v1466
      %v1548 = vadd.f32 %v1528, %v1538
      %v1549 = vadd.f32 %v1529, %v1471
      %v1550 = vadd.f32 %v1530, %v1539
      %v1551 = vadd.f32 %v1531, %v1474
      %v1552 = vadd.f32 %v1532, %v1540
      %1553 = vst [vmem:[#allocation5] sm:$0xf] %v1545
      %1554 = vst [vmem:[#allocation5 + $0x4] sm:$0xf] %v1546
      %1555 = vst [vmem:[#allocation5 + $0x8] sm:$0xf] %v1547
      %1556 = vst [vmem:[#allocation5 + $0xc] sm:$0xf] %v1548
      %1557 = vst [vmem:[#allocation5 + $0x10] sm:$0xf] %v1549
      %1558 = vst [vmem:[#allocation5 + $0x14] sm:$0xf] %v1550
      %1559 = vst [vmem:[#allocation5 + $0x18] sm:$0xf] %v1551
      %1560 = vst [vmem:[#allocation5 + $0x1c] sm:$0xf] %v1552
      %1561 = vst.msk [vmem:[#allocation3] sm:$0xf] %vm1390, %v1246
      %1562 = vst.msk [vmem:[#allocation3 + $0x4] sm:$0xf] %vm1390, %v1247
      %1563 = vst.msk [vmem:[#allocation3 + $0x8] sm:$0xf] %vm1390, %v1248
      %1564 = vst.msk [vmem:[#allocation3 + $0xc] sm:$0xf] %vm1390, %v1249
      %1565 = vst.msk [vmem:[#allocation3 + $0x10] sm:$0xf] %vm1390, %v1250
      %1566 = vst.msk [vmem:[#allocation3 + $0x14] sm:$0xf] %vm1390, %v1251
      %1567 = vst.msk [vmem:[#allocation3 + $0x18] sm:$0xf] %vm1390, %v1252
      %1568 = vst.msk [vmem:[#allocation3 + $0x1c] sm:$0xf] %vm1390, %v1253
      // Predicated region
      $region57: #{gemma_decoder_layer.6} parent=51 // pred_check
        %p1569 = pneg %p613
      $region58: #{gemma_decoder_layer.6} parent=51 // pred_check_branch
        %1571 = sbr.rel (%p1569) target = $region60
      $region59: #{gemma_decoder_layer.6} parent=51 // pred_region
        %v1572 = vld [vmem:[#allocation5] sm:$0xf]
        %v1573 = vld [vmem:[#allocation5 + $0x4] sm:$0xf]
        %v1574 = vld [vmem:[#allocation5 + $0x8] sm:$0xf]
        %v1575 = vld [vmem:[#allocation5 + $0xc] sm:$0xf]
        %v1576 = vld [vmem:[#allocation5 + $0x10] sm:$0xf]
        %v1577 = vld [vmem:[#allocation5 + $0x14] sm:$0xf]
        %v1578 = vld [vmem:[#allocation5 + $0x18] sm:$0xf]
        %v1579 = vld [vmem:[#allocation5 + $0x1c] sm:$0xf]
        %v1580 = vld [vmem:[#allocation4] sm:$0xf]
        %v1581 = vld [vmem:[#allocation4 + $0x4] sm:$0xf]
        %v1582 = vld [vmem:[#allocation4 + $0x8] sm:$0xf]
        %v1583 = vld [vmem:[#allocation4 + $0xc] sm:$0xf]
        %v1584 = vld [vmem:[#allocation4 + $0x10] sm:$0xf]
        %v1585 = vld [vmem:[#allocation4 + $0x14] sm:$0xf]
        %v1586 = vld [vmem:[#allocation4 + $0x18] sm:$0xf]
        %v1587 = vld [vmem:[#allocation4 + $0x1c] sm:$0xf]
        %v1588 = vrcp.pop %v1580
        %v1589 = vrcp.pop %v1581
        %v1590 = vrcp.pop %v1582
        %v1591 = vrcp.pop %v1583
        %v1592 = vrcp.pop %v1584
        %v1593 = vrcp.pop %v1585
        %v1594 = vrcp.pop %v1586
        %v1595 = vrcp.pop %v1587
        %1597 = vset.pattern.permute.xlu0 0
        %1598 = vperm.xlu0 %1597, %v1588
        %v1599 = vpop.permute.xlu0 %1598
        %1602 = vset.pattern.permute.xlu0 0
        %1603 = vperm.xlu0 %1602, %v1589
        %v1604 = vpop.permute.xlu0 %1603
        %1607 = vset.pattern.permute.xlu0 0
        %1608 = vperm.xlu0 %1607, %v1590
        %v1609 = vpop.permute.xlu0 %1608
        %1612 = vset.pattern.permute.xlu0 0
        %1613 = vperm.xlu0 %1612, %v1591
        %v1614 = vpop.permute.xlu0 %1613
        %1617 = vset.pattern.permute.xlu0 0
        %1618 = vperm.xlu0 %1617, %v1592
        %v1619 = vpop.permute.xlu0 %1618
        %1622 = vset.pattern.permute.xlu0 0
        %1623 = vperm.xlu0 %1622, %v1593
        %v1624 = vpop.permute.xlu0 %1623
        %1627 = vset.pattern.permute.xlu0 0
        %1628 = vperm.xlu0 %1627, %v1594
        %v1629 = vpop.permute.xlu0 %1628
        %1632 = vset.pattern.permute.xlu0 0
        %1633 = vperm.xlu0 %1632, %v1595
        %v1634 = vpop.permute.xlu0 %1633
        %v1636 = vmul.f32 %v1572, %v1599
        %v1637 = vmul.f32 %v1573, %v1604
        %v1638 = vmul.f32 %v1574, %v1609
        %v1639 = vmul.f32 %v1575, %v1614
        %v1640 = vmul.f32 %v1576, %v1619
        %v1641 = vmul.f32 %v1577, %v1624
        %v1642 = vmul.f32 %v1578, %v1629
        %v1643 = vmul.f32 %v1579, %v1634
        %v1644 = vcombine.low %v1636, %v1638
        %v1646 = vunpack.c.l.s4 1983009808
        %v1647 = vunpack.c.0.s8 %v1646
        %v1648 = vlaneseq
        %v1649 = vshrl.u32 %v1648, 7
        %v1650 = vsub.s32 %v1647, %v1649
        %v1651 = vrot.slane %v1644, %v1650
        %v1652 = vcombine.low %v1637, %v1639
        %v1654 = vunpack.c.l.s4 1983009808
        %v1655 = vunpack.c.0.s8 %v1654
        %v1656 = vlaneseq
        %v1657 = vshrl.u32 %v1656, 7
        %v1658 = vsub.s32 %v1655, %v1657
        %v1659 = vrot.slane %v1652, %v1658
        %v1660 = vcombine.low %v1640, %v1642
        %v1662 = vunpack.c.l.s4 1983009808
        %v1663 = vunpack.c.0.s8 %v1662
        %v1664 = vlaneseq
        %v1665 = vshrl.u32 %v1664, 7
        %v1666 = vsub.s32 %v1663, %v1665
        %v1667 = vrot.slane %v1660, %v1666
        %v1668 = vcombine.low %v1641, %v1643
        %v1670 = vunpack.c.l.s4 1983009808
        %v1671 = vunpack.c.0.s8 %v1670
        %v1672 = vlaneseq
        %v1673 = vshrl.u32 %v1672, 7
        %v1674 = vsub.s32 %v1671, %v1673
        %v1675 = vrot.slane %v1668, %v1674
        %v1676 = vcombine.low %v1651, %v1659
        %v1677 = vcombine.high %v1651, %v1659
        %v1679 = vunpack.c.l.s4 1934713408
        %v1680 = vunpack.c.0.s8 %v1679
        %v1681 = vlaneseq
        %v1682 = vshrl.u32 %v1681, 7
        %v1683 = vsub.s32 %v1680, %v1682
        %v1684 = vrot.slane %v1676, %v1683
        %v1686 = vunpack.c.l.s4 1934713408
        %v1687 = vunpack.c.0.s8 %v1686
        %v1688 = vlaneseq
        %v1689 = vshrl.u32 %v1688, 7
        %v1690 = vsub.s32 %v1687, %v1689
        %v1691 = vrot.slane %v1677, %v1690
        %v1692 = vcombine.low %v1667, %v1675
        %v1693 = vcombine.high %v1667, %v1675
        %v1695 = vunpack.c.l.s4 1934713408
        %v1696 = vunpack.c.0.s8 %v1695
        %v1697 = vlaneseq
        %v1698 = vshrl.u32 %v1697, 7
        %v1699 = vsub.s32 %v1696, %v1698
        %v1700 = vrot.slane %v1692, %v1699
        %v1702 = vunpack.c.l.s4 1934713408
        %v1703 = vunpack.c.0.s8 %v1702
        %v1704 = vlaneseq
        %v1705 = vshrl.u32 %v1704, 7
        %v1706 = vsub.s32 %v1703, %v1705
        %v1707 = vrot.slane %v1693, %v1706
        %v1708 = vcombine.low %v1684, %v1700
        %v1709 = vcombine.high %v1684, %v1700
        %v1710 = vcombine.low %v1691, %v1707
        %v1711 = vcombine.high %v1691, %v1707
        %v1712 = vpack.c.bf16 %v1708, %v1708
        %v1713 = vpack.c.bf16 %v1709, %v1709
        %v1714 = vpack.c.bf16 %v1710, %v1710
        %v1715 = vpack.c.bf16 %v1711, %v1711
        %v1720 = vunpack.c.l.b16 %v1712
        %v1721 = vunpack.c.l.b16 %v1713
        %v1722 = vunpack.c.l.b16 %v1714
        %v1723 = vunpack.c.l.b16 %v1715
        %v1724 = vpack.c.b16 %v1721, %v1720
        %v1725 = vpack.c.b16 %v1723, %v1722
        %1728 = vst [vmem:[%s610] sm:$0xff] %v1724
        %1729 = vst [vmem:[%s610 + $0x8] sm:$0xff] %v1725
      $region60: #{gemma_decoder_layer.6} parent=51 // pred_fallthru
        _
      %s1730 = smul.u32 4, %s26
      %p1731 = scmp.lt.s32.totalorder %s25, 1
      %s1732 = scalar_select %p1731, %s25, 1
      %p1733 = scmp.lt.s32.totalorder %s27, 0
      %s1734 = scalar_select %p1733, %s27, 0
      %p1735 = scmp.lt.s32.totalorder %s1730, 3
      %s1736 = scalar_select %p1735, %s1730, 3
      %s1737 = smul.addr %s1734, 4
      %s1738 = sadd.s32 %s1736, %s1737
      %s1739 = smul.addr %s1732, 4
      %s1740 = sadd.s32 %s1738, %s1739
      %s1741 = smul.addr %s1740, 4
      %s1742 = scalar_lea.vmem %s8, %s1741
      // Predicated region
      $region61: #{gemma_decoder_layer.6} parent=51 // pred_check
        %p1743 = pneg %p299
      $region62: #{gemma_decoder_layer.6} parent=51 // pred_check_branch
        %1745 = sbr.rel (%p1743) target = $region64
      $region63: #{gemma_decoder_layer.6} parent=51 // pred_region
        %s1746 = smul.u32 4, %s26
      $region64: #{gemma_decoder_layer.6} parent=51 // pred_fallthru
        _
    $region52: #{gemma_decoder_layer.6} parent=5 // pred_fallthru
      _
    %p1747 = scmp.le.s32.totalorder 2, %s14
    // Predicated region
    $region65: #{gemma_decoder_layer.6} parent=5 // pred_check
      %p1748 = pneg %p1747
    $region66: #{gemma_decoder_layer.6} parent=5 // pred_check_branch
      %1750 = sbr.rel (%p1748) target = $region68
    $region67: #{gemma_decoder_layer.6} parent=5 // pred_region
      %s1751 = ssub.s32 %s14, 2
      // Predicated region
      $region69: #{gemma_decoder_layer.6} parent=67 // pred_check
        %p1752 = pneg %p305
      $region70: #{gemma_decoder_layer.6} parent=67 // pred_check_branch
        %1754 = sbr.rel (%p1752) target = $region72
      $region71: #{gemma_decoder_layer.6} parent=67 // pred_region
        %s1755 = smul.u32 4, %s30
        %p1756 = scmp.lt.s32.totalorder %s29, 1
        %s1757 = scalar_select %p1756, %s29, 1
        %p1758 = scmp.lt.s32.totalorder %s31, 0
        %s1759 = scalar_select %p1758, %s31, 0
        %p1760 = scmp.lt.s32.totalorder %s1755, 3
        %s1761 = scalar_select %p1760, %s1755, 3
        %s1762 = smul.addr %s1759, 4
        %s1763 = sadd.s32 %s1761, %s1762
        %s1764 = smul.addr %s1757, 4
        %s1765 = sadd.s32 %s1763, %s1764
        %s1766 = smul.addr %s1765, 4
        %s1767 = scalar_lea.vmem %s8, %s1766
      $region72: #{gemma_decoder_layer.6} parent=67 // pred_fallthru
        _
    $region68: #{gemma_decoder_layer.6} parent=5 // pred_fallthru
      _
  $region6: #{gemma_decoder_layer.6} parent=0 // loop_footer
    %s18 = sadd.s32 1, %s14
  $region7: #{gemma_decoder_layer.6} parent=0 // loop_footer_branch
    %13 = sbr.rel target = $region3
  $region8: #{gemma_decoder_layer.6} parent=0 // loop_exit
    _

// kernel: gemma_decoder_layer.9
$region0: #{gemma_decoder_layer.9}
  #allocation0 [shape = 'u32[]', space=smem, size = 0x4, offset = 0x4, fixed_abs, tag = 'smem constant byte address 0x4 - core index']
  #allocation1 [shape = 'u32[144,128]{1,0:T(1,128)}', space=vmem, size = 0x12000, scoped, tag = 'internal scratch']
  #allocation2 [shape = 'f32[128,128]{1,0:T(8,128)}', space=vmem, size = 0x10000, scoped, tag = 'scratch operand']
  %s0 = inlined_call_operand.vmem [shape: bf16[128,256], index: 0, kind: input, shape index: {}]
  %s1 = inlined_call_operand.vmem [shape: bf16[256,128], index: 1, kind: input, shape index: {}]
  %s2 = inlined_call_operand.vmem [shape: f32[128,128], index: 2, kind: input, shape index: {}]
  %s3 = inlined_call_operand.vmem [shape: f32[128,128], index: 3, kind: output, shape index: {}]
  %s4 = sld [smem:[#allocation0]]
  $region30: #{gemma_decoder_layer.9} parent=0
    _
  %s6 = ssub.s32 1, %s4
  %s7 = scalar_select 0, %s6, %s4
  // Predicated region
  $region2: #{gemma_decoder_layer.9} parent=0 // pred_check
    _
  $region3: #{gemma_decoder_layer.9} parent=0 // pred_check_branch
    %9 = sbr.rel (0) target = $region5
  $region4: #{gemma_decoder_layer.9} parent=0 // pred_region
    _
  $region5: #{gemma_decoder_layer.9} parent=0 // pred_fallthru
    _
  // Predicated region
  $region6: #{gemma_decoder_layer.9} parent=0 // pred_check
    _
  $region7: #{gemma_decoder_layer.9} parent=0 // pred_check_branch
    %11 = sbr.rel (0) target = $region9
  $region8: #{gemma_decoder_layer.9} parent=0 // pred_region
    _
  $region9: #{gemma_decoder_layer.9} parent=0 // pred_fallthru
    _
  // Predicated region
  $region10: #{gemma_decoder_layer.9} parent=0 // pred_check
    _
  $region11: #{gemma_decoder_layer.9} parent=0 // pred_check_branch
    %13 = sbr.rel (0) target = $region13
  $region12: #{gemma_decoder_layer.9} parent=0 // pred_region
    _
  $region13: #{gemma_decoder_layer.9} parent=0 // pred_fallthru
    _
  %p15 = scmp.eq.s32.totalorder 0, 0
  // Predicated region
  $region14: #{gemma_decoder_layer.9} parent=0 // pred_check
    %p16 = pneg %p15
  $region15: #{gemma_decoder_layer.9} parent=0 // pred_check_branch
    %18 = sbr.rel (%p16) target = $region17
  $region16: #{gemma_decoder_layer.9} parent=0 // pred_region
    %19 = vst [vmem:[#allocation2] sm:$0xff] 0.0
    %20 = vst [vmem:[#allocation2 + $0x8] sm:$0xff] 0.0
    %21 = vst [vmem:[#allocation2 + $0x10] sm:$0xff] 0.0
    %22 = vst [vmem:[#allocation2 + $0x18] sm:$0xff] 0.0
    %23 = vst [vmem:[#allocation2 + $0x20] sm:$0xff] 0.0
    %24 = vst [vmem:[#allocation2 + $0x28] sm:$0xff] 0.0
    %25 = vst [vmem:[#allocation2 + $0x30] sm:$0xff] 0.0
    %26 = vst [vmem:[#allocation2 + $0x38] sm:$0xff] 0.0
    %27 = vst [vmem:[#allocation2 + $0x40] sm:$0xff] 0.0
    %28 = vst [vmem:[#allocation2 + $0x48] sm:$0xff] 0.0
    %29 = vst [vmem:[#allocation2 + $0x50] sm:$0xff] 0.0
    %30 = vst [vmem:[#allocation2 + $0x58] sm:$0xff] 0.0
    %31 = vst [vmem:[#allocation2 + $0x60] sm:$0xff] 0.0
    %32 = vst [vmem:[#allocation2 + $0x68] sm:$0xff] 0.0
    %33 = vst [vmem:[#allocation2 + $0x70] sm:$0xff] 0.0
    %34 = vst [vmem:[#allocation2 + $0x78] sm:$0xff] 0.0
  $region17: #{gemma_decoder_layer.9} parent=0 // pred_fallthru
    _
  %v35 = vld [vmem:[#allocation2] sm:$0xff]
  %v36 = vld [vmem:[#allocation2 + $0x8] sm:$0xff]
  %v37 = vld [vmem:[#allocation2 + $0x10] sm:$0xff]
  %v38 = vld [vmem:[#allocation2 + $0x18] sm:$0xff]
  %v39 = vld [vmem:[#allocation2 + $0x20] sm:$0xff]
  %v40 = vld [vmem:[#allocation2 + $0x28] sm:$0xff]
  %v41 = vld [vmem:[#allocation2 + $0x30] sm:$0xff]
  %v42 = vld [vmem:[#allocation2 + $0x38] sm:$0xff]
  %v43 = vld [vmem:[#allocation2 + $0x40] sm:$0xff]
  %v44 = vld [vmem:[#allocation2 + $0x48] sm:$0xff]
  %v45 = vld [vmem:[#allocation2 + $0x50] sm:$0xff]
  %v46 = vld [vmem:[#allocation2 + $0x58] sm:$0xff]
  %v47 = vld [vmem:[#allocation2 + $0x60] sm:$0xff]
  %v48 = vld [vmem:[#allocation2 + $0x68] sm:$0xff]
  %v49 = vld [vmem:[#allocation2 + $0x70] sm:$0xff]
  %v50 = vld [vmem:[#allocation2 + $0x78] sm:$0xff]
  %v51 = vld [vmem:[%s0] sm:$0xff]
  %v52 = vld [vmem:[%s0 + $0x8] sm:$0xff]
  %v53 = vld [vmem:[%s0 + $0x10] sm:$0xff]
  %v54 = vld [vmem:[%s0 + $0x18] sm:$0xff]
  %v55 = vld [vmem:[%s0 + $0x20] sm:$0xff]
  %v56 = vld [vmem:[%s0 + $0x28] sm:$0xff]
  %v57 = vld [vmem:[%s0 + $0x30] sm:$0xff]
  %v58 = vld [vmem:[%s0 + $0x38] sm:$0xff]
  %v59 = vld [vmem:[%s0 + $0x40] sm:$0xff]
  %v60 = vld [vmem:[%s0 + $0x48] sm:$0xff]
  %v61 = vld [vmem:[%s0 + $0x50] sm:$0xff]
  %v62 = vld [vmem:[%s0 + $0x58] sm:$0xff]
  %v63 = vld [vmem:[%s0 + $0x60] sm:$0xff]
  %v64 = vld [vmem:[%s0 + $0x68] sm:$0xff]
  %v65 = vld [vmem:[%s0 + $0x70] sm:$0xff]
  %v66 = vld [vmem:[%s0 + $0x78] sm:$0xff]
  %v67 = vld [vmem:[%s1] sm:$0xf]
  %v68 = vld [vmem:[%s1 + $0x4] sm:$0xf]
  %v69 = vld [vmem:[%s1 + $0x8] sm:$0xf]
  %v70 = vld [vmem:[%s1 + $0xc] sm:$0xf]
  %v71 = vld [vmem:[%s1 + $0x10] sm:$0xf]
  %v72 = vld [vmem:[%s1 + $0x14] sm:$0xf]
  %v73 = vld [vmem:[%s1 + $0x18] sm:$0xf]
  %v74 = vld [vmem:[%s1 + $0x1c] sm:$0xf]
  %v75 = vld [vmem:[%s1 + $0x20] sm:$0xf]
  %v76 = vld [vmem:[%s1 + $0x24] sm:$0xf]
  %v77 = vld [vmem:[%s1 + $0x28] sm:$0xf]
  %v78 = vld [vmem:[%s1 + $0x2c] sm:$0xf]
  %v79 = vld [vmem:[%s1 + $0x30] sm:$0xf]
  %v80 = vld [vmem:[%s1 + $0x34] sm:$0xf]
  %v81 = vld [vmem:[%s1 + $0x38] sm:$0xf]
  %v82 = vld [vmem:[%s1 + $0x3c] sm:$0xf]
  %v83 = vld [vmem:[%s1 + $0x40] sm:$0xf]
  %v84 = vld [vmem:[%s1 + $0x44] sm:$0xf]
  %v85 = vld [vmem:[%s1 + $0x48] sm:$0xf]
  %v86 = vld [vmem:[%s1 + $0x4c] sm:$0xf]
  %v87 = vld [vmem:[%s1 + $0x50] sm:$0xf]
  %v88 = vld [vmem:[%s1 + $0x54] sm:$0xf]
  %v89 = vld [vmem:[%s1 + $0x58] sm:$0xf]
  %v90 = vld [vmem:[%s1 + $0x5c] sm:$0xf]
  %v91 = vld [vmem:[%s1 + $0x60] sm:$0xf]
  %v92 = vld [vmem:[%s1 + $0x64] sm:$0xf]
  %v93 = vld [vmem:[%s1 + $0x68] sm:$0xf]
  %v94 = vld [vmem:[%s1 + $0x6c] sm:$0xf]
  %v95 = vld [vmem:[%s1 + $0x70] sm:$0xf]
  %v96 = vld [vmem:[%s1 + $0x74] sm:$0xf]
  %v97 = vld [vmem:[%s1 + $0x78] sm:$0xf]
  %v98 = vld [vmem:[%s1 + $0x7c] sm:$0xf]
  %v115 = vunpack.c.l.b16 %v51
  %v116 = vunpack.c.h.b16 %v51
  %v117 = vunpack.c.l.b16 %v52
  %v118 = vunpack.c.h.b16 %v52
  %v119 = vunpack.c.l.b16 %v53
  %v120 = vunpack.c.h.b16 %v53
  %v121 = vunpack.c.l.b16 %v54
  %v122 = vunpack.c.h.b16 %v54
  %v123 = vunpack.c.l.b16 %v55
  %v124 = vunpack.c.h.b16 %v55
  %v125 = vunpack.c.l.b16 %v56
  %v126 = vunpack.c.h.b16 %v56
  %v127 = vunpack.c.l.b16 %v57
  %v128 = vunpack.c.h.b16 %v57
  %v129 = vunpack.c.l.b16 %v58
  %v130 = vunpack.c.h.b16 %v58
  %v131 = vunpack.c.l.b16 %v59
  %v132 = vunpack.c.h.b16 %v59
  %v133 = vunpack.c.l.b16 %v60
  %v134 = vunpack.c.h.b16 %v60
  %v135 = vunpack.c.l.b16 %v61
  %v136 = vunpack.c.h.b16 %v61
  %v137 = vunpack.c.l.b16 %v62
  %v138 = vunpack.c.h.b16 %v62
  %v139 = vunpack.c.l.b16 %v63
  %v140 = vunpack.c.h.b16 %v63
  %v141 = vunpack.c.l.b16 %v64
  %v142 = vunpack.c.h.b16 %v64
  %v143 = vunpack.c.l.b16 %v65
  %v144 = vunpack.c.h.b16 %v65
  %v145 = vunpack.c.l.b16 %v66
  %v146 = vunpack.c.h.b16 %v66
  %v147 = vpack.c.b16 %v117, %v115
  %v148 = vpack.c.b16 %v118, %v116
  %v149 = vpack.c.b16 %v121, %v119
  %v150 = vpack.c.b16 %v122, %v120
  %v151 = vpack.c.b16 %v125, %v123
  %v152 = vpack.c.b16 %v126, %v124
  %v153 = vpack.c.b16 %v129, %v127
  %v154 = vpack.c.b16 %v130, %v128
  %v155 = vpack.c.b16 %v133, %v131
  %v156 = vpack.c.b16 %v134, %v132
  %v157 = vpack.c.b16 %v137, %v135
  %v158 = vpack.c.b16 %v138, %v136
  %v159 = vpack.c.b16 %v141, %v139
  %v160 = vpack.c.b16 %v142, %v140
  %v161 = vpack.c.b16 %v145, %v143
  %v162 = vpack.c.b16 %v146, %v144
  %v211 = vunpack.c.l.b16 %v67
  %v212 = vunpack.c.l.b16 %v68
  %v213 = vunpack.c.l.b16 %v69
  %v214 = vunpack.c.l.b16 %v70
  %v215 = vunpack.c.l.b16 %v71
  %v216 = vunpack.c.l.b16 %v72
  %v217 = vunpack.c.l.b16 %v73
  %v218 = vunpack.c.l.b16 %v74
  %v219 = vunpack.c.l.b16 %v75
  %v220 = vunpack.c.l.b16 %v76
  %v221 = vunpack.c.l.b16 %v77
  %v222 = vunpack.c.l.b16 %v78
  %v223 = vunpack.c.l.b16 %v79
  %v224 = vunpack.c.l.b16 %v80
  %v225 = vunpack.c.l.b16 %v81
  %v226 = vunpack.c.l.b16 %v82
  %v227 = vunpack.c.l.b16 %v83
  %v228 = vunpack.c.l.b16 %v84
  %v229 = vunpack.c.l.b16 %v85
  %v230 = vunpack.c.l.b16 %v86
  %v231 = vunpack.c.l.b16 %v87
  %v232 = vunpack.c.l.b16 %v88
  %v233 = vunpack.c.l.b16 %v89
  %v234 = vunpack.c.l.b16 %v90
  %v235 = vunpack.c.l.b16 %v91
  %v236 = vunpack.c.l.b16 %v92
  %v237 = vunpack.c.l.b16 %v93
  %v238 = vunpack.c.l.b16 %v94
  %v239 = vunpack.c.l.b16 %v95
  %v240 = vunpack.c.l.b16 %v96
  %v241 = vunpack.c.l.b16 %v97
  %v242 = vunpack.c.l.b16 %v98
  %v243 = vpack.c.b16 %v212, %v211
  %v244 = vpack.c.b16 %v214, %v213
  %v245 = vpack.c.b16 %v216, %v215
  %v246 = vpack.c.b16 %v218, %v217
  %v247 = vpack.c.b16 %v220, %v219
  %v248 = vpack.c.b16 %v222, %v221
  %v249 = vpack.c.b16 %v224, %v223
  %v250 = vpack.c.b16 %v226, %v225
  %v251 = vpack.c.b16 %v228, %v227
  %v252 = vpack.c.b16 %v230, %v229
  %v253 = vpack.c.b16 %v232, %v231
  %v254 = vpack.c.b16 %v234, %v233
  %v255 = vpack.c.b16 %v236, %v235
  %v256 = vpack.c.b16 %v238, %v237
  %v257 = vpack.c.b16 %v240, %v239
  %v258 = vpack.c.b16 %v242, %v241
  %275 = vmatprep.subr.bf16.mxu0 0
  %276 = vmatpush1.bf16.msra.mxu0 %v243
  %277 = vmatprep.subr.bf16.mxu0 0
  %278 = vmatpush1.bf16.msra.mxu0 %v244
  %279 = vmatprep.subr.bf16.mxu0 0
  %280 = vmatpush1.bf16.msra.mxu0 %v245
  %281 = vmatprep.subr.bf16.mxu0 0
  %282 = vmatpush1.bf16.msra.mxu0 %v246
  %283 = vmatprep.subr.bf16.mxu0 0
  %284 = vmatpush1.bf16.msra.mxu0 %v247
  %285 = vmatprep.subr.bf16.mxu0 0
  %286 = vmatpush1.bf16.msra.mxu0 %v248
  %287 = vmatprep.subr.bf16.mxu0 0
  %288 = vmatpush1.bf16.msra.mxu0 %v249
  %289 = vmatprep.subr.bf16.mxu0 0
  %290 = vmatpush1.bf16.msra.mxu0 %v250
  %291 = vmatprep.subr.bf16.mxu0 0
  %292 = vmatpush1.bf16.msra.mxu0 %v251
  %293 = vmatprep.subr.bf16.mxu0 0
  %294 = vmatpush1.bf16.msra.mxu0 %v252
  %295 = vmatprep.subr.bf16.mxu0 0
  %296 = vmatpush1.bf16.msra.mxu0 %v253
  %297 = vmatprep.subr.bf16.mxu0 0
  %298 = vmatpush1.bf16.msra.mxu0 %v254
  %299 = vmatprep.subr.bf16.mxu0 0
  %300 = vmatpush1.bf16.msra.mxu0 %v255
  %301 = vmatprep.subr.bf16.mxu0 0
  %302 = vmatpush1.bf16.msra.mxu0 %v256
  %303 = vmatprep.subr.bf16.mxu0 0
  %304 = vmatpush1.bf16.msra.mxu0 %v257
  %305 = vmatprep.subr.bf16.mxu0 0
  %306 = vmatpush1.bf16.msra.mxu0 %v258
  %307 = vmatprep.mubr.bf16.mxu0 %v148
  %308 = vmatmul.mubr.bf16.gmra.mrb[0].mxu0 %v147
  %v309 = vpop.f32.mrb[0].mxu0
  %v310 = vadd.f32 0.0, %v309
  %v311 = vpop.f32.mrb[0].mxu0
  %v312 = vpop.f32.mrb[0].mxu0
  %v313 = vadd.f32 0.0, %v312
  %v314 = vpop.f32.mrb[0].mxu0
  %315 = vmatprep.mubr.bf16.mxu0 %v150
  %316 = vmatmul.mubr.bf16.gmra.mrb[0].mxu0 %v149
  %v317 = vpop.f32.mrb[0].mxu0
  %v318 = vadd.f32 0.0, %v317
  %v319 = vpop.f32.mrb[0].mxu0
  %v320 = vpop.f32.mrb[0].mxu0
  %v321 = vadd.f32 0.0, %v320
  %v322 = vpop.f32.mrb[0].mxu0
  %323 = vmatprep.mubr.bf16.mxu0 %v152
  %324 = vmatmul.mubr.bf16.gmra.mrb[0].mxu0 %v151
  %v325 = vpop.f32.mrb[0].mxu0
  %v326 = vadd.f32 0.0, %v325
  %v327 = vpop.f32.mrb[0].mxu0
  %v328 = vpop.f32.mrb[0].mxu0
  %v329 = vadd.f32 0.0, %v328
  %v330 = vpop.f32.mrb[0].mxu0
  %331 = vmatprep.mubr.bf16.mxu0 %v154
  %332 = vmatmul.mubr.bf16.gmra.mrb[0].mxu0 %v153
  %v333 = vpop.f32.mrb[0].mxu0
  %v334 = vadd.f32 0.0, %v333
  %v335 = vpop.f32.mrb[0].mxu0
  %v336 = vpop.f32.mrb[0].mxu0
  %v337 = vadd.f32 0.0, %v336
  %v338 = vpop.f32.mrb[0].mxu0
  %339 = vmatprep.mubr.bf16.mxu0 %v156
  %340 = vmatmul.mubr.bf16.gmra.mrb[0].mxu0 %v155
  %v341 = vpop.f32.mrb[0].mxu0
  %v342 = vadd.f32 0.0, %v341
  %v343 = vpop.f32.mrb[0].mxu0
  %v344 = vpop.f32.mrb[0].mxu0
  %v345 = vadd.f32 0.0, %v344
  %v346 = vpop.f32.mrb[0].mxu0
  %347 = vmatprep.mubr.bf16.mxu0 %v158
  %348 = vmatmul.mubr.bf16.gmra.mrb[0].mxu0 %v157
  %v349 = vpop.f32.mrb[0].mxu0
  %v350 = vadd.f32 0.0, %v349
  %v351 = vpop.f32.mrb[0].mxu0
  %v352 = vpop.f32.mrb[0].mxu0
  %v353 = vadd.f32 0.0, %v352
  %v354 = vpop.f32.mrb[0].mxu0
  %355 = vmatprep.mubr.bf16.mxu0 %v160
  %356 = vmatmul.mubr.bf16.gmra.mrb[0].mxu0 %v159
  %v357 = vpop.f32.mrb[0].mxu0
  %v358 = vadd.f32 0.0, %v357
  %v359 = vpop.f32.mrb[0].mxu0
  %v360 = vpop.f32.mrb[0].mxu0
  %v361 = vadd.f32 0.0, %v360
  %v362 = vpop.f32.mrb[0].mxu0
  %363 = vmatprep.mubr.bf16.mxu0 %v162
  %364 = vmatmul.mubr.bf16.gmra.mrb[0].mxu0 %v161
  %v365 = vpop.f32.mrb[0].mxu0
  %v366 = vadd.f32 0.0, %v365
  %v367 = vpop.f32.mrb[0].mxu0
  %v368 = vpop.f32.mrb[0].mxu0
  %v369 = vadd.f32 0.0, %v368
  %v370 = vpop.f32.mrb[0].mxu0
  %371 = vdwg.mxu0
  %v372 = vadd.f32 %v35, %v310
  %v373 = vadd.f32 %v36, %v313
  %v374 = vadd.f32 %v37, %v318
  %v375 = vadd.f32 %v38, %v321
  %v376 = vadd.f32 %v39, %v326
  %v377 = vadd.f32 %v40, %v329
  %v378 = vadd.f32 %v41, %v334
  %v379 = vadd.f32 %v42, %v337
  %v380 = vadd.f32 %v43, %v342
  %v381 = vadd.f32 %v44, %v345
  %v382 = vadd.f32 %v45, %v350
  %v383 = vadd.f32 %v46, %v353
  %v384 = vadd.f32 %v47, %v358
  %v385 = vadd.f32 %v48, %v361
  %v386 = vadd.f32 %v49, %v366
  %v387 = vadd.f32 %v50, %v369
  %388 = vst [vmem:[#allocation2] sm:$0xff] %v372
  %389 = vst [vmem:[#allocation2 + $0x8] sm:$0xff] %v373
  %390 = vst [vmem:[#allocation2 + $0x10] sm:$0xff] %v374
  %391 = vst [vmem:[#allocation2 + $0x18] sm:$0xff] %v375
  %392 = vst [vmem:[#allocation2 + $0x20] sm:$0xff] %v376
  %393 = vst [vmem:[#allocation2 + $0x28] sm:$0xff] %v377
  %394 = vst [vmem:[#allocation2 + $0x30] sm:$0xff] %v378
  %395 = vst [vmem:[#allocation2 + $0x38] sm:$0xff] %v379
  %396 = vst [vmem:[#allocation2 + $0x40] sm:$0xff] %v380
  %397 = vst [vmem:[#allocation2 + $0x48] sm:$0xff] %v381
  %398 = vst [vmem:[#allocation2 + $0x50] sm:$0xff] %v382
  %399 = vst [vmem:[#allocation2 + $0x58] sm:$0xff] %v383
  %400 = vst [vmem:[#allocation2 + $0x60] sm:$0xff] %v384
  %401 = vst [vmem:[#allocation2 + $0x68] sm:$0xff] %v385
  %402 = vst [vmem:[#allocation2 + $0x70] sm:$0xff] %v386
  %403 = vst [vmem:[#allocation2 + $0x78] sm:$0xff] %v387
  // Predicated region
  $region18: #{gemma_decoder_layer.9} parent=0 // pred_check
    %p404 = pneg %p15
  $region19: #{gemma_decoder_layer.9} parent=0 // pred_check_branch
    %406 = sbr.rel (%p404) target = $region21
  $region20: #{gemma_decoder_layer.9} parent=0 // pred_region
    %v407 = vld [vmem:[#allocation2] sm:$0xff]
    %v408 = vld [vmem:[#allocation2 + $0x8] sm:$0xff]
    %v409 = vld [vmem:[#allocation2 + $0x10] sm:$0xff]
    %v410 = vld [vmem:[#allocation2 + $0x18] sm:$0xff]
    %v411 = vld [vmem:[#allocation2 + $0x20] sm:$0xff]
    %v412 = vld [vmem:[#allocation2 + $0x28] sm:$0xff]
    %v413 = vld [vmem:[#allocation2 + $0x30] sm:$0xff]
    %v414 = vld [vmem:[#allocation2 + $0x38] sm:$0xff]
    %v415 = vld [vmem:[#allocation2 + $0x40] sm:$0xff]
    %v416 = vld [vmem:[#allocation2 + $0x48] sm:$0xff]
    %v417 = vld [vmem:[#allocation2 + $0x50] sm:$0xff]
    %v418 = vld [vmem:[#allocation2 + $0x58] sm:$0xff]
    %v419 = vld [vmem:[#allocation2 + $0x60] sm:$0xff]
    %v420 = vld [vmem:[#allocation2 + $0x68] sm:$0xff]
    %v421 = vld [vmem:[#allocation2 + $0x70] sm:$0xff]
    %v422 = vld [vmem:[#allocation2 + $0x78] sm:$0xff]
    %v423 = vld [vmem:[%s2] sm:$0xff]
    %v424 = vld [vmem:[%s2 + $0x8] sm:$0xff]
    %v425 = vld [vmem:[%s2 + $0x10] sm:$0xff]
    %v426 = vld [vmem:[%s2 + $0x18] sm:$0xff]
    %v427 = vld [vmem:[%s2 + $0x20] sm:$0xff]
    %v428 = vld [vmem:[%s2 + $0x28] sm:$0xff]
    %v429 = vld [vmem:[%s2 + $0x30] sm:$0xff]
    %v430 = vld [vmem:[%s2 + $0x38] sm:$0xff]
    %v431 = vld [vmem:[%s2 + $0x40] sm:$0xff]
    %v432 = vld [vmem:[%s2 + $0x48] sm:$0xff]
    %v433 = vld [vmem:[%s2 + $0x50] sm:$0xff]
    %v434 = vld [vmem:[%s2 + $0x58] sm:$0xff]
    %v435 = vld [vmem:[%s2 + $0x60] sm:$0xff]
    %v436 = vld [vmem:[%s2 + $0x68] sm:$0xff]
    %v437 = vld [vmem:[%s2 + $0x70] sm:$0xff]
    %v438 = vld [vmem:[%s2 + $0x78] sm:$0xff]
    %v439 = vadd.f32 %v407, %v423
    %v440 = vadd.f32 %v408, %v424
    %v441 = vadd.f32 %v409, %v425
    %v442 = vadd.f32 %v410, %v426
    %v443 = vadd.f32 %v411, %v427
    %v444 = vadd.f32 %v412, %v428
    %v445 = vadd.f32 %v413, %v429
    %v446 = vadd.f32 %v414, %v430
    %v447 = vadd.f32 %v415, %v431
    %v448 = vadd.f32 %v416, %v432
    %v449 = vadd.f32 %v417, %v433
    %v450 = vadd.f32 %v418, %v434
    %v451 = vadd.f32 %v419, %v435
    %v452 = vadd.f32 %v420, %v436
    %v453 = vadd.f32 %v421, %v437
    %v454 = vadd.f32 %v422, %v438
    %455 = vst [vmem:[%s3] sm:$0xff] %v439
    %456 = vst [vmem:[%s3 + $0x8] sm:$0xff] %v440
    %457 = vst [vmem:[%s3 + $0x10] sm:$0xff] %v441
    %458 = vst [vmem:[%s3 + $0x18] sm:$0xff] %v442
    %459 = vst [vmem:[%s3 + $0x20] sm:$0xff] %v443
    %460 = vst [vmem:[%s3 + $0x28] sm:$0xff] %v444
    %461 = vst [vmem:[%s3 + $0x30] sm:$0xff] %v445
    %462 = vst [vmem:[%s3 + $0x38] sm:$0xff] %v446
    %463 = vst [vmem:[%s3 + $0x40] sm:$0xff] %v447
    %464 = vst [vmem:[%s3 + $0x48] sm:$0xff] %v448
    %465 = vst [vmem:[%s3 + $0x50] sm:$0xff] %v449
    %466 = vst [vmem:[%s3 + $0x58] sm:$0xff] %v450
    %467 = vst [vmem:[%s3 + $0x60] sm:$0xff] %v451
    %468 = vst [vmem:[%s3 + $0x68] sm:$0xff] %v452
    %469 = vst [vmem:[%s3 + $0x70] sm:$0xff] %v453
    %470 = vst [vmem:[%s3 + $0x78] sm:$0xff] %v454
  $region21: #{gemma_decoder_layer.9} parent=0 // pred_fallthru
    _
  // Predicated region
  $region22: #{gemma_decoder_layer.9} parent=0 // pred_check
    _
  $region23: #{gemma_decoder_layer.9} parent=0 // pred_check_branch
    %472 = sbr.rel (0) target = $region25
  $region24: #{gemma_decoder_layer.9} parent=0 // pred_region
    _
  $region25: #{gemma_decoder_layer.9} parent=0 // pred_fallthru
    _
  // Predicated region
  $region26: #{gemma_decoder_layer.9} parent=0 // pred_check
    _
  $region27: #{gemma_decoder_layer.9} parent=0 // pred_check_branch
    %474 = sbr.rel (0) target = $region29
  $region28: #{gemma_decoder_layer.9} parent=0 // pred_region
    _
  $region29: #{gemma_decoder_layer.9} parent=0 // pred_fallthru
    _

</llo_original>
